<compile_context>
chip_gen: v7x
topology: tpu7x:2x2x1
jax: 0.10.0
libtpu: 0.0.40
codegen_flags: <defaults>
</compile_context>

<pallas_src>
import numpy as np
import jax
import jax.numpy as jnp
from jax.experimental import pallas as pl
from jax.experimental.pallas import tpu as pltpu

NEG_SLOPE = 0.01  # F.leaky_relu default negative_slope


def _leaky(x):
    return jnp.where(x >= 0, x, NEG_SLOPE * x)


def _round_up(x, m):
    return ((x + m - 1) // m) * m


# ------------------------------ fused kernel ---------------------------------
# Single invocation, everything resident in VMEM.  Branch order everywhere is
# (top, hub, dec), matching the reference output concat order.

def _decoder_kernel(edge_ref, node_ref, wcat_ref, dgw_ref, gcnwn_ref,
                    gcnww_ref, small_ref, psel_ref, wsel_ref, r_ref,
                    rtct_ref, gsa_ref, sout_ref, eye_ref, o_ref):
    f32 = jnp.float32
    nb, _, h = gcnwn_ref.shape                       # 3 branches, hidden width
    small = small_ref[...]                           # (4, 3h): dgb/gcnb/catw/catb

    # deep-gravity Linear + leaky_relu for ALL branches in one 48-lane matmul
    e_full = _leaky(
        jnp.dot(edge_ref[...], dgw_ref[...], preferred_element_type=f32)
        + small[0:1, :])                             # (E, 3h)
    # TODO(synk): F.dropout is the identity here (dropout_rate=0 / eval).

    node_feat = node_ref[...]                        # (N, dn)
    wcat = wcat_ref[...]                             # (Nw_total, dw)

    for b in range(nb):                              # unrolled: 3 tiny branches
        lo, hi = b * h, (b + 1) * h
        e_b = e_full[:, lo:hi]                       # this branch's dg output

        # edge_mask gather & adjacency_indices gather as one-hot matmuls
        e_sel = jnp.dot(gsa_ref[2 * b], e_b, preferred_element_type=f32)
        w_rows = jnp.dot(gsa_ref[2 * b + 1], e_b, preferred_element_type=f32)
        # AdaptiveAvgPool1d(1): mean over features -> per-edge scalar weight
        w = jnp.mean(w_rows, axis=-1, keepdims=True)             # (E_pad, 1)

        # dense symmetric weighted adjacency with self loops, via symmetry:
        # A1[i,j] = sum_e R[i,e] w[e] C[j,e];  A = A1 + A1.T + I_restricted
        ct = rtct_ref[2 * b + 1]                                 # (E_pad, N_pad)
        a1 = jnp.dot(r_ref[b], ct * w, preferred_element_type=f32)
        a = a1 + jnp.transpose(a1) + eye_ref[b]                  # (N_pad, N_pad)
        deg_r = jnp.sum(a, axis=1, keepdims=True)
        deg_c = jnp.sum(a, axis=0, keepdims=True)
        dri = jnp.where(deg_r > 0, jax.lax.rsqrt(deg_r), 0.0)
        dci = jnp.where(deg_c > 0, jax.lax.rsqrt(deg_c), 0.0)
        a_norm = dri * a * dci                       # D^-1/2 (A+I) D^-1/2

        # GCN input built in-kernel: node one-hot select + weather one-hot
        # embed, with the concat folded into split weight matmuls.
        nodes_sel = jnp.dot(psel_ref[b], node_feat, preferred_element_type=f32)
        w_sel = jnp.dot(wsel_ref[b], wcat, preferred_element_type=f32)
        xw = (jnp.dot(nodes_sel, gcnwn_ref[b], preferred_element_type=f32)
              + jnp.dot(w_sel, gcnww_ref[b], preferred_element_type=f32))
        x = _leaky(jnp.dot(a_norm, xw, preferred_element_type=f32)
                   + small[1:2, lo:hi])              # (N_pad, h)

        # sigmoid(x @ x.T); pick exactly the branch-edge (triu) entries
        s = jax.lax.dot_general(x, x, (((1,), (1,)), ((), ())),
                                preferred_element_type=f32)
        sig = 0.5 * (jnp.tanh(0.5 * s) + 1.0)        # exact F.sigmoid
        m = jnp.dot(rtct_ref[2 * b], sig, preferred_element_type=f32)
        ew = jnp.sum(m * ct, axis=1, keepdims=True)  # (E_pad, 1)

        # concat_linear (1 -> h) + residual fusion, then edge_unpool scatter
        ew_lin = ew * small[2:3, lo:hi] + small[3:4, lo:hi]      # (E_pad, h)
        fused = ew_lin * e_sel + e_sel
        # branch writes its own lane block of the final concatenated output
        o_ref[:, lo:hi] = jnp.dot(sout_ref[b], fused,
                                  preferred_element_type=f32)    # (E, h)


def fused_decoder_call(edge_feat, node_feat, weather_cat, packed, geom):
    num_edges = edge_feat.shape[0]
    h3 = packed["dg_w"].shape[1]                     # 3 * hidden
    args = (edge_feat, node_feat, weather_cat,
            packed["dg_w"], packed["gcn_wn"], packed["gcn_ww"], packed["small"],
            geom["P_sel"], geom["W_sel"], geom["R"], geom["RtCt"], geom["GSA"],
            geom["S_out"], geom["EYE"])
    vmem_spec = pl.BlockSpec(memory_space=pltpu.MemorySpace.VMEM)
    return pl.pallas_call(
        _decoder_kernel,
        out_shape=jax.ShapeDtypeStruct((num_edges, h3), jnp.float32),
        in_specs=[vmem_spec] * len(args),
        out_specs=vmem_spec,
    )(*args)


# --------------------------- host-side packing (once) ------------------------

def init_decoder_params(key, node_input_dim, weather_input_dim,
                        node_hidden_dims, edge_input_dim, edge_hidden_dims):
    def lin(k, din, dout):
        k1, k2 = jax.random.split(k)
        return (jax.random.normal(k1, (din, dout), jnp.float32) * 0.1,
                jax.random.normal(k2, (dout,), jnp.float32) * 0.1)

    keys = iter(jax.random.split(key, 64))
    params = {}
    for branch in ("top", "hub", "dec"):
        dg, gcn, cat = [], [], []
        for i in range(len(edge_hidden_dims)):
            din = edge_input_dim if i == 0 else edge_hidden_dims[i - 1]
            dg.append(lin(next(keys), din, edge_hidden_dims[i]))
        for i in range(len(node_hidden_dims)):
            din = (node_input_dim if i == 0 else node_hidden_dims[i - 1]) + weather_input_dim
            gcn.append(lin(next(keys), din, node_hidden_dims[i]))
            cat.append(lin(next(keys), 1, edge_hidden_dims[i]))
        params[f"dg_{branch}"] = dg
        params[f"gcn_{branch}"] = gcn
        params[f"cat_{branch}"] = cat
    return params


def pack_decoder_params(params, weather_input_dim):
    # layer indices used by the reference forward: top->[0], hub->[1], dec->[-1]
    # TODO(synk): packing assumes the three used layers share the same widths
    # (true for this module configuration).
    dg = [params["dg_top"][0], params["dg_hub"][1], params["dg_dec"][-1]]
    gcn = [params["gcn_top"][0], params["gcn_hub"][1], params["gcn_dec"][-1]]
    cat = [params["cat_top"][0], params["cat_hub"][1], params["cat_dec"][-1]]

    dg_w = jnp.concatenate([w for w, _ in dg], axis=-1)               # (de, 3h)
    gcn_wn = jnp.stack([w[:-weather_input_dim, :] for w, _ in gcn])   # node rows
    gcn_ww = jnp.stack([w[-weather_input_dim:, :] for w, _ in gcn])   # weather rows
    small = jnp.stack([
        jnp.concatenate([b for _, b in dg]),          # row 0: dg bias
        jnp.concatenate([b for _, b in gcn]),         # row 1: gcn bias
        jnp.concatenate([w.reshape(-1) for w, _ in cat]),  # row 2: cat weight
        jnp.concatenate([b for _, b in cat]),         # row 3: cat bias
    ])                                                # (4, 3h)
    return dict(dg_w=dg_w, gcn_wn=gcn_wn, gcn_ww=gcn_ww, small=small)


def pack_decoder_geometry(adjacency_index, adjacency_indices_lists,
                          hub_top_edge_idx, hub_indices_list,
                          num_edges, num_nodes, weather_rows):
    """Precompute all topology-dependent one-hot select / incidence matrices."""
    adj_full, adj_hub, adj_top = [np.asarray(a) for a in adjacency_index]
    hub_edge_idx, top_edge_idx = [np.asarray(i) for i in hub_top_edge_idx]
    sel_full, sel_hub, sel_top = [np.asarray(i) for i in adjacency_indices_lists]
    hub_nodes, top_nodes = [np.asarray(i) for i in hub_indices_list]
    nw_full, nw_hub, nw_top = weather_rows
    wtot = nw_full + nw_hub + nw_top

    # Branch order (top, hub, dec).  NOTE: the reference edge_unpool for the
    # TOP branch is called with selected_edges=hub_edge_mask (mirrored here).
    branches = [
        dict(edge_index=adj_top, nodes=top_nodes, edge_sel=top_edge_idx,
             adj_sel=sel_top, unpool=hub_edge_idx,
             w_off=nw_full + nw_hub, w_n=nw_top),
        dict(edge_index=adj_hub, nodes=hub_nodes, edge_sel=hub_edge_idx,
             adj_sel=sel_hub, unpool=hub_edge_idx, w_off=nw_full, w_n=nw_hub),
        dict(edge_index=adj_full, nodes=np.arange(num_nodes), edge_sel=None,
             adj_sel=sel_full, unpool=None, w_off=0, w_n=nw_full),
    ]
    n_pad = _round_up(max(len(b["nodes"]) for b in branches), 8)
    e_pad = _round_up(max([num_edges] + [b["edge_index"].shape[1]
                                         for b in branches]), 8)

    P, W, R, RTCT, GSA, S, EYE = ([] for _ in range(7))
    for b in branches:
        nb = len(b["nodes"])
        # node selection (create_subgraph_from_hub_nodes)
        p = np.zeros((n_pad, num_nodes), np.float32)
        p[np.arange(nb), b["nodes"]] = 1.0
        P.append(p)
        # weather selection from the single concatenated weather slab
        ws = np.zeros((n_pad, wtot), np.float32)
        ws[np.arange(b["w_n"]), b["w_off"] + np.arange(b["w_n"])] = 1.0
        W.append(ws)
        # incidence matrices for the branch adjacency
        ei = b["edge_index"]; ne = ei.shape[1]
        r = np.zeros((n_pad, e_pad), np.float32); r[ei[0], np.arange(ne)] = 1.0
        c = np.zeros((n_pad, e_pad), np.float32); c[ei[1], np.arange(ne)] = 1.0
        R.append(r)
        RTCT.extend([np.ascontiguousarray(r.T), np.ascontiguousarray(c.T)])
        # edge_mask gather + adjacency_indices gather (composed with the mask)
        sel = np.arange(num_edges) if b["edge_sel"] is None else b["edge_sel"]
        gs = np.zeros((e_pad, num_edges), np.float32)
        gs[np.arange(len(sel)), sel] = 1.0
        comp = sel[b["adj_sel"]]
        ga = np.zeros((e_pad, num_edges), np.float32)
        ga[np.arange(len(comp)), comp] = 1.0
        GSA.extend([gs, ga])
        # edge_unpool scatter: full-edge rows <- branch-edge rows (dec: identity)
        so = np.zeros((num_edges, e_pad), np.float32)
        if b["unpool"] is None:
            so[np.arange(num_edges), np.arange(num_edges)] = 1.0
        else:
            so[np.asarray(b["unpool"]), np.arange(len(b["unpool"]))] = 1.0
        S.append(so)
        # GCNConv add_self_loops=True (fill 1.0), only on real nodes
        ey = np.zeros((n_pad, n_pad), np.float32)
        ey[np.arange(nb), np.arange(nb)] = 1.0
        EYE.append(ey)

    return dict(
        P_sel=jnp.asarray(np.stack(P)), W_sel=jnp.asarray(np.stack(W)),
        R=jnp.asarray(np.stack(R)), RtCt=jnp.asarray(np.stack(RTCT)),
        GSA=jnp.asarray(np.stack(GSA)), S_out=jnp.asarray(np.stack(S)),
        EYE=jnp.asarray(np.stack(EYE)))


# ------------------------------ forward pass ---------------------------------

@jax.jit
def decoder_forward(packed_params, geometry, node_hidden_z, weather_input_x,
                    edge_hidden_z):
    # TODO(synk): the reference loops over (nonexistent) self.gcn_enc_* lists;
    # every iteration re-applies the same fixed layer to the same inputs, so a
    # single evaluation per branch is equivalent.
    weather_x, hub_weather_x, top_weather_x = weather_input_x
    # The ONLY remaining XLA glue: one concat of the three weather slabs.
    weather_cat = jnp.concatenate(
        [weather_x, hub_weather_x, top_weather_x], axis=0).astype(jnp.float32)
    return fused_decoder_call(
        edge_hidden_z.astype(jnp.float32), node_hidden_z.astype(jnp.float32),
        weather_cat, packed_params, geometry)        # (E, 3h), already concat'd


# ---------------------------------- main --------------------------------------

if __name__ == "__main__":
    # Sizes: full graph N=8 nodes / 28 edges; hub & top subgraphs 4 nodes / 6 edges.
    N, N_HUB, N_TOP = 8, 4, 4
    E = N * (N - 1) // 2              # 28
    E_HUB = N_HUB * (N_HUB - 1) // 2  # 6
    E_TOP = N_TOP * (N_TOP - 1) // 2  # 6

    node_input_dim = 16
    weather_input_dim = 8
    node_hidden_dims = [16, 16]
    edge_input_dim = 16
    edge_hidden_dims = [16, 16]

    k = iter(jax.random.split(jax.random.PRNGKey(0), 16))
    node_hidden_z = jax.random.normal(next(k), (N, node_input_dim), jnp.float32)
    edge_hidden_z = jax.random.normal(next(k), (E, edge_input_dim), jnp.float32)
    weather_x = jax.random.normal(next(k), (N, weather_input_dim), jnp.float32)
    hub_weather_x = jax.random.normal(next(k), (N_HUB, weather_input_dim), jnp.float32)
    top_weather_x = jax.random.normal(next(k), (N_TOP, weather_input_dim), jnp.float32)

    def upper_tri_edges(n):
        r, c = np.triu_indices(n, k=1)
        return np.stack([r, c]).astype(np.int32)

    adj_full = upper_tri_edges(N)      # (2, 28)
    adj_hub = upper_tri_edges(N_HUB)   # (2, 6)
    adj_top = upper_tri_edges(N_TOP)   # (2, 6)

    hub_nodes = np.array([0, 2, 4, 6], np.int32)
    top_nodes = np.array([1, 3, 5, 7], np.int32)
    hub_indices_list = [hub_nodes, top_nodes]

    hub_edge_idx = np.arange(E_HUB, dtype=np.int32)
    top_edge_idx = np.arange(E_HUB, E_HUB + E_TOP, dtype=np.int32)

    # adjacency_indices (.bool()) masks -> all-true here, kept as index arrays
    adjacency_indices_lists = [np.arange(E, dtype=np.int32),
                               np.arange(E_HUB, dtype=np.int32),
                               np.arange(E_TOP, dtype=np.int32)]

    params = init_decoder_params(jax.random.PRNGKey(1), node_input_dim,
                                 weather_input_dim, node_hidden_dims,
                                 edge_input_dim, edge_hidden_dims)
    packed = pack_decoder_params(params, weather_input_dim)
    geometry = pack_decoder_geometry(
        (adj_full, adj_hub, adj_top), adjacency_indices_lists,
        (hub_edge_idx, top_edge_idx), hub_indices_list,
        num_edges=E, num_nodes=N, weather_rows=(N, N_HUB, N_TOP))

    out = decoder_forward(packed, geometry, node_hidden_z,
                          (weather_x, hub_weather_x, top_weather_x),
                          edge_hidden_z)
    out = jax.block_until_ready(out)

    expected_width = edge_hidden_dims[0] + edge_hidden_dims[1] + edge_hidden_dims[-1]
    assert out.shape == (E, expected_width), out.shape
    assert bool(jnp.all(jnp.isfinite(out)))
    print("KERNEL_OK")
</pallas_src>

<mosaic_0001>
module attributes {stable_mosaic.version = 11 : i64} {
  func.func @_decoder_kernel(%arg0: memref<28x16xf32, #tpu.memory_space<vmem>>, %arg1: memref<8x16xf32, #tpu.memory_space<vmem>>, %arg2: memref<16x8xf32, #tpu.memory_space<vmem>>, %arg3: memref<16x48xf32, #tpu.memory_space<vmem>>, %arg4: memref<3x16x16xf32, #tpu.memory_space<vmem>>, %arg5: memref<3x8x16xf32, #tpu.memory_space<vmem>>, %arg6: memref<4x48xf32, #tpu.memory_space<vmem>>, %arg7: memref<3x8x8xf32, #tpu.memory_space<vmem>>, %arg8: memref<3x8x16xf32, #tpu.memory_space<vmem>>, %arg9: memref<3x8x32xf32, #tpu.memory_space<vmem>>, %arg10: memref<6x32x8xf32, #tpu.memory_space<vmem>>, %arg11: memref<6x32x28xf32, #tpu.memory_space<vmem>>, %arg12: memref<3x28x32xf32, #tpu.memory_space<vmem>>, %arg13: memref<3x8x8xf32, #tpu.memory_space<vmem>>, %arg14: memref<28x48xf32, #tpu.memory_space<vmem>>) attributes {dimension_semantics = [], scalar_prefetch = 0 : i64, scratch_operands = 0 : i64, tpu.core_type = #tpu.core_type<tc>} {
    %c0 = arith.constant 0 : index
    %c0_0 = arith.constant 0 : index
    %0 = vector.load %arg6[%c0, %c0_0] : memref<4x48xf32, #tpu.memory_space<vmem>>, vector<4x48xf32>
    %c0_1 = arith.constant 0 : index
    %c0_2 = arith.constant 0 : index
    %1 = vector.load %arg0[%c0_1, %c0_2] : memref<28x16xf32, #tpu.memory_space<vmem>>, vector<28x16xf32>
    %c0_3 = arith.constant 0 : index
    %c0_4 = arith.constant 0 : index
    %2 = vector.load %arg3[%c0_3, %c0_4] : memref<16x48xf32, #tpu.memory_space<vmem>>, vector<16x48xf32>
    %cst = arith.constant dense<0.000000e+00> : vector<28x48xf32>
    %3 = tpu.matmul %1, %2, %cst {dimension_numbers = #tpu.dot_dimension_numbers<[1], [0], [0], [1], [0, 0, 1, 1], [], []>} : vector<28x16xf32>, vector<16x48xf32>, vector<28x48xf32> -> vector<28x48xf32>
    %4 = vector.extract_strided_slice %0 {offsets = [0, 0], sizes = [1, 48], strides = [1, 1]} : vector<4x48xf32> to vector<1x48xf32>
    %5 = vector.broadcast %4 : vector<1x48xf32> to vector<28x48xf32>
    %6 = arith.addf %3, %5 : vector<28x48xf32>
    %cst_5 = arith.constant 0.000000e+00 : f32
    %7 = vector.broadcast %cst_5 : f32 to vector<28x48xf32>
    %8 = arith.cmpf oge, %6, %7 : vector<28x48xf32>
    %cst_6 = arith.constant 0.00999999977 : f32
    %9 = vector.broadcast %cst_6 : f32 to vector<28x48xf32>
    %10 = arith.mulf %9, %6 : vector<28x48xf32>
    %11 = arith.select %8, %6, %10 : vector<28x48xi1>, vector<28x48xf32>
    %c0_7 = arith.constant 0 : index
    %c0_8 = arith.constant 0 : index
    %12 = vector.load %arg1[%c0_7, %c0_8] : memref<8x16xf32, #tpu.memory_space<vmem>>, vector<8x16xf32>
    %c0_9 = arith.constant 0 : index
    %c0_10 = arith.constant 0 : index
    %13 = vector.load %arg2[%c0_9, %c0_10] : memref<16x8xf32, #tpu.memory_space<vmem>>, vector<16x8xf32>
    %14 = vector.extract_strided_slice %11 {offsets = [0, 0], sizes = [28, 16], strides = [1, 1]} : vector<28x48xf32> to vector<28x16xf32>
    %c0_11 = arith.constant 0 : index
    %c0_12 = arith.constant 0 : index
    %c0_13 = arith.constant 0 : index
    %15 = vector.load %arg11[%c0_11, %c0_12, %c0_13] : memref<6x32x28xf32, #tpu.memory_space<vmem>>, vector<1x32x28xf32>
    %16 = vector.shape_cast %15 : vector<1x32x28xf32> to vector<32x28xf32>
    %cst_14 = arith.constant dense<0.000000e+00> : vector<32x16xf32>
    %17 = tpu.matmul %16, %14, %cst_14 {dimension_numbers = #tpu.dot_dimension_numbers<[1], [0], [0], [1], [0, 0, 1, 1], [], []>} : vector<32x28xf32>, vector<28x16xf32>, vector<32x16xf32> -> vector<32x16xf32>
    %c1 = arith.constant 1 : index
    %c0_15 = arith.constant 0 : index
    %c0_16 = arith.constant 0 : index
    %18 = vector.load %arg11[%c1, %c0_15, %c0_16] : memref<6x32x28xf32, #tpu.memory_space<vmem>>, vector<1x32x28xf32>
    %19 = vector.shape_cast %18 : vector<1x32x28xf32> to vector<32x28xf32>
    %cst_17 = arith.constant dense<0.000000e+00> : vector<32x16xf32>
    %20 = tpu.matmul %19, %14, %cst_17 {dimension_numbers = #tpu.dot_dimension_numbers<[1], [0], [0], [1], [0, 0, 1, 1], [], []>} : vector<32x28xf32>, vector<28x16xf32>, vector<32x16xf32> -> vector<32x16xf32>
    %cst_18 = arith.constant dense<0.000000e+00> : vector<32xf32>
    %21 = vector.multi_reduction <add>, %20, %cst_18 [1] : vector<32x16xf32> to vector<32xf32>
    %22 = vector.shape_cast %21 : vector<32xf32> to vector<32x1xf32>
    %cst_19 = arith.constant 1.600000e+01 : f32
    %23 = vector.broadcast %cst_19 : f32 to vector<32x1xf32>
    %24 = arith.divf %22, %23 : vector<32x1xf32>
    %c1_20 = arith.constant 1 : index
    %c0_21 = arith.constant 0 : index
    %c0_22 = arith.constant 0 : index
    %25 = vector.load %arg10[%c1_20, %c0_21, %c0_22] : memref<6x32x8xf32, #tpu.memory_space<vmem>>, vector<1x32x8xf32>
    %26 = vector.shape_cast %25 : vector<1x32x8xf32> to vector<32x8xf32>
    %c0_23 = arith.constant 0 : index
    %c0_24 = arith.constant 0 : index
    %c0_25 = arith.constant 0 : index
    %27 = vector.load %arg9[%c0_23, %c0_24, %c0_25] : memref<3x8x32xf32, #tpu.memory_space<vmem>>, vector<1x8x32xf32>
    %28 = vector.shape_cast %27 : vector<1x8x32xf32> to vector<8x32xf32>
    %29 = vector.broadcast %24 : vector<32x1xf32> to vector<32x8xf32>
    %30 = arith.mulf %26, %29 : vector<32x8xf32>
    %cst_26 = arith.constant dense<0.000000e+00> : vector<8x8xf32>
    %31 = tpu.matmul %28, %30, %cst_26 {dimension_numbers = #tpu.dot_dimension_numbers<[1], [0], [0], [1], [0, 0, 1, 1], [], []>} : vector<8x32xf32>, vector<32x8xf32>, vector<8x8xf32> -> vector<8x8xf32>
    %32 = tpu.transpose %31, [1, 0] : vector<8x8xf32> -> vector<8x8xf32>
    %33 = arith.addf %31, %32 : vector<8x8xf32>
    %c0_27 = arith.constant 0 : index
    %c0_28 = arith.constant 0 : index
    %c0_29 = arith.constant 0 : index
    %34 = vector.load %arg13[%c0_27, %c0_28, %c0_29] : memref<3x8x8xf32, #tpu.memory_space<vmem>>, vector<1x8x8xf32>
    %35 = vector.shape_cast %34 : vector<1x8x8xf32> to vector<8x8xf32>
    %36 = arith.addf %33, %35 : vector<8x8xf32>
    %cst_30 = arith.constant dense<0.000000e+00> : vector<8xf32>
    %37 = vector.multi_reduction <add>, %36, %cst_30 [1] : vector<8x8xf32> to vector<8xf32>
    %38 = vector.shape_cast %37 : vector<8xf32> to vector<8x1xf32>
    %cst_31 = arith.constant dense<0.000000e+00> : vector<8xf32>
    %39 = vector.multi_reduction <add>, %36, %cst_31 [0] : vector<8x8xf32> to vector<8xf32>
    %40 = vector.shape_cast %39 : vector<8xf32> to vector<1x8xf32>
    %cst_32 = arith.constant 0.000000e+00 : f32
    %41 = vector.broadcast %cst_32 : f32 to vector<8x1xf32>
    %42 = arith.cmpf ogt, %38, %41 : vector<8x1xf32>
    %43 = math.rsqrt %38 : vector<8x1xf32>
    %cst_33 = arith.constant 0.000000e+00 : f32
    %44 = vector.broadcast %cst_33 : f32 to vector<8x1xf32>
    %45 = arith.select %42, %43, %44 : vector<8x1xi1>, vector<8x1xf32>
    %cst_34 = arith.constant 0.000000e+00 : f32
    %46 = vector.broadcast %cst_34 : f32 to vector<1x8xf32>
    %47 = arith.cmpf ogt, %40, %46 : vector<1x8xf32>
    %48 = math.rsqrt %40 : vector<1x8xf32>
    %cst_35 = arith.constant 0.000000e+00 : f32
    %49 = vector.broadcast %cst_35 : f32 to vector<1x8xf32>
    %50 = arith.select %47, %48, %49 : vector<1x8xi1>, vector<1x8xf32>
    %51 = vector.broadcast %45 : vector<8x1xf32> to vector<8x8xf32>
    %52 = arith.mulf %51, %36 : vector<8x8xf32>
    %53 = vector.broadcast %50 : vector<1x8xf32> to vector<8x8xf32>
    %54 = arith.mulf %52, %53 : vector<8x8xf32>
    %c0_36 = arith.constant 0 : index
    %c0_37 = arith.constant 0 : index
    %c0_38 = arith.constant 0 : index
    %55 = vector.load %arg7[%c0_36, %c0_37, %c0_38] : memref<3x8x8xf32, #tpu.memory_space<vmem>>, vector<1x8x8xf32>
    %56 = vector.shape_cast %55 : vector<1x8x8xf32> to vector<8x8xf32>
    %cst_39 = arith.constant dense<0.000000e+00> : vector<8x16xf32>
    %57 = tpu.matmul %56, %12, %cst_39 {dimension_numbers = #tpu.dot_dimension_numbers<[1], [0], [0], [1], [0, 0, 1, 1], [], []>} : vector<8x8xf32>, vector<8x16xf32>, vector<8x16xf32> -> vector<8x16xf32>
    %c0_40 = arith.constant 0 : index
    %c0_41 = arith.constant 0 : index
    %c0_42 = arith.constant 0 : index
    %58 = vector.load %arg8[%c0_40, %c0_41, %c0_42] : memref<3x8x16xf32, #tpu.memory_space<vmem>>, vector<1x8x16xf32>
    %59 = vector.shape_cast %58 : vector<1x8x16xf32> to vector<8x16xf32>
    %cst_43 = arith.constant dense<0.000000e+00> : vector<8x8xf32>
    %60 = tpu.matmul %59, %13, %cst_43 {dimension_numbers = #tpu.dot_dimension_numbers<[1], [0], [0], [1], [0, 0, 1, 1], [], []>} : vector<8x16xf32>, vector<16x8xf32>, vector<8x8xf32> -> vector<8x8xf32>
    %c0_44 = arith.constant 0 : index
    %c0_45 = arith.constant 0 : index
    %c0_46 = arith.constant 0 : index
    %61 = vector.load %arg4[%c0_44, %c0_45, %c0_46] : memref<3x16x16xf32, #tpu.memory_space<vmem>>, vector<1x16x16xf32>
    %62 = vector.shape_cast %61 : vector<1x16x16xf32> to vector<16x16xf32>
    %cst_47 = arith.constant dense<0.000000e+00> : vector<8x16xf32>
    %63 = tpu.matmul %57, %62, %cst_47 {dimension_numbers = #tpu.dot_dimension_numbers<[1], [0], [0], [1], [0, 0, 1, 1], [], []>} : vector<8x16xf32>, vector<16x16xf32>, vector<8x16xf32> -> vector<8x16xf32>
    %c0_48 = arith.constant 0 : index
    %c0_49 = arith.constant 0 : index
    %c0_50 = arith.constant 0 : index
    %64 = vector.load %arg5[%c0_48, %c0_49, %c0_50] : memref<3x8x16xf32, #tpu.memory_space<vmem>>, vector<1x8x16xf32>
    %65 = vector.shape_cast %64 : vector<1x8x16xf32> to vector<8x16xf32>
    %cst_51 = arith.constant dense<0.000000e+00> : vector<8x16xf32>
    %66 = tpu.matmul %60, %65, %cst_51 {dimension_numbers = #tpu.dot_dimension_numbers<[1], [0], [0], [1], [0, 0, 1, 1], [], []>} : vector<8x8xf32>, vector<8x16xf32>, vector<8x16xf32> -> vector<8x16xf32>
    %67 = arith.addf %63, %66 : vector<8x16xf32>
    %cst_52 = arith.constant dense<0.000000e+00> : vector<8x16xf32>
    %68 = tpu.matmul %54, %67, %cst_52 {dimension_numbers = #tpu.dot_dimension_numbers<[1], [0], [0], [1], [0, 0, 1, 1], [], []>} : vector<8x8xf32>, vector<8x16xf32>, vector<8x16xf32> -> vector<8x16xf32>
    %69 = vector.extract_strided_slice %0 {offsets = [1, 0], sizes = [1, 16], strides = [1, 1]} : vector<4x48xf32> to vector<1x16xf32>
    %70 = vector.broadcast %69 : vector<1x16xf32> to vector<8x16xf32>
    %71 = arith.addf %68, %70 : vector<8x16xf32>
    %cst_53 = arith.constant 0.000000e+00 : f32
    %72 = vector.broadcast %cst_53 : f32 to vector<8x16xf32>
    %73 = arith.cmpf oge, %71, %72 : vector<8x16xf32>
    %cst_54 = arith.constant 0.00999999977 : f32
    %74 = vector.broadcast %cst_54 : f32 to vector<8x16xf32>
    %75 = arith.mulf %74, %71 : vector<8x16xf32>
    %76 = arith.select %73, %71, %75 : vector<8x16xi1>, vector<8x16xf32>
    %cst_55 = arith.constant dense<0.000000e+00> : vector<8x8xf32>
    %77 = tpu.matmul %76, %76, %cst_55 {dimension_numbers = #tpu.dot_dimension_numbers<[1], [1], [0], [0], [0, 0, 1, 0], [], []>} : vector<8x16xf32>, vector<8x16xf32>, vector<8x8xf32> -> vector<8x8xf32>
    %cst_56 = arith.constant 5.000000e-01 : f32
    %78 = vector.broadcast %cst_56 : f32 to vector<8x8xf32>
    %79 = arith.mulf %78, %77 : vector<8x8xf32>
    %80 = math.tanh %79 : vector<8x8xf32>
    %cst_57 = arith.constant 1.000000e+00 : f32
    %81 = vector.broadcast %cst_57 : f32 to vector<8x8xf32>
    %82 = arith.addf %80, %81 : vector<8x8xf32>
    %cst_58 = arith.constant 5.000000e-01 : f32
    %83 = vector.broadcast %cst_58 : f32 to vector<8x8xf32>
    %84 = arith.mulf %83, %82 : vector<8x8xf32>
    %c0_59 = arith.constant 0 : index
    %c0_60 = arith.constant 0 : index
    %c0_61 = arith.constant 0 : index
    %85 = vector.load %arg10[%c0_59, %c0_60, %c0_61] : memref<6x32x8xf32, #tpu.memory_space<vmem>>, vector<1x32x8xf32>
    %86 = vector.shape_cast %85 : vector<1x32x8xf32> to vector<32x8xf32>
    %cst_62 = arith.constant dense<0.000000e+00> : vector<32x8xf32>
    %87 = tpu.matmul %86, %84, %cst_62 {dimension_numbers = #tpu.dot_dimension_numbers<[1], [0], [0], [1], [0, 0, 1, 1], [], []>} : vector<32x8xf32>, vector<8x8xf32>, vector<32x8xf32> -> vector<32x8xf32>
    %88 = arith.mulf %87, %26 : vector<32x8xf32>
    %cst_63 = arith.constant dense<0.000000e+00> : vector<32xf32>
    %89 = vector.multi_reduction <add>, %88, %cst_63 [1] : vector<32x8xf32> to vector<32xf32>
    %90 = vector.shape_cast %89 : vector<32xf32> to vector<32x1xf32>
    %91 = vector.extract_strided_slice %0 {offsets = [2, 0], sizes = [1, 16], strides = [1, 1]} : vector<4x48xf32> to vector<1x16xf32>
    %92 = vector.broadcast %90 : vector<32x1xf32> to vector<32x16xf32>
    %93 = vector.broadcast %91 : vector<1x16xf32> to vector<32x16xf32>
    %94 = arith.mulf %92, %93 : vector<32x16xf32>
    %95 = vector.extract_strided_slice %0 {offsets = [3, 0], sizes = [1, 16], strides = [1, 1]} : vector<4x48xf32> to vector<1x16xf32>
    %96 = vector.broadcast %95 : vector<1x16xf32> to vector<32x16xf32>
    %97 = arith.addf %94, %96 : vector<32x16xf32>
    %98 = arith.mulf %97, %17 : vector<32x16xf32>
    %99 = arith.addf %98, %17 : vector<32x16xf32>
    %c0_64 = arith.constant 0 : index
    %c0_65 = arith.constant 0 : index
    %c0_66 = arith.constant 0 : index
    %100 = vector.load %arg12[%c0_64, %c0_65, %c0_66] : memref<3x28x32xf32, #tpu.memory_space<vmem>>, vector<1x28x32xf32>
    %101 = vector.shape_cast %100 : vector<1x28x32xf32> to vector<28x32xf32>
    %cst_67 = arith.constant dense<0.000000e+00> : vector<28x16xf32>
    %102 = tpu.matmul %101, %99, %cst_67 {dimension_numbers = #tpu.dot_dimension_numbers<[1], [0], [0], [1], [0, 0, 1, 1], [], []>} : vector<28x32xf32>, vector<32x16xf32>, vector<28x16xf32> -> vector<28x16xf32>
    %c0_68 = arith.constant 0 : index
    %c0_69 = arith.constant 0 : index
    %103 = vector.load %arg14[%c0_68, %c0_69] : memref<28x48xf32, #tpu.memory_space<vmem>>, vector<28x16xf32>
    tpu.vector_store %arg14[%c0_68, %c0_69], %102 {strides = array<i32>} : memref<28x48xf32, #tpu.memory_space<vmem>>, vector<28x16xf32>,
    %104 = vector.extract_strided_slice %11 {offsets = [0, 16], sizes = [28, 16], strides = [1, 1]} : vector<28x48xf32> to vector<28x16xf32>
    %c2 = arith.constant 2 : index
    %c0_70 = arith.constant 0 : index
    %c0_71 = arith.constant 0 : index
    %105 = vector.load %arg11[%c2, %c0_70, %c0_71] : memref<6x32x28xf32, #tpu.memory_space<vmem>>, vector<1x32x28xf32>
    %106 = vector.shape_cast %105 : vector<1x32x28xf32> to vector<32x28xf32>
    %cst_72 = arith.constant dense<0.000000e+00> : vector<32x16xf32>
    %107 = tpu.matmul %106, %104, %cst_72 {dimension_numbers = #tpu.dot_dimension_numbers<[1], [0], [0], [1], [0, 0, 1, 1], [], []>} : vector<32x28xf32>, vector<28x16xf32>, vector<32x16xf32> -> vector<32x16xf32>
    %c3 = arith.constant 3 : index
    %c0_73 = arith.constant 0 : index
    %c0_74 = arith.constant 0 : index
    %108 = vector.load %arg11[%c3, %c0_73, %c0_74] : memref<6x32x28xf32, #tpu.memory_space<vmem>>, vector<1x32x28xf32>
    %109 = vector.shape_cast %108 : vector<1x32x28xf32> to vector<32x28xf32>
    %cst_75 = arith.constant dense<0.000000e+00> : vector<32x16xf32>
    %110 = tpu.matmul %109, %104, %cst_75 {dimension_numbers = #tpu.dot_dimension_numbers<[1], [0], [0], [1], [0, 0, 1, 1], [], []>} : vector<32x28xf32>, vector<28x16xf32>, vector<32x16xf32> -> vector<32x16xf32>
    %cst_76 = arith.constant dense<0.000000e+00> : vector<32xf32>
    %111 = vector.multi_reduction <add>, %110, %cst_76 [1] : vector<32x16xf32> to vector<32xf32>
    %112 = vector.shape_cast %111 : vector<32xf32> to vector<32x1xf32>
    %cst_77 = arith.constant 1.600000e+01 : f32
    %113 = vector.broadcast %cst_77 : f32 to vector<32x1xf32>
    %114 = arith.divf %112, %113 : vector<32x1xf32>
    %c3_78 = arith.constant 3 : index
    %c0_79 = arith.constant 0 : index
    %c0_80 = arith.constant 0 : index
    %115 = vector.load %arg10[%c3_78, %c0_79, %c0_80] : memref<6x32x8xf32, #tpu.memory_space<vmem>>, vector<1x32x8xf32>
    %116 = vector.shape_cast %115 : vector<1x32x8xf32> to vector<32x8xf32>
    %c1_81 = arith.constant 1 : index
    %c0_82 = arith.constant 0 : index
    %c0_83 = arith.constant 0 : index
    %117 = vector.load %arg9[%c1_81, %c0_82, %c0_83] : memref<3x8x32xf32, #tpu.memory_space<vmem>>, vector<1x8x32xf32>
    %118 = vector.shape_cast %117 : vector<1x8x32xf32> to vector<8x32xf32>
    %119 = vector.broadcast %114 : vector<32x1xf32> to vector<32x8xf32>
    %120 = arith.mulf %116, %119 : vector<32x8xf32>
    %cst_84 = arith.constant dense<0.000000e+00> : vector<8x8xf32>
    %121 = tpu.matmul %118, %120, %cst_84 {dimension_numbers = #tpu.dot_dimension_numbers<[1], [0], [0], [1], [0, 0, 1, 1], [], []>} : vector<8x32xf32>, vector<32x8xf32>, vector<8x8xf32> -> vector<8x8xf32>
    %122 = tpu.transpose %121, [1, 0] : vector<8x8xf32> -> vector<8x8xf32>
    %123 = arith.addf %121, %122 : vector<8x8xf32>
    %c1_85 = arith.constant 1 : index
    %c0_86 = arith.constant 0 : index
    %c0_87 = arith.constant 0 : index
    %124 = vector.load %arg13[%c1_85, %c0_86, %c0_87] : memref<3x8x8xf32, #tpu.memory_space<vmem>>, vector<1x8x8xf32>
    %125 = vector.shape_cast %124 : vector<1x8x8xf32> to vector<8x8xf32>
    %126 = arith.addf %123, %125 : vector<8x8xf32>
    %cst_88 = arith.constant dense<0.000000e+00> : vector<8xf32>
    %127 = vector.multi_reduction <add>, %126, %cst_88 [1] : vector<8x8xf32> to vector<8xf32>
    %128 = vector.shape_cast %127 : vector<8xf32> to vector<8x1xf32>
    %cst_89 = arith.constant dense<0.000000e+00> : vector<8xf32>
    %129 = vector.multi_reduction <add>, %126, %cst_89 [0] : vector<8x8xf32> to vector<8xf32>
    %130 = vector.shape_cast %129 : vector<8xf32> to vector<1x8xf32>
    %cst_90 = arith.constant 0.000000e+00 : f32
    %131 = vector.broadcast %cst_90 : f32 to vector<8x1xf32>
    %132 = arith.cmpf ogt, %128, %131 : vector<8x1xf32>
    %133 = math.rsqrt %128 : vector<8x1xf32>
    %cst_91 = arith.constant 0.000000e+00 : f32
    %134 = vector.broadcast %cst_91 : f32 to vector<8x1xf32>
    %135 = arith.select %132, %133, %134 : vector<8x1xi1>, vector<8x1xf32>
    %cst_92 = arith.constant 0.000000e+00 : f32
    %136 = vector.broadcast %cst_92 : f32 to vector<1x8xf32>
    %137 = arith.cmpf ogt, %130, %136 : vector<1x8xf32>
    %138 = math.rsqrt %130 : vector<1x8xf32>
    %cst_93 = arith.constant 0.000000e+00 : f32
    %139 = vector.broadcast %cst_93 : f32 to vector<1x8xf32>
    %140 = arith.select %137, %138, %139 : vector<1x8xi1>, vector<1x8xf32>
    %141 = vector.broadcast %135 : vector<8x1xf32> to vector<8x8xf32>
    %142 = arith.mulf %141, %126 : vector<8x8xf32>
    %143 = vector.broadcast %140 : vector<1x8xf32> to vector<8x8xf32>
    %144 = arith.mulf %142, %143 : vector<8x8xf32>
    %c1_94 = arith.constant 1 : index
    %c0_95 = arith.constant 0 : index
    %c0_96 = arith.constant 0 : index
    %145 = vector.load %arg7[%c1_94, %c0_95, %c0_96] : memref<3x8x8xf32, #tpu.memory_space<vmem>>, vector<1x8x8xf32>
    %146 = vector.shape_cast %145 : vector<1x8x8xf32> to vector<8x8xf32>
    %cst_97 = arith.constant dense<0.000000e+00> : vector<8x16xf32>
    %147 = tpu.matmul %146, %12, %cst_97 {dimension_numbers = #tpu.dot_dimension_numbers<[1], [0], [0], [1], [0, 0, 1, 1], [], []>} : vector<8x8xf32>, vector<8x16xf32>, vector<8x16xf32> -> vector<8x16xf32>
    %c1_98 = arith.constant 1 : index
    %c0_99 = arith.constant 0 : index
    %c0_100 = arith.constant 0 : index
    %148 = vector.load %arg8[%c1_98, %c0_99, %c0_100] : memref<3x8x16xf32, #tpu.memory_space<vmem>>, vector<1x8x16xf32>
    %149 = vector.shape_cast %148 : vector<1x8x16xf32> to vector<8x16xf32>
    %cst_101 = arith.constant dense<0.000000e+00> : vector<8x8xf32>
    %150 = tpu.matmul %149, %13, %cst_101 {dimension_numbers = #tpu.dot_dimension_numbers<[1], [0], [0], [1], [0, 0, 1, 1], [], []>} : vector<8x16xf32>, vector<16x8xf32>, vector<8x8xf32> -> vector<8x8xf32>
    %c1_102 = arith.constant 1 : index
    %c0_103 = arith.constant 0 : index
    %c0_104 = arith.constant 0 : index
    %151 = vector.load %arg4[%c1_102, %c0_103, %c0_104] : memref<3x16x16xf32, #tpu.memory_space<vmem>>, vector<1x16x16xf32>
    %152 = vector.shape_cast %151 : vector<1x16x16xf32> to vector<16x16xf32>
    %cst_105 = arith.constant dense<0.000000e+00> : vector<8x16xf32>
    %153 = tpu.matmul %147, %152, %cst_105 {dimension_numbers = #tpu.dot_dimension_numbers<[1], [0], [0], [1], [0, 0, 1, 1], [], []>} : vector<8x16xf32>, vector<16x16xf32>, vector<8x16xf32> -> vector<8x16xf32>
    %c1_106 = arith.constant 1 : index
    %c0_107 = arith.constant 0 : index
    %c0_108 = arith.constant 0 : index
    %154 = vector.load %arg5[%c1_106, %c0_107, %c0_108] : memref<3x8x16xf32, #tpu.memory_space<vmem>>, vector<1x8x16xf32>
    %155 = vector.shape_cast %154 : vector<1x8x16xf32> to vector<8x16xf32>
    %cst_109 = arith.constant dense<0.000000e+00> : vector<8x16xf32>
    %156 = tpu.matmul %150, %155, %cst_109 {dimension_numbers = #tpu.dot_dimension_numbers<[1], [0], [0], [1], [0, 0, 1, 1], [], []>} : vector<8x8xf32>, vector<8x16xf32>, vector<8x16xf32> -> vector<8x16xf32>
    %157 = arith.addf %153, %156 : vector<8x16xf32>
    %cst_110 = arith.constant dense<0.000000e+00> : vector<8x16xf32>
    %158 = tpu.matmul %144, %157, %cst_110 {dimension_numbers = #tpu.dot_dimension_numbers<[1], [0], [0], [1], [0, 0, 1, 1], [], []>} : vector<8x8xf32>, vector<8x16xf32>, vector<8x16xf32> -> vector<8x16xf32>
    %159 = vector.extract_strided_slice %0 {offsets = [1, 16], sizes = [1, 16], strides = [1, 1]} : vector<4x48xf32> to vector<1x16xf32>
    %160 = vector.broadcast %159 : vector<1x16xf32> to vector<8x16xf32>
    %161 = arith.addf %158, %160 : vector<8x16xf32>
    %cst_111 = arith.constant 0.000000e+00 : f32
    %162 = vector.broadcast %cst_111 : f32 to vector<8x16xf32>
    %163 = arith.cmpf oge, %161, %162 : vector<8x16xf32>
    %cst_112 = arith.constant 0.00999999977 : f32
    %164 = vector.broadcast %cst_112 : f32 to vector<8x16xf32>
    %165 = arith.mulf %164, %161 : vector<8x16xf32>
    %166 = arith.select %163, %161, %165 : vector<8x16xi1>, vector<8x16xf32>
    %cst_113 = arith.constant dense<0.000000e+00> : vector<8x8xf32>
    %167 = tpu.matmul %166, %166, %cst_113 {dimension_numbers = #tpu.dot_dimension_numbers<[1], [1], [0], [0], [0, 0, 1, 0], [], []>} : vector<8x16xf32>, vector<8x16xf32>, vector<8x8xf32> -> vector<8x8xf32>
    %cst_114 = arith.constant 5.000000e-01 : f32
    %168 = vector.broadcast %cst_114 : f32 to vector<8x8xf32>
    %169 = arith.mulf %168, %167 : vector<8x8xf32>
    %170 = math.tanh %169 : vector<8x8xf32>
    %cst_115 = arith.constant 1.000000e+00 : f32
    %171 = vector.broadcast %cst_115 : f32 to vector<8x8xf32>
    %172 = arith.addf %170, %171 : vector<8x8xf32>
    %cst_116 = arith.constant 5.000000e-01 : f32
    %173 = vector.broadcast %cst_116 : f32 to vector<8x8xf32>
    %174 = arith.mulf %173, %172 : vector<8x8xf32>
    %c2_117 = arith.constant 2 : index
    %c0_118 = arith.constant 0 : index
    %c0_119 = arith.constant 0 : index
    %175 = vector.load %arg10[%c2_117, %c0_118, %c0_119] : memref<6x32x8xf32, #tpu.memory_space<vmem>>, vector<1x32x8xf32>
    %176 = vector.shape_cast %175 : vector<1x32x8xf32> to vector<32x8xf32>
    %cst_120 = arith.constant dense<0.000000e+00> : vector<32x8xf32>
    %177 = tpu.matmul %176, %174, %cst_120 {dimension_numbers = #tpu.dot_dimension_numbers<[1], [0], [0], [1], [0, 0, 1, 1], [], []>} : vector<32x8xf32>, vector<8x8xf32>, vector<32x8xf32> -> vector<32x8xf32>
    %178 = arith.mulf %177, %116 : vector<32x8xf32>
    %cst_121 = arith.constant dense<0.000000e+00> : vector<32xf32>
    %179 = vector.multi_reduction <add>, %178, %cst_121 [1] : vector<32x8xf32> to vector<32xf32>
    %180 = vector.shape_cast %179 : vector<32xf32> to vector<32x1xf32>
    %181 = vector.extract_strided_slice %0 {offsets = [2, 16], sizes = [1, 16], strides = [1, 1]} : vector<4x48xf32> to vector<1x16xf32>
    %182 = vector.broadcast %180 : vector<32x1xf32> to vector<32x16xf32>
    %183 = vector.broadcast %181 : vector<1x16xf32> to vector<32x16xf32>
    %184 = arith.mulf %182, %183 : vector<32x16xf32>
    %185 = vector.extract_strided_slice %0 {offsets = [3, 16], sizes = [1, 16], strides = [1, 1]} : vector<4x48xf32> to vector<1x16xf32>
    %186 = vector.broadcast %185 : vector<1x16xf32> to vector<32x16xf32>
    %187 = arith.addf %184, %186 : vector<32x16xf32>
    %188 = arith.mulf %187, %107 : vector<32x16xf32>
    %189 = arith.addf %188, %107 : vector<32x16xf32>
    %c1_122 = arith.constant 1 : index
    %c0_123 = arith.constant 0 : index
    %c0_124 = arith.constant 0 : index
    %190 = vector.load %arg12[%c1_122, %c0_123, %c0_124] : memref<3x28x32xf32, #tpu.memory_space<vmem>>, vector<1x28x32xf32>
    %191 = vector.shape_cast %190 : vector<1x28x32xf32> to vector<28x32xf32>
    %cst_125 = arith.constant dense<0.000000e+00> : vector<28x16xf32>
    %192 = tpu.matmul %191, %189, %cst_125 {dimension_numbers = #tpu.dot_dimension_numbers<[1], [0], [0], [1], [0, 0, 1, 1], [], []>} : vector<28x32xf32>, vector<32x16xf32>, vector<28x16xf32> -> vector<28x16xf32>
    %c0_126 = arith.constant 0 : index
    %c16 = arith.constant 16 : index
    %193 = vector.load %arg14[%c0_126, %c16] : memref<28x48xf32, #tpu.memory_space<vmem>>, vector<28x16xf32>
    tpu.vector_store %arg14[%c0_126, %c16], %192 {strides = array<i32>} : memref<28x48xf32, #tpu.memory_space<vmem>>, vector<28x16xf32>,
    %194 = vector.extract_strided_slice %11 {offsets = [0, 32], sizes = [28, 16], strides = [1, 1]} : vector<28x48xf32> to vector<28x16xf32>
    %c4 = arith.constant 4 : index
    %c0_127 = arith.constant 0 : index
    %c0_128 = arith.constant 0 : index
    %195 = vector.load %arg11[%c4, %c0_127, %c0_128] : memref<6x32x28xf32, #tpu.memory_space<vmem>>, vector<1x32x28xf32>
    %196 = vector.shape_cast %195 : vector<1x32x28xf32> to vector<32x28xf32>
    %cst_129 = arith.constant dense<0.000000e+00> : vector<32x16xf32>
    %197 = tpu.matmul %196, %194, %cst_129 {dimension_numbers = #tpu.dot_dimension_numbers<[1], [0], [0], [1], [0, 0, 1, 1], [], []>} : vector<32x28xf32>, vector<28x16xf32>, vector<32x16xf32> -> vector<32x16xf32>
    %c5 = arith.constant 5 : index
    %c0_130 = arith.constant 0 : index
    %c0_131 = arith.constant 0 : index
    %198 = vector.load %arg11[%c5, %c0_130, %c0_131] : memref<6x32x28xf32, #tpu.memory_space<vmem>>, vector<1x32x28xf32>
    %199 = vector.shape_cast %198 : vector<1x32x28xf32> to vector<32x28xf32>
    %cst_132 = arith.constant dense<0.000000e+00> : vector<32x16xf32>
    %200 = tpu.matmul %199, %194, %cst_132 {dimension_numbers = #tpu.dot_dimension_numbers<[1], [0], [0], [1], [0, 0, 1, 1], [], []>} : vector<32x28xf32>, vector<28x16xf32>, vector<32x16xf32> -> vector<32x16xf32>
    %cst_133 = arith.constant dense<0.000000e+00> : vector<32xf32>
    %201 = vector.multi_reduction <add>, %200, %cst_133 [1] : vector<32x16xf32> to vector<32xf32>
    %202 = vector.shape_cast %201 : vector<32xf32> to vector<32x1xf32>
    %cst_134 = arith.constant 1.600000e+01 : f32
    %203 = vector.broadcast %cst_134 : f32 to vector<32x1xf32>
    %204 = arith.divf %202, %203 : vector<32x1xf32>
    %c5_135 = arith.constant 5 : index
    %c0_136 = arith.constant 0 : index
    %c0_137 = arith.constant 0 : index
    %205 = vector.load %arg10[%c5_135, %c0_136, %c0_137] : memref<6x32x8xf32, #tpu.memory_space<vmem>>, vector<1x32x8xf32>
    %206 = vector.shape_cast %205 : vector<1x32x8xf32> to vector<32x8xf32>
    %c2_138 = arith.constant 2 : index
    %c0_139 = arith.constant 0 : index
    %c0_140 = arith.constant 0 : index
    %207 = vector.load %arg9[%c2_138, %c0_139, %c0_140] : memref<3x8x32xf32, #tpu.memory_space<vmem>>, vector<1x8x32xf32>
    %208 = vector.shape_cast %207 : vector<1x8x32xf32> to vector<8x32xf32>
    %209 = vector.broadcast %204 : vector<32x1xf32> to vector<32x8xf32>
    %210 = arith.mulf %206, %209 : vector<32x8xf32>
    %cst_141 = arith.constant dense<0.000000e+00> : vector<8x8xf32>
    %211 = tpu.matmul %208, %210, %cst_141 {dimension_numbers = #tpu.dot_dimension_numbers<[1], [0], [0], [1], [0, 0, 1, 1], [], []>} : vector<8x32xf32>, vector<32x8xf32>, vector<8x8xf32> -> vector<8x8xf32>
    %212 = tpu.transpose %211, [1, 0] : vector<8x8xf32> -> vector<8x8xf32>
    %213 = arith.addf %211, %212 : vector<8x8xf32>
    %c2_142 = arith.constant 2 : index
    %c0_143 = arith.constant 0 : index
    %c0_144 = arith.constant 0 : index
    %214 = vector.load %arg13[%c2_142, %c0_143, %c0_144] : memref<3x8x8xf32, #tpu.memory_space<vmem>>, vector<1x8x8xf32>
    %215 = vector.shape_cast %214 : vector<1x8x8xf32> to vector<8x8xf32>
    %216 = arith.addf %213, %215 : vector<8x8xf32>
    %cst_145 = arith.constant dense<0.000000e+00> : vector<8xf32>
    %217 = vector.multi_reduction <add>, %216, %cst_145 [1] : vector<8x8xf32> to vector<8xf32>
    %218 = vector.shape_cast %217 : vector<8xf32> to vector<8x1xf32>
    %cst_146 = arith.constant dense<0.000000e+00> : vector<8xf32>
    %219 = vector.multi_reduction <add>, %216, %cst_146 [0] : vector<8x8xf32> to vector<8xf32>
    %220 = vector.shape_cast %219 : vector<8xf32> to vector<1x8xf32>
    %cst_147 = arith.constant 0.000000e+00 : f32
    %221 = vector.broadcast %cst_147 : f32 to vector<8x1xf32>
    %222 = arith.cmpf ogt, %218, %221 : vector<8x1xf32>
    %223 = math.rsqrt %218 : vector<8x1xf32>
    %cst_148 = arith.constant 0.000000e+00 : f32
    %224 = vector.broadcast %cst_148 : f32 to vector<8x1xf32>
    %225 = arith.select %222, %223, %224 : vector<8x1xi1>, vector<8x1xf32>
    %cst_149 = arith.constant 0.000000e+00 : f32
    %226 = vector.broadcast %cst_149 : f32 to vector<1x8xf32>
    %227 = arith.cmpf ogt, %220, %226 : vector<1x8xf32>
    %228 = math.rsqrt %220 : vector<1x8xf32>
    %cst_150 = arith.constant 0.000000e+00 : f32
    %229 = vector.broadcast %cst_150 : f32 to vector<1x8xf32>
    %230 = arith.select %227, %228, %229 : vector<1x8xi1>, vector<1x8xf32>
    %231 = vector.broadcast %225 : vector<8x1xf32> to vector<8x8xf32>
    %232 = arith.mulf %231, %216 : vector<8x8xf32>
    %233 = vector.broadcast %230 : vector<1x8xf32> to vector<8x8xf32>
    %234 = arith.mulf %232, %233 : vector<8x8xf32>
    %c2_151 = arith.constant 2 : index
    %c0_152 = arith.constant 0 : index
    %c0_153 = arith.constant 0 : index
    %235 = vector.load %arg7[%c2_151, %c0_152, %c0_153] : memref<3x8x8xf32, #tpu.memory_space<vmem>>, vector<1x8x8xf32>
    %236 = vector.shape_cast %235 : vector<1x8x8xf32> to vector<8x8xf32>
    %cst_154 = arith.constant dense<0.000000e+00> : vector<8x16xf32>
    %237 = tpu.matmul %236, %12, %cst_154 {dimension_numbers = #tpu.dot_dimension_numbers<[1], [0], [0], [1], [0, 0, 1, 1], [], []>} : vector<8x8xf32>, vector<8x16xf32>, vector<8x16xf32> -> vector<8x16xf32>
    %c2_155 = arith.constant 2 : index
    %c0_156 = arith.constant 0 : index
    %c0_157 = arith.constant 0 : index
    %238 = vector.load %arg8[%c2_155, %c0_156, %c0_157] : memref<3x8x16xf32, #tpu.memory_space<vmem>>, vector<1x8x16xf32>
    %239 = vector.shape_cast %238 : vector<1x8x16xf32> to vector<8x16xf32>
    %cst_158 = arith.constant dense<0.000000e+00> : vector<8x8xf32>
    %240 = tpu.matmul %239, %13, %cst_158 {dimension_numbers = #tpu.dot_dimension_numbers<[1], [0], [0], [1], [0, 0, 1, 1], [], []>} : vector<8x16xf32>, vector<16x8xf32>, vector<8x8xf32> -> vector<8x8xf32>
    %c2_159 = arith.constant 2 : index
    %c0_160 = arith.constant 0 : index
    %c0_161 = arith.constant 0 : index
    %241 = vector.load %arg4[%c2_159, %c0_160, %c0_161] : memref<3x16x16xf32, #tpu.memory_space<vmem>>, vector<1x16x16xf32>
    %242 = vector.shape_cast %241 : vector<1x16x16xf32> to vector<16x16xf32>
    %cst_162 = arith.constant dense<0.000000e+00> : vector<8x16xf32>
    %243 = tpu.matmul %237, %242, %cst_162 {dimension_numbers = #tpu.dot_dimension_numbers<[1], [0], [0], [1], [0, 0, 1, 1], [], []>} : vector<8x16xf32>, vector<16x16xf32>, vector<8x16xf32> -> vector<8x16xf32>
    %c2_163 = arith.constant 2 : index
    %c0_164 = arith.constant 0 : index
    %c0_165 = arith.constant 0 : index
    %244 = vector.load %arg5[%c2_163, %c0_164, %c0_165] : memref<3x8x16xf32, #tpu.memory_space<vmem>>, vector<1x8x16xf32>
    %245 = vector.shape_cast %244 : vector<1x8x16xf32> to vector<8x16xf32>
    %cst_166 = arith.constant dense<0.000000e+00> : vector<8x16xf32>
    %246 = tpu.matmul %240, %245, %cst_166 {dimension_numbers = #tpu.dot_dimension_numbers<[1], [0], [0], [1], [0, 0, 1, 1], [], []>} : vector<8x8xf32>, vector<8x16xf32>, vector<8x16xf32> -> vector<8x16xf32>
    %247 = arith.addf %243, %246 : vector<8x16xf32>
    %cst_167 = arith.constant dense<0.000000e+00> : vector<8x16xf32>
    %248 = tpu.matmul %234, %247, %cst_167 {dimension_numbers = #tpu.dot_dimension_numbers<[1], [0], [0], [1], [0, 0, 1, 1], [], []>} : vector<8x8xf32>, vector<8x16xf32>, vector<8x16xf32> -> vector<8x16xf32>
    %249 = vector.extract_strided_slice %0 {offsets = [1, 32], sizes = [1, 16], strides = [1, 1]} : vector<4x48xf32> to vector<1x16xf32>
    %250 = vector.broadcast %249 : vector<1x16xf32> to vector<8x16xf32>
    %251 = arith.addf %248, %250 : vector<8x16xf32>
    %cst_168 = arith.constant 0.000000e+00 : f32
    %252 = vector.broadcast %cst_168 : f32 to vector<8x16xf32>
    %253 = arith.cmpf oge, %251, %252 : vector<8x16xf32>
    %cst_169 = arith.constant 0.00999999977 : f32
    %254 = vector.broadcast %cst_169 : f32 to vector<8x16xf32>
    %255 = arith.mulf %254, %251 : vector<8x16xf32>
    %256 = arith.select %253, %251, %255 : vector<8x16xi1>, vector<8x16xf32>
    %cst_170 = arith.constant dense<0.000000e+00> : vector<8x8xf32>
    %257 = tpu.matmul %256, %256, %cst_170 {dimension_numbers = #tpu.dot_dimension_numbers<[1], [1], [0], [0], [0, 0, 1, 0], [], []>} : vector<8x16xf32>, vector<8x16xf32>, vector<8x8xf32> -> vector<8x8xf32>
    %cst_171 = arith.constant 5.000000e-01 : f32
    %258 = vector.broadcast %cst_171 : f32 to vector<8x8xf32>
    %259 = arith.mulf %258, %257 : vector<8x8xf32>
    %260 = math.tanh %259 : vector<8x8xf32>
    %cst_172 = arith.constant 1.000000e+00 : f32
    %261 = vector.broadcast %cst_172 : f32 to vector<8x8xf32>
    %262 = arith.addf %260, %261 : vector<8x8xf32>
    %cst_173 = arith.constant 5.000000e-01 : f32
    %263 = vector.broadcast %cst_173 : f32 to vector<8x8xf32>
    %264 = arith.mulf %263, %262 : vector<8x8xf32>
    %c4_174 = arith.constant 4 : index
    %c0_175 = arith.constant 0 : index
    %c0_176 = arith.constant 0 : index
    %265 = vector.load %arg10[%c4_174, %c0_175, %c0_176] : memref<6x32x8xf32, #tpu.memory_space<vmem>>, vector<1x32x8xf32>
    %266 = vector.shape_cast %265 : vector<1x32x8xf32> to vector<32x8xf32>
    %cst_177 = arith.constant dense<0.000000e+00> : vector<32x8xf32>
    %267 = tpu.matmul %266, %264, %cst_177 {dimension_numbers = #tpu.dot_dimension_numbers<[1], [0], [0], [1], [0, 0, 1, 1], [], []>} : vector<32x8xf32>, vector<8x8xf32>, vector<32x8xf32> -> vector<32x8xf32>
    %268 = arith.mulf %267, %206 : vector<32x8xf32>
    %cst_178 = arith.constant dense<0.000000e+00> : vector<32xf32>
    %269 = vector.multi_reduction <add>, %268, %cst_178 [1] : vector<32x8xf32> to vector<32xf32>
    %270 = vector.shape_cast %269 : vector<32xf32> to vector<32x1xf32>
    %271 = vector.extract_strided_slice %0 {offsets = [2, 32], sizes = [1, 16], strides = [1, 1]} : vector<4x48xf32> to vector<1x16xf32>
    %272 = vector.broadcast %270 : vector<32x1xf32> to vector<32x16xf32>
    %273 = vector.broadcast %271 : vector<1x16xf32> to vector<32x16xf32>
    %274 = arith.mulf %272, %273 : vector<32x16xf32>
    %275 = vector.extract_strided_slice %0 {offsets = [3, 32], sizes = [1, 16], strides = [1, 1]} : vector<4x48xf32> to vector<1x16xf32>
    %276 = vector.broadcast %275 : vector<1x16xf32> to vector<32x16xf32>
    %277 = arith.addf %274, %276 : vector<32x16xf32>
    %278 = arith.mulf %277, %197 : vector<32x16xf32>
    %279 = arith.addf %278, %197 : vector<32x16xf32>
    %c2_179 = arith.constant 2 : index
    %c0_180 = arith.constant 0 : index
    %c0_181 = arith.constant 0 : index
    %280 = vector.load %arg12[%c2_179, %c0_180, %c0_181] : memref<3x28x32xf32, #tpu.memory_space<vmem>>, vector<1x28x32xf32>
    %281 = vector.shape_cast %280 : vector<1x28x32xf32> to vector<28x32xf32>
    %cst_182 = arith.constant dense<0.000000e+00> : vector<28x16xf32>
    %282 = tpu.matmul %281, %279, %cst_182 {dimension_numbers = #tpu.dot_dimension_numbers<[1], [0], [0], [1], [0, 0, 1, 1], [], []>} : vector<28x32xf32>, vector<32x16xf32>, vector<28x16xf32> -> vector<28x16xf32>
    %c0_183 = arith.constant 0 : index
    %c32 = arith.constant 32 : index
    %283 = vector.load %arg14[%c0_183, %c32] : memref<28x48xf32, #tpu.memory_space<vmem>>, vector<28x16xf32>
    tpu.vector_store %arg14[%c0_183, %c32], %282 {strides = array<i32>} : memref<28x48xf32, #tpu.memory_space<vmem>>, vector<28x16xf32>,
    return
  }
}

</mosaic_0001>

<llo_original>
// kernel: decoder_forward.1
$region0: #{decoder_forward.1}
  #allocation0 [shape = 'u32[]', space=smem, size = 0x4, offset = 0x4, fixed_abs, tag = 'smem constant byte address 0x4 - core index']
  #allocation1 [shape = 'u32[144,128]{1,0:T(1,128)}', space=vmem, size = 0x12000, scoped, tag = 'internal scratch']
  %s0 = inlined_call_operand.vmem [shape: f32[28,16], index: 0, kind: input, shape index: {}]
  %s1 = inlined_call_operand.vmem [shape: f32[8,16], index: 1, kind: input, shape index: {}]
  %s2 = inlined_call_operand.vmem [shape: f32[16,8], index: 2, kind: input, shape index: {}]
  %s3 = inlined_call_operand.hbm [shape: f32[16,48], index: 3, kind: input, shape index: {}]
  %s4 = inlined_call_operand.vmem [shape: f32[3,16,16], index: 4, kind: input, shape index: {}]
  %s5 = inlined_call_operand.hbm [shape: f32[3,8,16], index: 5, kind: input, shape index: {}]
  %s6 = inlined_call_operand.hbm [shape: f32[4,48], index: 6, kind: input, shape index: {}]
  %s7 = inlined_call_operand.hbm [shape: f32[3,8,8], index: 7, kind: input, shape index: {}]
  %s8 = inlined_call_operand.hbm [shape: f32[3,8,16], index: 8, kind: input, shape index: {}]
  %s9 = inlined_call_operand.hbm [shape: f32[3,8,32], index: 9, kind: input, shape index: {}]
  %s10 = inlined_call_operand.vmem [shape: f32[6,32,8], index: 10, kind: input, shape index: {}]
  %s11 = inlined_call_operand.vmem [shape: f32[6,32,28], index: 11, kind: input, shape index: {}]
  %s12 = inlined_call_operand.vmem [shape: f32[3,28,32], index: 12, kind: input, shape index: {}]
  %s13 = inlined_call_operand.hbm [shape: f32[3,8,8], index: 13, kind: input, shape index: {}]
  %s14 = inlined_call_operand.hbm [shape: f32[28,48], index: 14, kind: output, shape index: {}]
  %s15 = sld [smem:[#allocation0]]
  $region94: #{decoder_forward.1} parent=0
    _
  %s17 = ssub.s32 1, %s15
  %s18 = scalar_select 0, %s17, %s15
  $region1: #{decoder_forward.1} parent=0
    #allocation2 [shape = 'u8[8192]{0}', space=vmem, size = 0x2000, scoped, tag = 'input window, operand 3, single buffered']
    #allocation3 [shape = 's32[1]{0}', space=sflag, size = 0x4, scoped, tag = 'scoped memory for decoder_forward.1']
    #allocation4 [shape = 's32[1]{0}', space=sflag, size = 0x4, scoped, tag = 'scoped memory for decoder_forward.1']
    #allocation5 [shape = 'u8[12288]{0}', space=vmem, size = 0x3000, scoped, tag = 'input window, operand 5, single buffered']
    #allocation6 [shape = 's32[1]{0}', space=sflag, size = 0x4, scoped, tag = 'scoped memory for decoder_forward.1']
    #allocation7 [shape = 'u8[2048]{0}', space=vmem, size = 0x800, scoped, tag = 'input window, operand 6, single buffered']
    #allocation8 [shape = 'u8[12288]{0}', space=vmem, size = 0x3000, scoped, tag = 'input window, operand 7, single buffered']
    #allocation9 [shape = 's32[1]{0}', space=sflag, size = 0x4, scoped, tag = 'scoped memory for decoder_forward.1']
    #allocation10 [shape = 'u8[12288]{0}', space=vmem, size = 0x3000, scoped, tag = 'input window, operand 8, single buffered']
    #allocation11 [shape = 'u8[12288]{0}', space=vmem, size = 0x3000, scoped, tag = 'input window, operand 9, single buffered']
    #allocation12 [shape = 's32[1]{0}', space=sflag, size = 0x4, scoped, tag = 'scoped memory for decoder_forward.1']
    #allocation13 [shape = 'u8[12288]{0}', space=vmem, size = 0x3000, scoped, tag = 'input window, operand 13, single buffered']
    #allocation14 [shape = 'u8[16384]{0}', space=vmem, size = 0x4000, scoped, tag = 'output window, operand 0, single buffered']
    %19 = vsyncpa [#allocation3], 0
    %20 = vsyncpa [#allocation6], 0
    %21 = vsyncpa [#allocation9], 0
    %22 = vsyncpa [#allocation12], 0
    %23 = vsyncpa [#allocation4], 0
    // Predicated region
    $region2: #{decoder_forward.1} parent=1 // pred_check
      _
    $region3: #{decoder_forward.1} parent=1 // pred_check_branch
      %25 = sbr.rel (0) target = $region5
    $region4: #{decoder_forward.1} parent=1 // pred_region
      _
    $region5: #{decoder_forward.1} parent=1 // pred_fallthru
      _
    // Predicated region
    $region6: #{decoder_forward.1} parent=1 // pred_check
      _
    $region7: #{decoder_forward.1} parent=1 // pred_check_branch
      %27 = sbr.rel (0) target = $region9
    $region8: #{decoder_forward.1} parent=1 // pred_region
      _
    $region9: #{decoder_forward.1} parent=1 // pred_fallthru
      _
    // Predicated region
    $region10: #{decoder_forward.1} parent=1 // pred_check
      _
    $region11: #{decoder_forward.1} parent=1 // pred_check_branch
      %29 = sbr.rel (0) target = $region13
    $region12: #{decoder_forward.1} parent=1 // pred_region
      _
    $region13: #{decoder_forward.1} parent=1 // pred_fallthru
      _
    // Predicated region
    $region14: #{decoder_forward.1} parent=1 // pred_check
      _
    $region15: #{decoder_forward.1} parent=1 // pred_check_branch
      %31 = sbr.rel (0) target = $region17
    $region16: #{decoder_forward.1} parent=1 // pred_region
      %s33 = ssub.s32 256, 256
      %34 = vsyncadd [#allocation3], %s33
      %s35 = sshll.u32 [#allocation2], 4
      %s36 = int_to_ptr.vmem [resolvable:$true] %s35
      %41 = dma.hbm_to_vmem [thread:$0]  %s3, 256, %s36, [#allocation3], 128, 128, 8
    $region17: #{decoder_forward.1} parent=1 // pred_fallthru
      _
    // Predicated region
    $region18: #{decoder_forward.1} parent=1 // pred_check
      _
    $region19: #{decoder_forward.1} parent=1 // pred_check_branch
      %43 = sbr.rel (0) target = $region21
    $region20: #{decoder_forward.1} parent=1 // pred_region
      _
    $region21: #{decoder_forward.1} parent=1 // pred_fallthru
      _
    // Predicated region
    $region22: #{decoder_forward.1} parent=1 // pred_check
      _
    $region23: #{decoder_forward.1} parent=1 // pred_check_branch
      %45 = sbr.rel (0) target = $region25
    $region24: #{decoder_forward.1} parent=1 // pred_region
      %s47 = ssub.s32 384, 384
      %48 = vsyncadd [#allocation6], %s47
      %s49 = sshll.u32 [#allocation5], 4
      %s50 = int_to_ptr.vmem [resolvable:$true] %s49
      %55 = dma.hbm_to_vmem [thread:$0]  %s5, 384, %s50, [#allocation6], 128, 128, 8
    $region25: #{decoder_forward.1} parent=1 // pred_fallthru
      _
    // Predicated region
    $region26: #{decoder_forward.1} parent=1 // pred_check
      _
    $region27: #{decoder_forward.1} parent=1 // pred_check_branch
      %57 = sbr.rel (0) target = $region29
    $region28: #{decoder_forward.1} parent=1 // pred_region
      %s59 = ssub.s32 64, 64
      %60 = vsyncadd [#allocation6], %s59
      %s62 = sshll.u32 [#allocation7], 4
      %s63 = int_to_ptr.vmem [resolvable:$true] %s62
      %65 = dma.hbm_to_vmem [thread:$0]  %s6, 64, %s63, [#allocation6]
    $region29: #{decoder_forward.1} parent=1 // pred_fallthru
      _
    // Predicated region
    $region30: #{decoder_forward.1} parent=1 // pred_check
      _
    $region31: #{decoder_forward.1} parent=1 // pred_check_branch
      %67 = sbr.rel (0) target = $region33
    $region32: #{decoder_forward.1} parent=1 // pred_region
      %s69 = ssub.s32 384, 384
      %70 = vsyncadd [#allocation9], %s69
      %s71 = sshll.u32 [#allocation8], 4
      %s72 = int_to_ptr.vmem [resolvable:$true] %s71
      %77 = dma.hbm_to_vmem [thread:$0]  %s7, 384, %s72, [#allocation9], 128, 128, 8
    $region33: #{decoder_forward.1} parent=1 // pred_fallthru
      _
    // Predicated region
    $region34: #{decoder_forward.1} parent=1 // pred_check
      _
    $region35: #{decoder_forward.1} parent=1 // pred_check_branch
      %79 = sbr.rel (0) target = $region37
    $region36: #{decoder_forward.1} parent=1 // pred_region
      %s81 = ssub.s32 384, 384
      %82 = vsyncadd [#allocation9], %s81
      %s83 = sshll.u32 [#allocation10], 4
      %s84 = int_to_ptr.vmem [resolvable:$true] %s83
      %89 = dma.hbm_to_vmem [thread:$0]  %s8, 384, %s84, [#allocation9], 128, 128, 8
    $region37: #{decoder_forward.1} parent=1 // pred_fallthru
      _
    // Predicated region
    $region38: #{decoder_forward.1} parent=1 // pred_check
      _
    $region39: #{decoder_forward.1} parent=1 // pred_check_branch
      %91 = sbr.rel (0) target = $region41
    $region40: #{decoder_forward.1} parent=1 // pred_region
      %s93 = ssub.s32 384, 384
      %94 = vsyncadd [#allocation12], %s93
      %s95 = sshll.u32 [#allocation11], 4
      %s96 = int_to_ptr.vmem [resolvable:$true] %s95
      %101 = dma.hbm_to_vmem [thread:$0]  %s9, 384, %s96, [#allocation12], 128, 128, 8
    $region41: #{decoder_forward.1} parent=1 // pred_fallthru
      _
    // Predicated region
    $region42: #{decoder_forward.1} parent=1 // pred_check
      _
    $region43: #{decoder_forward.1} parent=1 // pred_check_branch
      %103 = sbr.rel (0) target = $region45
    $region44: #{decoder_forward.1} parent=1 // pred_region
      _
    $region45: #{decoder_forward.1} parent=1 // pred_fallthru
      _
    // Predicated region
    $region46: #{decoder_forward.1} parent=1 // pred_check
      _
    $region47: #{decoder_forward.1} parent=1 // pred_check_branch
      %105 = sbr.rel (0) target = $region49
    $region48: #{decoder_forward.1} parent=1 // pred_region
      _
    $region49: #{decoder_forward.1} parent=1 // pred_fallthru
      _
    // Predicated region
    $region50: #{decoder_forward.1} parent=1 // pred_check
      _
    $region51: #{decoder_forward.1} parent=1 // pred_check_branch
      %107 = sbr.rel (0) target = $region53
    $region52: #{decoder_forward.1} parent=1 // pred_region
      _
    $region53: #{decoder_forward.1} parent=1 // pred_fallthru
      _
    // Predicated region
    $region54: #{decoder_forward.1} parent=1 // pred_check
      _
    $region55: #{decoder_forward.1} parent=1 // pred_check_branch
      %109 = sbr.rel (0) target = $region57
    $region56: #{decoder_forward.1} parent=1 // pred_region
      %s111 = ssub.s32 384, 384
      %112 = vsyncadd [#allocation12], %s111
      %s113 = sshll.u32 [#allocation13], 4
      %s114 = int_to_ptr.vmem [resolvable:$true] %s113
      %119 = dma.hbm_to_vmem [thread:$0]  %s13, 384, %s114, [#allocation12], 128, 128, 8
    $region57: #{decoder_forward.1} parent=1 // pred_fallthru
      _
    // Predicated region
    $region58: #{decoder_forward.1} parent=1 // pred_check
      _
    $region59: #{decoder_forward.1} parent=1 // pred_check_branch
      %121 = sbr.rel (0) target = $region61
    $region60: #{decoder_forward.1} parent=1 // pred_region
      %122 = dma.done [#allocation3], 256
    $region61: #{decoder_forward.1} parent=1 // pred_fallthru
      _
    // Predicated region
    $region62: #{decoder_forward.1} parent=1 // pred_check
      _
    $region63: #{decoder_forward.1} parent=1 // pred_check_branch
      %124 = sbr.rel (0) target = $region65
    $region64: #{decoder_forward.1} parent=1 // pred_region
      %125 = dma.done [#allocation6], 384
    $region65: #{decoder_forward.1} parent=1 // pred_fallthru
      _
    // Predicated region
    $region66: #{decoder_forward.1} parent=1 // pred_check
      _
    $region67: #{decoder_forward.1} parent=1 // pred_check_branch
      %127 = sbr.rel (0) target = $region69
    $region68: #{decoder_forward.1} parent=1 // pred_region
      %128 = dma.done [#allocation6], 64
    $region69: #{decoder_forward.1} parent=1 // pred_fallthru
      _
    // Predicated region
    $region70: #{decoder_forward.1} parent=1 // pred_check
      _
    $region71: #{decoder_forward.1} parent=1 // pred_check_branch
      %130 = sbr.rel (0) target = $region73
    $region72: #{decoder_forward.1} parent=1 // pred_region
      %131 = dma.done [#allocation9], 384
    $region73: #{decoder_forward.1} parent=1 // pred_fallthru
      _
    // Predicated region
    $region74: #{decoder_forward.1} parent=1 // pred_check
      _
    $region75: #{decoder_forward.1} parent=1 // pred_check_branch
      %133 = sbr.rel (0) target = $region77
    $region76: #{decoder_forward.1} parent=1 // pred_region
      %134 = dma.done [#allocation9], 384
    $region77: #{decoder_forward.1} parent=1 // pred_fallthru
      _
    // Predicated region
    $region78: #{decoder_forward.1} parent=1 // pred_check
      _
    $region79: #{decoder_forward.1} parent=1 // pred_check_branch
      %136 = sbr.rel (0) target = $region81
    $region80: #{decoder_forward.1} parent=1 // pred_region
      %137 = dma.done [#allocation12], 384
    $region81: #{decoder_forward.1} parent=1 // pred_fallthru
      _
    // Predicated region
    $region82: #{decoder_forward.1} parent=1 // pred_check
      _
    $region83: #{decoder_forward.1} parent=1 // pred_check_branch
      %139 = sbr.rel (0) target = $region85
    $region84: #{decoder_forward.1} parent=1 // pred_region
      %140 = dma.done [#allocation12], 384
    $region85: #{decoder_forward.1} parent=1 // pred_fallthru
      _
    %v141 = vld [vmem:[#allocation7] sm:$0xf]
    %v142 = vld [vmem:[%s0] sm:$0xff]
    %v143 = vld [vmem:[%s0 + $0x8] sm:$0xff]
    %v144 = vld [vmem:[%s0 + $0x10] sm:$0xff]
    %v145 = vld [vmem:[%s0 + $0x18] sm:$0xf]
    %v146 = vld [vmem:[#allocation2] sm:$0xff]
    %v147 = vld [vmem:[#allocation2 + $0x8] sm:$0xff]
    %v148 = vlaneseq
    %v149 = vshrl.u32 %v148, 7
    %v150 = vsub.s32 0, %v149
    %v151 = vrot.slane %v141, %v150
    %vm152 = vcmask 130048
    %v154 = vsel %vm152, %v142, 0
    %v157 = vsel %vm152, %v143, 0
    %v160 = vsel %vm152, %v144, 0
    %v163 = vsel %vm152, %v145, 0
    %165 = vmatprep.subr.mxu0 0.0
    %166 = vmatpush1.msra.mxu0 %v146
    %167 = vmatprep.subr.mxu0 0.0
    %168 = vmatpush1.msra.mxu0 %v147
    %169 = vmatprep.subr.mxu0 0.0
    %170 = vmatpush1.msra.mxu0 0.0
    %171 = vmatprep.subr.mxu0 0.0
    %172 = vmatpush1.msra.mxu0 0.0
    %173 = vmatprep.subr.mxu0 0.0
    %174 = vmatpush1.msra.mxu0 0.0
    %175 = vmatprep.subr.mxu0 0.0
    %176 = vmatpush1.msra.mxu0 0.0
    %177 = vmatprep.subr.mxu0 0.0
    %178 = vmatpush1.msra.mxu0 0.0
    %179 = vmatprep.subr.mxu0 0.0
    %180 = vmatpush1.msra.mxu0 0.0
    %181 = vmatprep.subr.mxu0 0.0
    %182 = vmatpush1.msra.mxu0 0.0
    %183 = vmatprep.subr.mxu0 0.0
    %184 = vmatpush1.msra.mxu0 0.0
    %185 = vmatprep.subr.mxu0 0.0
    %186 = vmatpush1.msra.mxu0 0.0
    %187 = vmatprep.subr.mxu0 0.0
    %188 = vmatpush1.msra.mxu0 0.0
    %189 = vmatprep.subr.mxu0 0.0
    %190 = vmatpush1.msra.mxu0 0.0
    %191 = vmatprep.subr.mxu0 0.0
    %192 = vmatpush1.msra.mxu0 0.0
    %193 = vmatprep.subr.mxu0 0.0
    %194 = vmatpush1.msra.mxu0 0.0
    %195 = vmatprep.subr.mxu0 0.0
    %196 = vmatpush1.msra.mxu0 0.0
    %197 = vmatprep.subr.mxu0 0.0
    %198 = vmatpush1.msra.mxu0 0.0
    %199 = vmatprep.subr.mxu0 0.0
    %200 = vmatpush1.msra.mxu0 0.0
    %201 = vmatprep.subr.mxu0 0.0
    %202 = vmatpush1.msra.mxu0 0.0
    %203 = vmatprep.subr.mxu0 0.0
    %204 = vmatpush1.msra.mxu0 0.0
    %205 = vmatprep.subr.mxu0 0.0
    %206 = vmatpush1.msra.mxu0 0.0
    %207 = vmatprep.subr.mxu0 0.0
    %208 = vmatpush1.msra.mxu0 0.0
    %209 = vmatprep.subr.mxu0 0.0
    %210 = vmatpush1.msra.mxu0 0.0
    %211 = vmatprep.subr.mxu0 0.0
    %212 = vmatpush1.msra.mxu0 0.0
    %213 = vmatprep.subr.mxu0 0.0
    %214 = vmatpush1.msra.mxu0 0.0
    %215 = vmatprep.subr.mxu0 0.0
    %216 = vmatpush1.msra.mxu0 0.0
    %217 = vmatprep.subr.mxu0 0.0
    %218 = vmatpush1.msra.mxu0 0.0
    %219 = vmatprep.subr.mxu0 0.0
    %220 = vmatpush1.msra.mxu0 0.0
    %221 = vmatprep.subr.mxu0 0.0
    %222 = vmatpush1.msra.mxu0 0.0
    %223 = vmatprep.subr.mxu0 0.0
    %224 = vmatpush1.msra.mxu0 0.0
    %225 = vmatprep.subr.mxu0 0.0
    %226 = vmatpush1.msra.mxu0 0.0
    %227 = vmatprep.subr.mxu0 0.0
    %228 = vmatpush1.msra.mxu0 0.0
    %229 = vmatprep.mubr.f32.mxu0 0.0
    %230 = vmatmul.mubr.f32.gmra.mrb[0].mxu0 %v154
    %v231 = vpop.f32.mrb[0].mxu0
    %v232 = vadd.f32 %v151, %v231
    %v233 = vpop.f32.mrb[0].mxu0
    %234 = vmatprep.mubr.f32.mxu0 0.0
    %235 = vmatmul.mubr.f32.gmra.mrb[0].mxu0 %v157
    %v236 = vpop.f32.mrb[0].mxu0
    %v237 = vadd.f32 %v151, %v236
    %v238 = vpop.f32.mrb[0].mxu0
    %239 = vmatprep.mubr.f32.mxu0 0.0
    %240 = vmatmul.mubr.f32.gmra.mrb[0].mxu0 %v160
    %v241 = vpop.f32.mrb[0].mxu0
    %v242 = vadd.f32 %v151, %v241
    %v243 = vpop.f32.mrb[0].mxu0
    %244 = vmatprep.mubr.f32.mxu0 0.0
    %245 = vmatmul.mubr.f32.gmra.mrb[0].mxu0 %v163
    %v246 = vpop.f32.mrb[0].mxu0
    %v247 = vadd.f32 %v151, %v246
    %v248 = vpop.f32.mrb[0].mxu0
    %249 = vdwg.mxu0
    %vm250 = vcmp.ge.f32.partialorder %v232, 0.0
    %vm251 = vcmp.ge.f32.partialorder %v237, 0.0
    %vm252 = vcmp.ge.f32.partialorder %v242, 0.0
    %vm253 = vcmp.ge.f32.partialorder %v247, 0.0
    %v254 = vmul.f32 %v232, 0.01
    %v255 = vmul.f32 %v237, 0.01
    %v256 = vmul.f32 %v242, 0.01
    %v257 = vmul.f32 %v247, 0.01
    %v258 = vsel %vm250, %v232, %v254
    %v259 = vsel %vm251, %v237, %v255
    %v260 = vsel %vm252, %v242, %v256
    %v261 = vsel %vm253, %v247, %v257
    %v262 = vld [vmem:[%s1] sm:$0xff]
    %v263 = vld [vmem:[%s2] sm:$0xff]
    %v264 = vld [vmem:[%s2 + $0x8] sm:$0xff]
    %v265 = vld [vmem:[%s11] sm:$0xff]
    %v266 = vld [vmem:[%s11 + $0x8] sm:$0xff]
    %v267 = vld [vmem:[%s11 + $0x10] sm:$0xff]
    %v268 = vld [vmem:[%s11 + $0x18] sm:$0xff]
    %vm269 = vcmask 228352
    %v271 = vsel %vm269, %v265, 0
    %v274 = vsel %vm269, %v266, 0
    %v277 = vsel %vm269, %v267, 0
    %v280 = vsel %vm269, %v268, 0
    %vm282 = vcmask 1043456
    %v284 = vsel %vm282, %v261, 0
    %286 = vmatprep.subr.mxu0 0.0
    %287 = vmatpush1.msra.mxu0 %v258
    %288 = vmatprep.subr.mxu0 0.0
    %289 = vmatpush1.msra.mxu0 %v259
    %290 = vmatprep.subr.mxu0 0.0
    %291 = vmatpush1.msra.mxu0 %v260
    %292 = vmatprep.subr.mxu0 0.0
    %293 = vmatpush1.msra.mxu0 %v284
    %294 = vmatprep.subr.mxu0 0.0
    %295 = vmatpush1.msra.mxu0 0.0
    %296 = vmatprep.subr.mxu0 0.0
    %297 = vmatpush1.msra.mxu0 0.0
    %298 = vmatprep.subr.mxu0 0.0
    %299 = vmatpush1.msra.mxu0 0.0
    %300 = vmatprep.subr.mxu0 0.0
    %301 = vmatpush1.msra.mxu0 0.0
    %302 = vmatprep.subr.mxu0 0.0
    %303 = vmatpush1.msra.mxu0 0.0
    %304 = vmatprep.subr.mxu0 0.0
    %305 = vmatpush1.msra.mxu0 0.0
    %306 = vmatprep.subr.mxu0 0.0
    %307 = vmatpush1.msra.mxu0 0.0
    %308 = vmatprep.subr.mxu0 0.0
    %309 = vmatpush1.msra.mxu0 0.0
    %310 = vmatprep.subr.mxu0 0.0
    %311 = vmatpush1.msra.mxu0 0.0
    %312 = vmatprep.subr.mxu0 0.0
    %313 = vmatpush1.msra.mxu0 0.0
    %314 = vmatprep.subr.mxu0 0.0
    %315 = vmatpush1.msra.mxu0 0.0
    %316 = vmatprep.subr.mxu0 0.0
    %317 = vmatpush1.msra.mxu0 0.0
    %318 = vmatprep.subr.mxu0 0.0
    %319 = vmatpush1.msra.mxu0 0.0
    %320 = vmatprep.subr.mxu0 0.0
    %321 = vmatpush1.msra.mxu0 0.0
    %322 = vmatprep.subr.mxu0 0.0
    %323 = vmatpush1.msra.mxu0 0.0
    %324 = vmatprep.subr.mxu0 0.0
    %325 = vmatpush1.msra.mxu0 0.0
    %326 = vmatprep.subr.mxu0 0.0
    %327 = vmatpush1.msra.mxu0 0.0
    %328 = vmatprep.subr.mxu0 0.0
    %329 = vmatpush1.msra.mxu0 0.0
    %330 = vmatprep.subr.mxu0 0.0
    %331 = vmatpush1.msra.mxu0 0.0
    %332 = vmatprep.subr.mxu0 0.0
    %333 = vmatpush1.msra.mxu0 0.0
    %334 = vmatprep.subr.mxu0 0.0
    %335 = vmatpush1.msra.mxu0 0.0
    %336 = vmatprep.subr.mxu0 0.0
    %337 = vmatpush1.msra.mxu0 0.0
    %338 = vmatprep.subr.mxu0 0.0
    %339 = vmatpush1.msra.mxu0 0.0
    %340 = vmatprep.subr.mxu0 0.0
    %341 = vmatpush1.msra.mxu0 0.0
    %342 = vmatprep.subr.mxu0 0.0
    %343 = vmatpush1.msra.mxu0 0.0
    %344 = vmatprep.subr.mxu0 0.0
    %345 = vmatpush1.msra.mxu0 0.0
    %346 = vmatprep.subr.mxu0 0.0
    %347 = vmatpush1.msra.mxu0 0.0
    %348 = vmatprep.subr.mxu0 0.0
    %349 = vmatpush1.msra.mxu0 0.0
    %350 = vmatprep.mubr.f32.mxu0 0.0
    %351 = vmatmul.mubr.f32.gmra.mrb[0].mxu0 %v271
    %v352 = vpop.f32.mrb[0].mxu0
    %v353 = vadd.f32 0.0, %v352
    %v354 = vpop.f32.mrb[0].mxu0
    %355 = vmatprep.mubr.f32.mxu0 0.0
    %356 = vmatmul.mubr.f32.gmra.mrb[0].mxu0 %v274
    %v357 = vpop.f32.mrb[0].mxu0
    %v358 = vadd.f32 0.0, %v357
    %v359 = vpop.f32.mrb[0].mxu0
    %360 = vmatprep.mubr.f32.mxu0 0.0
    %361 = vmatmul.mubr.f32.gmra.mrb[0].mxu0 %v277
    %v362 = vpop.f32.mrb[0].mxu0
    %v363 = vadd.f32 0.0, %v362
    %v364 = vpop.f32.mrb[0].mxu0
    %365 = vmatprep.mubr.f32.mxu0 0.0
    %366 = vmatmul.mubr.f32.gmra.mrb[0].mxu0 %v280
    %v367 = vpop.f32.mrb[0].mxu0
    %v368 = vadd.f32 0.0, %v367
    %v369 = vpop.f32.mrb[0].mxu0
    %370 = vdwg.mxu0
    %s371 = scalar_lea.vmem %s11, 32
    %v372 = vld [vmem:[%s371] sm:$0xff]
    %v373 = vld [vmem:[%s371 + $0x8] sm:$0xff]
    %v374 = vld [vmem:[%s371 + $0x10] sm:$0xff]
    %v375 = vld [vmem:[%s371 + $0x18] sm:$0xff]
    %v377 = vsel %vm269, %v372, 0
    %v380 = vsel %vm269, %v373, 0
    %v383 = vsel %vm269, %v374, 0
    %v386 = vsel %vm269, %v375, 0
    %388 = vmatprep.subr.mxu0 0.0
    %389 = vmatpush1.msra.mxu0 %v258
    %390 = vmatprep.subr.mxu0 0.0
    %391 = vmatpush1.msra.mxu0 %v259
    %392 = vmatprep.subr.mxu0 0.0
    %393 = vmatpush1.msra.mxu0 %v260
    %394 = vmatprep.subr.mxu0 0.0
    %395 = vmatpush1.msra.mxu0 %v284
    %396 = vmatprep.subr.mxu0 0.0
    %397 = vmatpush1.msra.mxu0 0.0
    %398 = vmatprep.subr.mxu0 0.0
    %399 = vmatpush1.msra.mxu0 0.0
    %400 = vmatprep.subr.mxu0 0.0
    %401 = vmatpush1.msra.mxu0 0.0
    %402 = vmatprep.subr.mxu0 0.0
    %403 = vmatpush1.msra.mxu0 0.0
    %404 = vmatprep.subr.mxu0 0.0
    %405 = vmatpush1.msra.mxu0 0.0
    %406 = vmatprep.subr.mxu0 0.0
    %407 = vmatpush1.msra.mxu0 0.0
    %408 = vmatprep.subr.mxu0 0.0
    %409 = vmatpush1.msra.mxu0 0.0
    %410 = vmatprep.subr.mxu0 0.0
    %411 = vmatpush1.msra.mxu0 0.0
    %412 = vmatprep.subr.mxu0 0.0
    %413 = vmatpush1.msra.mxu0 0.0
    %414 = vmatprep.subr.mxu0 0.0
    %415 = vmatpush1.msra.mxu0 0.0
    %416 = vmatprep.subr.mxu0 0.0
    %417 = vmatpush1.msra.mxu0 0.0
    %418 = vmatprep.subr.mxu0 0.0
    %419 = vmatpush1.msra.mxu0 0.0
    %420 = vmatprep.subr.mxu0 0.0
    %421 = vmatpush1.msra.mxu0 0.0
    %422 = vmatprep.subr.mxu0 0.0
    %423 = vmatpush1.msra.mxu0 0.0
    %424 = vmatprep.subr.mxu0 0.0
    %425 = vmatpush1.msra.mxu0 0.0
    %426 = vmatprep.subr.mxu0 0.0
    %427 = vmatpush1.msra.mxu0 0.0
    %428 = vmatprep.subr.mxu0 0.0
    %429 = vmatpush1.msra.mxu0 0.0
    %430 = vmatprep.subr.mxu0 0.0
    %431 = vmatpush1.msra.mxu0 0.0
    %432 = vmatprep.subr.mxu0 0.0
    %433 = vmatpush1.msra.mxu0 0.0
    %434 = vmatprep.subr.mxu0 0.0
    %435 = vmatpush1.msra.mxu0 0.0
    %436 = vmatprep.subr.mxu0 0.0
    %437 = vmatpush1.msra.mxu0 0.0
    %438 = vmatprep.subr.mxu0 0.0
    %439 = vmatpush1.msra.mxu0 0.0
    %440 = vmatprep.subr.mxu0 0.0
    %441 = vmatpush1.msra.mxu0 0.0
    %442 = vmatprep.subr.mxu0 0.0
    %443 = vmatpush1.msra.mxu0 0.0
    %444 = vmatprep.subr.mxu0 0.0
    %445 = vmatpush1.msra.mxu0 0.0
    %446 = vmatprep.subr.mxu0 0.0
    %447 = vmatpush1.msra.mxu0 0.0
    %448 = vmatprep.subr.mxu0 0.0
    %449 = vmatpush1.msra.mxu0 0.0
    %450 = vmatprep.subr.mxu0 0.0
    %451 = vmatpush1.msra.mxu0 0.0
    %452 = vmatprep.mubr.f32.mxu0 0.0
    %453 = vmatmul.mubr.f32.gmra.mrb[0].mxu0 %v377
    %v454 = vpop.f32.mrb[0].mxu0
    %v455 = vadd.f32 0.0, %v454
    %v456 = vpop.f32.mrb[0].mxu0
    %457 = vmatprep.mubr.f32.mxu0 0.0
    %458 = vmatmul.mubr.f32.gmra.mrb[0].mxu0 %v380
    %v459 = vpop.f32.mrb[0].mxu0
    %v460 = vadd.f32 0.0, %v459
    %v461 = vpop.f32.mrb[0].mxu0
    %462 = vmatprep.mubr.f32.mxu0 0.0
    %463 = vmatmul.mubr.f32.gmra.mrb[0].mxu0 %v383
    %v464 = vpop.f32.mrb[0].mxu0
    %v465 = vadd.f32 0.0, %v464
    %v466 = vpop.f32.mrb[0].mxu0
    %467 = vmatprep.mubr.f32.mxu0 0.0
    %468 = vmatmul.mubr.f32.gmra.mrb[0].mxu0 %v386
    %v469 = vpop.f32.mrb[0].mxu0
    %v470 = vadd.f32 0.0, %v469
    %v471 = vpop.f32.mrb[0].mxu0
    %472 = vdwg.mxu0
    %v473 = vsel %vm152, %v455, 0.0
    %474 = vadd.xlane.f32.xlu0 %v473
    %v475 = vpop.xlane.xlu0 %474
    %v476 = vsel %vm152, %v460, 0.0
    %477 = vadd.xlane.f32.xlu0 %v476
    %v478 = vpop.xlane.xlu0 %477
    %v479 = vsel %vm152, %v465, 0.0
    %480 = vadd.xlane.f32.xlu0 %v479
    %v481 = vpop.xlane.xlu0 %480
    %v482 = vsel %vm152, %v470, 0.0
    %483 = vadd.xlane.f32.xlu0 %v482
    %v484 = vpop.xlane.xlu0 %483
    %v485 = vrcp.pop 16.0
    %v486 = vmul.f32 %v475, %v485
    %v487 = vmul.f32 %v478, %v485
    %v488 = vmul.f32 %v481, %v485
    %v489 = vmul.f32 %v484, %v485
    %s490 = scalar_lea.vmem %s10, 32
    %v491 = vld [vmem:[%s490] sm:$0xff]
    %v492 = vld [vmem:[%s490 + $0x8] sm:$0xff]
    %v493 = vld [vmem:[%s490 + $0x10] sm:$0xff]
    %v494 = vld [vmem:[%s490 + $0x18] sm:$0xff]
    %v495 = vld [vmem:[#allocation11] sm:$0xff]
    %v496 = vmul.f32 %v491, %v486
    %v497 = vmul.f32 %v492, %v487
    %v498 = vmul.f32 %v493, %v488
    %v499 = vmul.f32 %v494, %v489
    %vm500 = vcmask 261120
    %v502 = vsel %vm500, %v495, 0
    %504 = vmatprep.subr.mxu0 0.0
    %505 = vmatpush1.msra.mxu0 %v496
    %506 = vmatprep.subr.mxu0 0.0
    %507 = vmatpush1.msra.mxu0 %v497
    %508 = vmatprep.subr.mxu0 0.0
    %509 = vmatpush1.msra.mxu0 %v498
    %510 = vmatprep.subr.mxu0 0.0
    %511 = vmatpush1.msra.mxu0 %v499
    %512 = vmatprep.subr.mxu0 0.0
    %513 = vmatpush1.msra.mxu0 0.0
    %514 = vmatprep.subr.mxu0 0.0
    %515 = vmatpush1.msra.mxu0 0.0
    %516 = vmatprep.subr.mxu0 0.0
    %517 = vmatpush1.msra.mxu0 0.0
    %518 = vmatprep.subr.mxu0 0.0
    %519 = vmatpush1.msra.mxu0 0.0
    %520 = vmatprep.subr.mxu0 0.0
    %521 = vmatpush1.msra.mxu0 0.0
    %522 = vmatprep.subr.mxu0 0.0
    %523 = vmatpush1.msra.mxu0 0.0
    %524 = vmatprep.subr.mxu0 0.0
    %525 = vmatpush1.msra.mxu0 0.0
    %526 = vmatprep.subr.mxu0 0.0
    %527 = vmatpush1.msra.mxu0 0.0
    %528 = vmatprep.subr.mxu0 0.0
    %529 = vmatpush1.msra.mxu0 0.0
    %530 = vmatprep.subr.mxu0 0.0
    %531 = vmatpush1.msra.mxu0 0.0
    %532 = vmatprep.subr.mxu0 0.0
    %533 = vmatpush1.msra.mxu0 0.0
    %534 = vmatprep.subr.mxu0 0.0
    %535 = vmatpush1.msra.mxu0 0.0
    %536 = vmatprep.subr.mxu0 0.0
    %537 = vmatpush1.msra.mxu0 0.0
    %538 = vmatprep.subr.mxu0 0.0
    %539 = vmatpush1.msra.mxu0 0.0
    %540 = vmatprep.subr.mxu0 0.0
    %541 = vmatpush1.msra.mxu0 0.0
    %542 = vmatprep.subr.mxu0 0.0
    %543 = vmatpush1.msra.mxu0 0.0
    %544 = vmatprep.subr.mxu0 0.0
    %545 = vmatpush1.msra.mxu0 0.0
    %546 = vmatprep.subr.mxu0 0.0
    %547 = vmatpush1.msra.mxu0 0.0
    %548 = vmatprep.subr.mxu0 0.0
    %549 = vmatpush1.msra.mxu0 0.0
    %550 = vmatprep.subr.mxu0 0.0
    %551 = vmatpush1.msra.mxu0 0.0
    %552 = vmatprep.subr.mxu0 0.0
    %553 = vmatpush1.msra.mxu0 0.0
    %554 = vmatprep.subr.mxu0 0.0
    %555 = vmatpush1.msra.mxu0 0.0
    %556 = vmatprep.subr.mxu0 0.0
    %557 = vmatpush1.msra.mxu0 0.0
    %558 = vmatprep.subr.mxu0 0.0
    %559 = vmatpush1.msra.mxu0 0.0
    %560 = vmatprep.subr.mxu0 0.0
    %561 = vmatpush1.msra.mxu0 0.0
    %562 = vmatprep.subr.mxu0 0.0
    %563 = vmatpush1.msra.mxu0 0.0
    %564 = vmatprep.subr.mxu0 0.0
    %565 = vmatpush1.msra.mxu0 0.0
    %566 = vmatprep.subr.mxu0 0.0
    %567 = vmatpush1.msra.mxu0 0.0
    %568 = vmatprep.mubr.f32.mxu0 0.0
    %569 = vmatmul.mubr.f32.gmra.mrb[0].mxu0 %v502
    %v570 = vpop.f32.mrb[0].mxu0
    %v571 = vadd.f32 0.0, %v570
    %v572 = vpop.f32.mrb[0].mxu0
    %573 = vdwg.mxu0
    %574 = vxpose.xlu0.b32.start [1/16] %v571, 128
    %575 = vxpose.xlu0.b32.cont [2/16] 0.0, 128
    %576 = vxpose.xlu0.b32.cont [3/16] 0.0, 128
    %577 = vxpose.xlu0.b32.cont [4/16] 0.0, 128
    %578 = vxpose.xlu0.b32.cont [5/16] 0.0, 128
    %579 = vxpose.xlu0.b32.cont [6/16] 0.0, 128
    %580 = vxpose.xlu0.b32.cont [7/16] 0.0, 128
    %581 = vxpose.xlu0.b32.cont [8/16] 0.0, 128
    %582 = vxpose.xlu0.b32.cont [9/16] 0.0, 128
    %583 = vxpose.xlu0.b32.cont [10/16] 0.0, 128
    %584 = vxpose.xlu0.b32.cont [11/16] 0.0, 128
    %585 = vxpose.xlu0.b32.cont [12/16] 0.0, 128
    %586 = vxpose.xlu0.b32.cont [13/16] 0.0, 128
    %587 = vxpose.xlu0.b32.cont [14/16] 0.0, 128
    %588 = vxpose.xlu0.b32.cont [15/16] 0.0, 128
    %589 = vxpose.xlu0.b32.end [16/16] 0.0, 128
    %v590 = vpop.trf.xlu0
    %v591 = vpop.trf.xlu0
    %v592 = vpop.trf.xlu0
    %v593 = vpop.trf.xlu0
    %v594 = vpop.trf.xlu0
    %v595 = vpop.trf.xlu0
    %v596 = vpop.trf.xlu0
    %v597 = vpop.trf.xlu0
    %v598 = vpop.trf.xlu0
    %v599 = vpop.trf.xlu0
    %v600 = vpop.trf.xlu0
    %v601 = vpop.trf.xlu0
    %v602 = vpop.trf.xlu0
    %v603 = vpop.trf.xlu0
    %v604 = vpop.trf.xlu0
    %v605 = vpop.trf.xlu0
    %v606 = vadd.f32 %v571, %v590
    %v607 = vld [vmem:[#allocation13] sm:$0xff]
    %v608 = vadd.f32 %v606, %v607
    %vm609 = vcmask 64512
    %v610 = vsel %vm609, %v608, 0.0
    %611 = vadd.xlane.f32.xlu0 %v610
    %v612 = vpop.xlane.xlu0 %611
    %v613 = vrot.slane %v610, 4
    %v614 = vadd.f32 %v610, %v613
    %v615 = vrot.slane %v614, 2
    %v616 = vadd.f32 %v614, %v615
    %v617 = vrot.slane %v616, 1
    %v618 = vadd.f32 %v616, %v617
    %vm619 = vcmp.gt.f32.partialorder %v612, 0.0
    %v620 = vrsqrt.pop %v612
    %v621 = vsel %vm619, %v620, 0.0
    %vm622 = vcmp.gt.f32.partialorder %v618, 0.0
    %v623 = vrsqrt.pop %v618
    %v624 = vsel %vm622, %v623, 0.0
    %v625 = vmul.f32 %v621, %v608
    %v626 = vmul.f32 %v625, %v624
    %v627 = vld [vmem:[#allocation8] sm:$0xff]
    %v629 = vsel %vm609, %v627, 0
    %631 = vmatprep.subr.mxu0 0.0
    %632 = vmatpush1.msra.mxu0 %v262
    %633 = vmatprep.subr.mxu0 0.0
    %634 = vmatpush1.msra.mxu0 0.0
    %635 = vmatprep.subr.mxu0 0.0
    %636 = vmatpush1.msra.mxu0 0.0
    %637 = vmatprep.subr.mxu0 0.0
    %638 = vmatpush1.msra.mxu0 0.0
    %639 = vmatprep.subr.mxu0 0.0
    %640 = vmatpush1.msra.mxu0 0.0
    %641 = vmatprep.subr.mxu0 0.0
    %642 = vmatpush1.msra.mxu0 0.0
    %643 = vmatprep.subr.mxu0 0.0
    %644 = vmatpush1.msra.mxu0 0.0
    %645 = vmatprep.subr.mxu0 0.0
    %646 = vmatpush1.msra.mxu0 0.0
    %647 = vmatprep.subr.mxu0 0.0
    %648 = vmatpush1.msra.mxu0 0.0
    %649 = vmatprep.subr.mxu0 0.0
    %650 = vmatpush1.msra.mxu0 0.0
    %651 = vmatprep.subr.mxu0 0.0
    %652 = vmatpush1.msra.mxu0 0.0
    %653 = vmatprep.subr.mxu0 0.0
    %654 = vmatpush1.msra.mxu0 0.0
    %655 = vmatprep.subr.mxu0 0.0
    %656 = vmatpush1.msra.mxu0 0.0
    %657 = vmatprep.subr.mxu0 0.0
    %658 = vmatpush1.msra.mxu0 0.0
    %659 = vmatprep.subr.mxu0 0.0
    %660 = vmatpush1.msra.mxu0 0.0
    %661 = vmatprep.subr.mxu0 0.0
    %662 = vmatpush1.msra.mxu0 0.0
    %663 = vmatprep.subr.mxu0 0.0
    %664 = vmatpush1.msra.mxu0 0.0
    %665 = vmatprep.subr.mxu0 0.0
    %666 = vmatpush1.msra.mxu0 0.0
    %667 = vmatprep.subr.mxu0 0.0
    %668 = vmatpush1.msra.mxu0 0.0
    %669 = vmatprep.subr.mxu0 0.0
    %670 = vmatpush1.msra.mxu0 0.0
    %671 = vmatprep.subr.mxu0 0.0
    %672 = vmatpush1.msra.mxu0 0.0
    %673 = vmatprep.subr.mxu0 0.0
    %674 = vmatpush1.msra.mxu0 0.0
    %675 = vmatprep.subr.mxu0 0.0
    %676 = vmatpush1.msra.mxu0 0.0
    %677 = vmatprep.subr.mxu0 0.0
    %678 = vmatpush1.msra.mxu0 0.0
    %679 = vmatprep.subr.mxu0 0.0
    %680 = vmatpush1.msra.mxu0 0.0
    %681 = vmatprep.subr.mxu0 0.0
    %682 = vmatpush1.msra.mxu0 0.0
    %683 = vmatprep.subr.mxu0 0.0
    %684 = vmatpush1.msra.mxu0 0.0
    %685 = vmatprep.subr.mxu0 0.0
    %686 = vmatpush1.msra.mxu0 0.0
    %687 = vmatprep.subr.mxu0 0.0
    %688 = vmatpush1.msra.mxu0 0.0
    %689 = vmatprep.subr.mxu0 0.0
    %690 = vmatpush1.msra.mxu0 0.0
    %691 = vmatprep.subr.mxu0 0.0
    %692 = vmatpush1.msra.mxu0 0.0
    %693 = vmatprep.subr.mxu0 0.0
    %694 = vmatpush1.msra.mxu0 0.0
    %695 = vmatprep.mubr.f32.mxu0 0.0
    %696 = vmatmul.mubr.f32.gmra.mrb[0].mxu0 %v629
    %v697 = vpop.f32.mrb[0].mxu0
    %v698 = vadd.f32 0.0, %v697
    %v699 = vpop.f32.mrb[0].mxu0
    %700 = vdwg.mxu0
    %v701 = vld [vmem:[#allocation10] sm:$0xff]
    %v703 = vsel %vm152, %v701, 0
    %705 = vmatprep.subr.mxu0 0.0
    %706 = vmatpush1.msra.mxu0 %v263
    %707 = vmatprep.subr.mxu0 0.0
    %708 = vmatpush1.msra.mxu0 %v264
    %709 = vmatprep.subr.mxu0 0.0
    %710 = vmatpush1.msra.mxu0 0.0
    %711 = vmatprep.subr.mxu0 0.0
    %712 = vmatpush1.msra.mxu0 0.0
    %713 = vmatprep.subr.mxu0 0.0
    %714 = vmatpush1.msra.mxu0 0.0
    %715 = vmatprep.subr.mxu0 0.0
    %716 = vmatpush1.msra.mxu0 0.0
    %717 = vmatprep.subr.mxu0 0.0
    %718 = vmatpush1.msra.mxu0 0.0
    %719 = vmatprep.subr.mxu0 0.0
    %720 = vmatpush1.msra.mxu0 0.0
    %721 = vmatprep.subr.mxu0 0.0
    %722 = vmatpush1.msra.mxu0 0.0
    %723 = vmatprep.subr.mxu0 0.0
    %724 = vmatpush1.msra.mxu0 0.0
    %725 = vmatprep.subr.mxu0 0.0
    %726 = vmatpush1.msra.mxu0 0.0
    %727 = vmatprep.subr.mxu0 0.0
    %728 = vmatpush1.msra.mxu0 0.0
    %729 = vmatprep.subr.mxu0 0.0
    %730 = vmatpush1.msra.mxu0 0.0
    %731 = vmatprep.subr.mxu0 0.0
    %732 = vmatpush1.msra.mxu0 0.0
    %733 = vmatprep.subr.mxu0 0.0
    %734 = vmatpush1.msra.mxu0 0.0
    %735 = vmatprep.subr.mxu0 0.0
    %736 = vmatpush1.msra.mxu0 0.0
    %737 = vmatprep.subr.mxu0 0.0
    %738 = vmatpush1.msra.mxu0 0.0
    %739 = vmatprep.subr.mxu0 0.0
    %740 = vmatpush1.msra.mxu0 0.0
    %741 = vmatprep.subr.mxu0 0.0
    %742 = vmatpush1.msra.mxu0 0.0
    %743 = vmatprep.subr.mxu0 0.0
    %744 = vmatpush1.msra.mxu0 0.0
    %745 = vmatprep.subr.mxu0 0.0
    %746 = vmatpush1.msra.mxu0 0.0
    %747 = vmatprep.subr.mxu0 0.0
    %748 = vmatpush1.msra.mxu0 0.0
    %749 = vmatprep.subr.mxu0 0.0
    %750 = vmatpush1.msra.mxu0 0.0
    %751 = vmatprep.subr.mxu0 0.0
    %752 = vmatpush1.msra.mxu0 0.0
    %753 = vmatprep.subr.mxu0 0.0
    %754 = vmatpush1.msra.mxu0 0.0
    %755 = vmatprep.subr.mxu0 0.0
    %756 = vmatpush1.msra.mxu0 0.0
    %757 = vmatprep.subr.mxu0 0.0
    %758 = vmatpush1.msra.mxu0 0.0
    %759 = vmatprep.subr.mxu0 0.0
    %760 = vmatpush1.msra.mxu0 0.0
    %761 = vmatprep.subr.mxu0 0.0
    %762 = vmatpush1.msra.mxu0 0.0
    %763 = vmatprep.subr.mxu0 0.0
    %764 = vmatpush1.msra.mxu0 0.0
    %765 = vmatprep.subr.mxu0 0.0
    %766 = vmatpush1.msra.mxu0 0.0
    %767 = vmatprep.subr.mxu0 0.0
    %768 = vmatpush1.msra.mxu0 0.0
    %769 = vmatprep.mubr.f32.mxu0 0.0
    %770 = vmatmul.mubr.f32.gmra.mrb[0].mxu0 %v703
    %v771 = vpop.f32.mrb[0].mxu0
    %v772 = vadd.f32 0.0, %v771
    %v773 = vpop.f32.mrb[0].mxu0
    %774 = vdwg.mxu0
    %v775 = vld [vmem:[%s4] sm:$0xff]
    %v776 = vld [vmem:[%s4 + $0x8] sm:$0xff]
    %v777 = vld [vmem:[#allocation5] sm:$0xff]
    %v779 = vsel %vm609, %v772, 0
    %781 = vmatprep.subr.mxu0 0.0
    %782 = vmatpush1.msra.mxu0 %v777
    %783 = vmatprep.subr.mxu0 0.0
    %784 = vmatpush1.msra.mxu0 0.0
    %785 = vmatprep.subr.mxu0 0.0
    %786 = vmatpush1.msra.mxu0 0.0
    %787 = vmatprep.subr.mxu0 0.0
    %788 = vmatpush1.msra.mxu0 0.0
    %789 = vmatprep.subr.mxu0 0.0
    %790 = vmatpush1.msra.mxu0 0.0
    %791 = vmatprep.subr.mxu0 0.0
    %792 = vmatpush1.msra.mxu0 0.0
    %793 = vmatprep.subr.mxu0 0.0
    %794 = vmatpush1.msra.mxu0 0.0
    %795 = vmatprep.subr.mxu0 0.0
    %796 = vmatpush1.msra.mxu0 0.0
    %797 = vmatprep.subr.mxu0 0.0
    %798 = vmatpush1.msra.mxu0 0.0
    %799 = vmatprep.subr.mxu0 0.0
    %800 = vmatpush1.msra.mxu0 0.0
    %801 = vmatprep.subr.mxu0 0.0
    %802 = vmatpush1.msra.mxu0 0.0
    %803 = vmatprep.subr.mxu0 0.0
    %804 = vmatpush1.msra.mxu0 0.0
    %805 = vmatprep.subr.mxu0 0.0
    %806 = vmatpush1.msra.mxu0 0.0
    %807 = vmatprep.subr.mxu0 0.0
    %808 = vmatpush1.msra.mxu0 0.0
    %809 = vmatprep.subr.mxu0 0.0
    %810 = vmatpush1.msra.mxu0 0.0
    %811 = vmatprep.subr.mxu0 0.0
    %812 = vmatpush1.msra.mxu0 0.0
    %813 = vmatprep.subr.mxu0 0.0
    %814 = vmatpush1.msra.mxu0 0.0
    %815 = vmatprep.subr.mxu0 0.0
    %816 = vmatpush1.msra.mxu0 0.0
    %817 = vmatprep.subr.mxu0 0.0
    %818 = vmatpush1.msra.mxu0 0.0
    %819 = vmatprep.subr.mxu0 0.0
    %820 = vmatpush1.msra.mxu0 0.0
    %821 = vmatprep.subr.mxu0 0.0
    %822 = vmatpush1.msra.mxu0 0.0
    %823 = vmatprep.subr.mxu0 0.0
    %824 = vmatpush1.msra.mxu0 0.0
    %825 = vmatprep.subr.mxu0 0.0
    %826 = vmatpush1.msra.mxu0 0.0
    %827 = vmatprep.subr.mxu0 0.0
    %828 = vmatpush1.msra.mxu0 0.0
    %829 = vmatprep.subr.mxu0 0.0
    %830 = vmatpush1.msra.mxu0 0.0
    %831 = vmatprep.subr.mxu0 0.0
    %832 = vmatpush1.msra.mxu0 0.0
    %833 = vmatprep.subr.mxu0 0.0
    %834 = vmatpush1.msra.mxu0 0.0
    %835 = vmatprep.subr.mxu0 0.0
    %836 = vmatpush1.msra.mxu0 0.0
    %837 = vmatprep.subr.mxu0 0.0
    %838 = vmatpush1.msra.mxu0 0.0
    %839 = vmatprep.subr.mxu0 0.0
    %840 = vmatpush1.msra.mxu0 0.0
    %841 = vmatprep.subr.mxu0 0.0
    %842 = vmatpush1.msra.mxu0 0.0
    %843 = vmatprep.subr.mxu0 0.0
    %844 = vmatpush1.msra.mxu0 0.0
    %845 = vmatprep.mubr.f32.mxu0 0.0
    %846 = vmatmul.mubr.f32.gmra.mrb[0].mxu0 %v779
    %v847 = vpop.f32.mrb[0].mxu0
    %v848 = vadd.f32 0.0, %v847
    %v849 = vpop.f32.mrb[0].mxu0
    %850 = vdwg.mxu0
    %v852 = vsel %vm152, %v698, 0
    %854 = vmatprep.subr.mxu0 0.0
    %855 = vmatpush1.msra.mxu0 %v775
    %856 = vmatprep.subr.mxu0 0.0
    %857 = vmatpush1.msra.mxu0 %v776
    %858 = vmatprep.subr.mxu0 0.0
    %859 = vmatpush1.msra.mxu0 0.0
    %860 = vmatprep.subr.mxu0 0.0
    %861 = vmatpush1.msra.mxu0 0.0
    %862 = vmatprep.subr.mxu0 0.0
    %863 = vmatpush1.msra.mxu0 0.0
    %864 = vmatprep.subr.mxu0 0.0
    %865 = vmatpush1.msra.mxu0 0.0
    %866 = vmatprep.subr.mxu0 0.0
    %867 = vmatpush1.msra.mxu0 0.0
    %868 = vmatprep.subr.mxu0 0.0
    %869 = vmatpush1.msra.mxu0 0.0
    %870 = vmatprep.subr.mxu0 0.0
    %871 = vmatpush1.msra.mxu0 0.0
    %872 = vmatprep.subr.mxu0 0.0
    %873 = vmatpush1.msra.mxu0 0.0
    %874 = vmatprep.subr.mxu0 0.0
    %875 = vmatpush1.msra.mxu0 0.0
    %876 = vmatprep.subr.mxu0 0.0
    %877 = vmatpush1.msra.mxu0 0.0
    %878 = vmatprep.subr.mxu0 0.0
    %879 = vmatpush1.msra.mxu0 0.0
    %880 = vmatprep.subr.mxu0 0.0
    %881 = vmatpush1.msra.mxu0 0.0
    %882 = vmatprep.subr.mxu0 0.0
    %883 = vmatpush1.msra.mxu0 0.0
    %884 = vmatprep.subr.mxu0 0.0
    %885 = vmatpush1.msra.mxu0 0.0
    %886 = vmatprep.subr.mxu0 0.0
    %887 = vmatpush1.msra.mxu0 0.0
    %888 = vmatprep.subr.mxu0 0.0
    %889 = vmatpush1.msra.mxu0 0.0
    %890 = vmatprep.subr.mxu0 0.0
    %891 = vmatpush1.msra.mxu0 0.0
    %892 = vmatprep.subr.mxu0 0.0
    %893 = vmatpush1.msra.mxu0 0.0
    %894 = vmatprep.subr.mxu0 0.0
    %895 = vmatpush1.msra.mxu0 0.0
    %896 = vmatprep.subr.mxu0 0.0
    %897 = vmatpush1.msra.mxu0 0.0
    %898 = vmatprep.subr.mxu0 0.0
    %899 = vmatpush1.msra.mxu0 0.0
    %900 = vmatprep.subr.mxu0 0.0
    %901 = vmatpush1.msra.mxu0 0.0
    %902 = vmatprep.subr.mxu0 0.0
    %903 = vmatpush1.msra.mxu0 0.0
    %904 = vmatprep.subr.mxu0 0.0
    %905 = vmatpush1.msra.mxu0 0.0
    %906 = vmatprep.subr.mxu0 0.0
    %907 = vmatpush1.msra.mxu0 0.0
    %908 = vmatprep.subr.mxu0 0.0
    %909 = vmatpush1.msra.mxu0 0.0
    %910 = vmatprep.subr.mxu0 0.0
    %911 = vmatpush1.msra.mxu0 0.0
    %912 = vmatprep.subr.mxu0 0.0
    %913 = vmatpush1.msra.mxu0 0.0
    %914 = vmatprep.subr.mxu0 0.0
    %915 = vmatpush1.msra.mxu0 0.0
    %916 = vmatprep.subr.mxu0 0.0
    %917 = vmatpush1.msra.mxu0 0.0
    %918 = vmatprep.mubr.f32.mxu0 0.0
    %919 = vmatmul.mubr.f32.gmra.mrb[0].mxu0 %v852
    %v920 = vpop.f32.mrb[0].mxu0
    %v921 = vadd.f32 %v848, %v920
    %v922 = vpop.f32.mrb[0].mxu0
    %923 = vdwg.mxu0
    %v924 = vlaneseq
    %v925 = vshrl.u32 %v924, 7
    %v926 = vsub.s32 1, %v925
    %v927 = vrot.slane %v141, %v926
    %v929 = vsel %vm609, %v626, 0
    %931 = vmatprep.subr.mxu0 0.0
    %932 = vmatpush1.msra.mxu0 %v921
    %933 = vmatprep.subr.mxu0 0.0
    %934 = vmatpush1.msra.mxu0 0.0
    %935 = vmatprep.subr.mxu0 0.0
    %936 = vmatpush1.msra.mxu0 0.0
    %937 = vmatprep.subr.mxu0 0.0
    %938 = vmatpush1.msra.mxu0 0.0
    %939 = vmatprep.subr.mxu0 0.0
    %940 = vmatpush1.msra.mxu0 0.0
    %941 = vmatprep.subr.mxu0 0.0
    %942 = vmatpush1.msra.mxu0 0.0
    %943 = vmatprep.subr.mxu0 0.0
    %944 = vmatpush1.msra.mxu0 0.0
    %945 = vmatprep.subr.mxu0 0.0
    %946 = vmatpush1.msra.mxu0 0.0
    %947 = vmatprep.subr.mxu0 0.0
    %948 = vmatpush1.msra.mxu0 0.0
    %949 = vmatprep.subr.mxu0 0.0
    %950 = vmatpush1.msra.mxu0 0.0
    %951 = vmatprep.subr.mxu0 0.0
    %952 = vmatpush1.msra.mxu0 0.0
    %953 = vmatprep.subr.mxu0 0.0
    %954 = vmatpush1.msra.mxu0 0.0
    %955 = vmatprep.subr.mxu0 0.0
    %956 = vmatpush1.msra.mxu0 0.0
    %957 = vmatprep.subr.mxu0 0.0
    %958 = vmatpush1.msra.mxu0 0.0
    %959 = vmatprep.subr.mxu0 0.0
    %960 = vmatpush1.msra.mxu0 0.0
    %961 = vmatprep.subr.mxu0 0.0
    %962 = vmatpush1.msra.mxu0 0.0
    %963 = vmatprep.subr.mxu0 0.0
    %964 = vmatpush1.msra.mxu0 0.0
    %965 = vmatprep.subr.mxu0 0.0
    %966 = vmatpush1.msra.mxu0 0.0
    %967 = vmatprep.subr.mxu0 0.0
    %968 = vmatpush1.msra.mxu0 0.0
    %969 = vmatprep.subr.mxu0 0.0
    %970 = vmatpush1.msra.mxu0 0.0
    %971 = vmatprep.subr.mxu0 0.0
    %972 = vmatpush1.msra.mxu0 0.0
    %973 = vmatprep.subr.mxu0 0.0
    %974 = vmatpush1.msra.mxu0 0.0
    %975 = vmatprep.subr.mxu0 0.0
    %976 = vmatpush1.msra.mxu0 0.0
    %977 = vmatprep.subr.mxu0 0.0
    %978 = vmatpush1.msra.mxu0 0.0
    %979 = vmatprep.subr.mxu0 0.0
    %980 = vmatpush1.msra.mxu0 0.0
    %981 = vmatprep.subr.mxu0 0.0
    %982 = vmatpush1.msra.mxu0 0.0
    %983 = vmatprep.subr.mxu0 0.0
    %984 = vmatpush1.msra.mxu0 0.0
    %985 = vmatprep.subr.mxu0 0.0
    %986 = vmatpush1.msra.mxu0 0.0
    %987 = vmatprep.subr.mxu0 0.0
    %988 = vmatpush1.msra.mxu0 0.0
    %989 = vmatprep.subr.mxu0 0.0
    %990 = vmatpush1.msra.mxu0 0.0
    %991 = vmatprep.subr.mxu0 0.0
    %992 = vmatpush1.msra.mxu0 0.0
    %993 = vmatprep.subr.mxu0 0.0
    %994 = vmatpush1.msra.mxu0 0.0
    %995 = vmatprep.mubr.f32.mxu0 0.0
    %996 = vmatmul.mubr.f32.gmra.mrb[0].mxu0 %v929
    %v997 = vpop.f32.mrb[0].mxu0
    %v998 = vadd.f32 %v927, %v997
    %v999 = vpop.f32.mrb[0].mxu0
    %1000 = vdwg.mxu0
    %vm1001 = vcmp.ge.f32.partialorder %v998, 0.0
    %v1002 = vmul.f32 %v998, 0.01
    %v1003 = vsel %vm1001, %v998, %v1002
    %v1005 = vsel %vm152, %v1003, 0
    %1007 = vmatprep.subr.mxu0 0.0
    %1008 = vmatpush1.xpose.msra.mxu0 %v1005
    %1009 = vmatprep.subr.mxu0 0.0
    %1010 = vmatpush1.xpose.msra.mxu0 0.0
    %1011 = vmatprep.subr.mxu0 0.0
    %1012 = vmatpush1.xpose.msra.mxu0 0.0
    %1013 = vmatprep.subr.mxu0 0.0
    %1014 = vmatpush1.xpose.msra.mxu0 0.0
    %1015 = vmatprep.subr.mxu0 0.0
    %1016 = vmatpush1.xpose.msra.mxu0 0.0
    %1017 = vmatprep.subr.mxu0 0.0
    %1018 = vmatpush1.xpose.msra.mxu0 0.0
    %1019 = vmatprep.subr.mxu0 0.0
    %1020 = vmatpush1.xpose.msra.mxu0 0.0
    %1021 = vmatprep.subr.mxu0 0.0
    %1022 = vmatpush1.xpose.msra.mxu0 0.0
    %1023 = vmatprep.subr.mxu0 0.0
    %1024 = vmatpush1.xpose.msra.mxu0 0.0
    %1025 = vmatprep.subr.mxu0 0.0
    %1026 = vmatpush1.xpose.msra.mxu0 0.0
    %1027 = vmatprep.subr.mxu0 0.0
    %1028 = vmatpush1.xpose.msra.mxu0 0.0
    %1029 = vmatprep.subr.mxu0 0.0
    %1030 = vmatpush1.xpose.msra.mxu0 0.0
    %1031 = vmatprep.subr.mxu0 0.0
    %1032 = vmatpush1.xpose.msra.mxu0 0.0
    %1033 = vmatprep.subr.mxu0 0.0
    %1034 = vmatpush1.xpose.msra.mxu0 0.0
    %1035 = vmatprep.subr.mxu0 0.0
    %1036 = vmatpush1.xpose.msra.mxu0 0.0
    %1037 = vmatprep.subr.mxu0 0.0
    %1038 = vmatpush1.xpose.msra.mxu0 0.0
    %1039 = vmatprep.subr.mxu0 0.0
    %1040 = vmatpush1.xpose.msra.mxu0 0.0
    %1041 = vmatprep.subr.mxu0 0.0
    %1042 = vmatpush1.xpose.msra.mxu0 0.0
    %1043 = vmatprep.subr.mxu0 0.0
    %1044 = vmatpush1.xpose.msra.mxu0 0.0
    %1045 = vmatprep.subr.mxu0 0.0
    %1046 = vmatpush1.xpose.msra.mxu0 0.0
    %1047 = vmatprep.subr.mxu0 0.0
    %1048 = vmatpush1.xpose.msra.mxu0 0.0
    %1049 = vmatprep.subr.mxu0 0.0
    %1050 = vmatpush1.xpose.msra.mxu0 0.0
    %1051 = vmatprep.subr.mxu0 0.0
    %1052 = vmatpush1.xpose.msra.mxu0 0.0
    %1053 = vmatprep.subr.mxu0 0.0
    %1054 = vmatpush1.xpose.msra.mxu0 0.0
    %1055 = vmatprep.subr.mxu0 0.0
    %1056 = vmatpush1.xpose.msra.mxu0 0.0
    %1057 = vmatprep.subr.mxu0 0.0
    %1058 = vmatpush1.xpose.msra.mxu0 0.0
    %1059 = vmatprep.subr.mxu0 0.0
    %1060 = vmatpush1.xpose.msra.mxu0 0.0
    %1061 = vmatprep.subr.mxu0 0.0
    %1062 = vmatpush1.xpose.msra.mxu0 0.0
    %1063 = vmatprep.subr.mxu0 0.0
    %1064 = vmatpush1.xpose.msra.mxu0 0.0
    %1065 = vmatprep.subr.mxu0 0.0
    %1066 = vmatpush1.xpose.msra.mxu0 0.0
    %1067 = vmatprep.subr.mxu0 0.0
    %1068 = vmatpush1.xpose.msra.mxu0 0.0
    %1069 = vmatprep.subr.mxu0 0.0
    %1070 = vmatpush1.xpose.msra.mxu0 0.0
    %1071 = vmatprep.mubr.f32.mxu0 0.0
    %1072 = vmatmul.mubr.f32.gmra.mrb[0].mxu0 %v1005
    %v1073 = vpop.f32.mrb[0].mxu0
    %v1074 = vadd.f32 0.0, %v1073
    %v1075 = vpop.f32.mrb[0].mxu0
    %1076 = vdwg.mxu0
    %v1077 = vmul.f32 %v1074, 0.5
    %v1078 = vtanh.pop %v1077
    %v1079 = vadd.f32 %v1078, 1.0
    %v1080 = vmul.f32 %v1079, 0.5
    %v1081 = vld [vmem:[%s10] sm:$0xff]
    %v1082 = vld [vmem:[%s10 + $0x8] sm:$0xff]
    %v1083 = vld [vmem:[%s10 + $0x10] sm:$0xff]
    %v1084 = vld [vmem:[%s10 + $0x18] sm:$0xff]
    %v1086 = vsel %vm609, %v1081, 0
    %v1089 = vsel %vm609, %v1082, 0
    %v1092 = vsel %vm609, %v1083, 0
    %v1095 = vsel %vm609, %v1084, 0
    %1097 = vmatprep.subr.mxu0 0.0
    %1098 = vmatpush1.msra.mxu0 %v1080
    %1099 = vmatprep.subr.mxu0 0.0
    %1100 = vmatpush1.msra.mxu0 0.0
    %1101 = vmatprep.subr.mxu0 0.0
    %1102 = vmatpush1.msra.mxu0 0.0
    %1103 = vmatprep.subr.mxu0 0.0
    %1104 = vmatpush1.msra.mxu0 0.0
    %1105 = vmatprep.subr.mxu0 0.0
    %1106 = vmatpush1.msra.mxu0 0.0
    %1107 = vmatprep.subr.mxu0 0.0
    %1108 = vmatpush1.msra.mxu0 0.0
    %1109 = vmatprep.subr.mxu0 0.0
    %1110 = vmatpush1.msra.mxu0 0.0
    %1111 = vmatprep.subr.mxu0 0.0
    %1112 = vmatpush1.msra.mxu0 0.0
    %1113 = vmatprep.subr.mxu0 0.0
    %1114 = vmatpush1.msra.mxu0 0.0
    %1115 = vmatprep.subr.mxu0 0.0
    %1116 = vmatpush1.msra.mxu0 0.0
    %1117 = vmatprep.subr.mxu0 0.0
    %1118 = vmatpush1.msra.mxu0 0.0
    %1119 = vmatprep.subr.mxu0 0.0
    %1120 = vmatpush1.msra.mxu0 0.0
    %1121 = vmatprep.subr.mxu0 0.0
    %1122 = vmatpush1.msra.mxu0 0.0
    %1123 = vmatprep.subr.mxu0 0.0
    %1124 = vmatpush1.msra.mxu0 0.0
    %1125 = vmatprep.subr.mxu0 0.0
    %1126 = vmatpush1.msra.mxu0 0.0
    %1127 = vmatprep.subr.mxu0 0.0
    %1128 = vmatpush1.msra.mxu0 0.0
    %1129 = vmatprep.subr.mxu0 0.0
    %1130 = vmatpush1.msra.mxu0 0.0
    %1131 = vmatprep.subr.mxu0 0.0
    %1132 = vmatpush1.msra.mxu0 0.0
    %1133 = vmatprep.subr.mxu0 0.0
    %1134 = vmatpush1.msra.mxu0 0.0
    %1135 = vmatprep.subr.mxu0 0.0
    %1136 = vmatpush1.msra.mxu0 0.0
    %1137 = vmatprep.subr.mxu0 0.0
    %1138 = vmatpush1.msra.mxu0 0.0
    %1139 = vmatprep.subr.mxu0 0.0
    %1140 = vmatpush1.msra.mxu0 0.0
    %1141 = vmatprep.subr.mxu0 0.0
    %1142 = vmatpush1.msra.mxu0 0.0
    %1143 = vmatprep.subr.mxu0 0.0
    %1144 = vmatpush1.msra.mxu0 0.0
    %1145 = vmatprep.subr.mxu0 0.0
    %1146 = vmatpush1.msra.mxu0 0.0
    %1147 = vmatprep.subr.mxu0 0.0
    %1148 = vmatpush1.msra.mxu0 0.0
    %1149 = vmatprep.subr.mxu0 0.0
    %1150 = vmatpush1.msra.mxu0 0.0
    %1151 = vmatprep.subr.mxu0 0.0
    %1152 = vmatpush1.msra.mxu0 0.0
    %1153 = vmatprep.subr.mxu0 0.0
    %1154 = vmatpush1.msra.mxu0 0.0
    %1155 = vmatprep.subr.mxu0 0.0
    %1156 = vmatpush1.msra.mxu0 0.0
    %1157 = vmatprep.subr.mxu0 0.0
    %1158 = vmatpush1.msra.mxu0 0.0
    %1159 = vmatprep.subr.mxu0 0.0
    %1160 = vmatpush1.msra.mxu0 0.0
    %1161 = vmatprep.mubr.f32.mxu0 0.0
    %1162 = vmatmul.mubr.f32.gmra.mrb[0].mxu0 %v1086
    %v1163 = vpop.f32.mrb[0].mxu0
    %v1164 = vadd.f32 0.0, %v1163
    %v1165 = vpop.f32.mrb[0].mxu0
    %1166 = vmatprep.mubr.f32.mxu0 0.0
    %1167 = vmatmul.mubr.f32.gmra.mrb[0].mxu0 %v1089
    %v1168 = vpop.f32.mrb[0].mxu0
    %v1169 = vadd.f32 0.0, %v1168
    %v1170 = vpop.f32.mrb[0].mxu0
    %1171 = vmatprep.mubr.f32.mxu0 0.0
    %1172 = vmatmul.mubr.f32.gmra.mrb[0].mxu0 %v1092
    %v1173 = vpop.f32.mrb[0].mxu0
    %v1174 = vadd.f32 0.0, %v1173
    %v1175 = vpop.f32.mrb[0].mxu0
    %1176 = vmatprep.mubr.f32.mxu0 0.0
    %1177 = vmatmul.mubr.f32.gmra.mrb[0].mxu0 %v1095
    %v1178 = vpop.f32.mrb[0].mxu0
    %v1179 = vadd.f32 0.0, %v1178
    %v1180 = vpop.f32.mrb[0].mxu0
    %1181 = vdwg.mxu0
    %v1182 = vmul.f32 %v1164, %v491
    %v1183 = vmul.f32 %v1169, %v492
    %v1184 = vmul.f32 %v1174, %v493
    %v1185 = vmul.f32 %v1179, %v494
    %v1186 = vsel %vm609, %v1182, 0.0
    %1187 = vadd.xlane.f32.xlu0 %v1186
    %v1188 = vpop.xlane.xlu0 %1187
    %v1189 = vsel %vm609, %v1183, 0.0
    %1190 = vadd.xlane.f32.xlu0 %v1189
    %v1191 = vpop.xlane.xlu0 %1190
    %v1192 = vsel %vm609, %v1184, 0.0
    %1193 = vadd.xlane.f32.xlu0 %v1192
    %v1194 = vpop.xlane.xlu0 %1193
    %v1195 = vsel %vm609, %v1185, 0.0
    %1196 = vadd.xlane.f32.xlu0 %v1195
    %v1197 = vpop.xlane.xlu0 %1196
    %v1198 = vlaneseq
    %v1199 = vshrl.u32 %v1198, 7
    %v1200 = vsub.s32 2, %v1199
    %v1201 = vrot.slane %v141, %v1200
    %v1202 = vmul.f32 %v1188, %v1201
    %v1203 = vmul.f32 %v1191, %v1201
    %v1204 = vmul.f32 %v1194, %v1201
    %v1205 = vmul.f32 %v1197, %v1201
    %v1206 = vlaneseq
    %v1207 = vshrl.u32 %v1206, 7
    %v1208 = vsub.s32 3, %v1207
    %v1209 = vrot.slane %v141, %v1208
    %v1210 = vadd.f32 %v1202, %v1209
    %v1211 = vadd.f32 %v1203, %v1209
    %v1212 = vadd.f32 %v1204, %v1209
    %v1213 = vadd.f32 %v1205, %v1209
    %v1214 = vmul.f32 %v1210, %v353
    %v1215 = vmul.f32 %v1211, %v358
    %v1216 = vmul.f32 %v1212, %v363
    %v1217 = vmul.f32 %v1213, %v368
    %v1218 = vadd.f32 %v1214, %v353
    %v1219 = vadd.f32 %v1215, %v358
    %v1220 = vadd.f32 %v1216, %v363
    %v1221 = vadd.f32 %v1217, %v368
    %v1222 = vld [vmem:[%s12] sm:$0xff]
    %v1223 = vld [vmem:[%s12 + $0x8] sm:$0xff]
    %v1224 = vld [vmem:[%s12 + $0x10] sm:$0xff]
    %v1225 = vld [vmem:[%s12 + $0x18] sm:$0xf]
    %v1227 = vsel %vm500, %v1222, 0
    %v1230 = vsel %vm500, %v1223, 0
    %v1233 = vsel %vm500, %v1224, 0
    %v1236 = vsel %vm500, %v1225, 0
    %1238 = vmatprep.subr.mxu0 0.0
    %1239 = vmatpush1.msra.mxu0 %v1218
    %1240 = vmatprep.subr.mxu0 0.0
    %1241 = vmatpush1.msra.mxu0 %v1219
    %1242 = vmatprep.subr.mxu0 0.0
    %1243 = vmatpush1.msra.mxu0 %v1220
    %1244 = vmatprep.subr.mxu0 0.0
    %1245 = vmatpush1.msra.mxu0 %v1221
    %1246 = vmatprep.subr.mxu0 0.0
    %1247 = vmatpush1.msra.mxu0 0.0
    %1248 = vmatprep.subr.mxu0 0.0
    %1249 = vmatpush1.msra.mxu0 0.0
    %1250 = vmatprep.subr.mxu0 0.0
    %1251 = vmatpush1.msra.mxu0 0.0
    %1252 = vmatprep.subr.mxu0 0.0
    %1253 = vmatpush1.msra.mxu0 0.0
    %1254 = vmatprep.subr.mxu0 0.0
    %1255 = vmatpush1.msra.mxu0 0.0
    %1256 = vmatprep.subr.mxu0 0.0
    %1257 = vmatpush1.msra.mxu0 0.0
    %1258 = vmatprep.subr.mxu0 0.0
    %1259 = vmatpush1.msra.mxu0 0.0
    %1260 = vmatprep.subr.mxu0 0.0
    %1261 = vmatpush1.msra.mxu0 0.0
    %1262 = vmatprep.subr.mxu0 0.0
    %1263 = vmatpush1.msra.mxu0 0.0
    %1264 = vmatprep.subr.mxu0 0.0
    %1265 = vmatpush1.msra.mxu0 0.0
    %1266 = vmatprep.subr.mxu0 0.0
    %1267 = vmatpush1.msra.mxu0 0.0
    %1268 = vmatprep.subr.mxu0 0.0
    %1269 = vmatpush1.msra.mxu0 0.0
    %1270 = vmatprep.subr.mxu0 0.0
    %1271 = vmatpush1.msra.mxu0 0.0
    %1272 = vmatprep.subr.mxu0 0.0
    %1273 = vmatpush1.msra.mxu0 0.0
    %1274 = vmatprep.subr.mxu0 0.0
    %1275 = vmatpush1.msra.mxu0 0.0
    %1276 = vmatprep.subr.mxu0 0.0
    %1277 = vmatpush1.msra.mxu0 0.0
    %1278 = vmatprep.subr.mxu0 0.0
    %1279 = vmatpush1.msra.mxu0 0.0
    %1280 = vmatprep.subr.mxu0 0.0
    %1281 = vmatpush1.msra.mxu0 0.0
    %1282 = vmatprep.subr.mxu0 0.0
    %1283 = vmatpush1.msra.mxu0 0.0
    %1284 = vmatprep.subr.mxu0 0.0
    %1285 = vmatpush1.msra.mxu0 0.0
    %1286 = vmatprep.subr.mxu0 0.0
    %1287 = vmatpush1.msra.mxu0 0.0
    %1288 = vmatprep.subr.mxu0 0.0
    %1289 = vmatpush1.msra.mxu0 0.0
    %1290 = vmatprep.subr.mxu0 0.0
    %1291 = vmatpush1.msra.mxu0 0.0
    %1292 = vmatprep.subr.mxu0 0.0
    %1293 = vmatpush1.msra.mxu0 0.0
    %1294 = vmatprep.subr.mxu0 0.0
    %1295 = vmatpush1.msra.mxu0 0.0
    %1296 = vmatprep.subr.mxu0 0.0
    %1297 = vmatpush1.msra.mxu0 0.0
    %1298 = vmatprep.subr.mxu0 0.0
    %1299 = vmatpush1.msra.mxu0 0.0
    %1300 = vmatprep.subr.mxu0 0.0
    %1301 = vmatpush1.msra.mxu0 0.0
    %1302 = vmatprep.mubr.f32.mxu0 0.0
    %1303 = vmatmul.mubr.f32.gmra.mrb[0].mxu0 %v1227
    %v1304 = vpop.f32.mrb[0].mxu0
    %v1305 = vadd.f32 0.0, %v1304
    %v1306 = vpop.f32.mrb[0].mxu0
    %1307 = vmatprep.mubr.f32.mxu0 0.0
    %1308 = vmatmul.mubr.f32.gmra.mrb[0].mxu0 %v1230
    %v1309 = vpop.f32.mrb[0].mxu0
    %v1310 = vadd.f32 0.0, %v1309
    %v1311 = vpop.f32.mrb[0].mxu0
    %1312 = vmatprep.mubr.f32.mxu0 0.0
    %1313 = vmatmul.mubr.f32.gmra.mrb[0].mxu0 %v1233
    %v1314 = vpop.f32.mrb[0].mxu0
    %v1315 = vadd.f32 0.0, %v1314
    %v1316 = vpop.f32.mrb[0].mxu0
    %1317 = vmatprep.mubr.f32.mxu0 0.0
    %1318 = vmatmul.mubr.f32.gmra.mrb[0].mxu0 %v1236
    %v1319 = vpop.f32.mrb[0].mxu0
    %v1320 = vadd.f32 0.0, %v1319
    %v1321 = vpop.f32.mrb[0].mxu0
    %1322 = vdwg.mxu0
    %1323 = vst.msk [vmem:[#allocation14] sm:$0xff] %vm152, %v1305
    %1324 = vst.msk [vmem:[#allocation14 + $0x8] sm:$0xff] %vm152, %v1310
    %1325 = vst.msk [vmem:[#allocation14 + $0x10] sm:$0xff] %vm152, %v1315
    %vm1326 = vcmask 125952
    %1327 = vst.msk [vmem:[#allocation14 + $0x18] sm:$0xf] %vm1326, %v1320
    %s1328 = scalar_lea.vmem %s11, 64
    %v1329 = vld [vmem:[%s1328] sm:$0xff]
    %v1330 = vld [vmem:[%s1328 + $0x8] sm:$0xff]
    %v1331 = vld [vmem:[%s1328 + $0x10] sm:$0xff]
    %v1332 = vld [vmem:[%s1328 + $0x18] sm:$0xff]
    %1336 = vrot.lane.b32.xlu0 %v258, 112
    %v1337 = vpop.permute.xlu0 %1336
    %1338 = vrot.lane.b32.xlu0 %v259, 112
    %v1339 = vpop.permute.xlu0 %1338
    %1340 = vrot.lane.b32.xlu0 %v260, 112
    %v1341 = vpop.permute.xlu0 %1340
    %1342 = vrot.lane.b32.xlu0 %v261, 112
    %v1343 = vpop.permute.xlu0 %1342
    %v1348 = vsel %vm269, %v1329, 0
    %v1351 = vsel %vm269, %v1330, 0
    %v1354 = vsel %vm269, %v1331, 0
    %v1357 = vsel %vm269, %v1332, 0
    %v1359 = vsel %vm282, %v1343, 0
    %1361 = vmatprep.subr.mxu0 0.0
    %1362 = vmatpush1.msra.mxu0 %v1337
    %1363 = vmatprep.subr.mxu0 0.0
    %1364 = vmatpush1.msra.mxu0 %v1339
    %1365 = vmatprep.subr.mxu0 0.0
    %1366 = vmatpush1.msra.mxu0 %v1341
    %1367 = vmatprep.subr.mxu0 0.0
    %1368 = vmatpush1.msra.mxu0 %v1359
    %1369 = vmatprep.subr.mxu0 0.0
    %1370 = vmatpush1.msra.mxu0 0.0
    %1371 = vmatprep.subr.mxu0 0.0
    %1372 = vmatpush1.msra.mxu0 0.0
    %1373 = vmatprep.subr.mxu0 0.0
    %1374 = vmatpush1.msra.mxu0 0.0
    %1375 = vmatprep.subr.mxu0 0.0
    %1376 = vmatpush1.msra.mxu0 0.0
    %1377 = vmatprep.subr.mxu0 0.0
    %1378 = vmatpush1.msra.mxu0 0.0
    %1379 = vmatprep.subr.mxu0 0.0
    %1380 = vmatpush1.msra.mxu0 0.0
    %1381 = vmatprep.subr.mxu0 0.0
    %1382 = vmatpush1.msra.mxu0 0.0
    %1383 = vmatprep.subr.mxu0 0.0
    %1384 = vmatpush1.msra.mxu0 0.0
    %1385 = vmatprep.subr.mxu0 0.0
    %1386 = vmatpush1.msra.mxu0 0.0
    %1387 = vmatprep.subr.mxu0 0.0
    %1388 = vmatpush1.msra.mxu0 0.0
    %1389 = vmatprep.subr.mxu0 0.0
    %1390 = vmatpush1.msra.mxu0 0.0
    %1391 = vmatprep.subr.mxu0 0.0
    %1392 = vmatpush1.msra.mxu0 0.0
    %1393 = vmatprep.subr.mxu0 0.0
    %1394 = vmatpush1.msra.mxu0 0.0
    %1395 = vmatprep.subr.mxu0 0.0
    %1396 = vmatpush1.msra.mxu0 0.0
    %1397 = vmatprep.subr.mxu0 0.0
    %1398 = vmatpush1.msra.mxu0 0.0
    %1399 = vmatprep.subr.mxu0 0.0
    %1400 = vmatpush1.msra.mxu0 0.0
    %1401 = vmatprep.subr.mxu0 0.0
    %1402 = vmatpush1.msra.mxu0 0.0
    %1403 = vmatprep.subr.mxu0 0.0
    %1404 = vmatpush1.msra.mxu0 0.0
    %1405 = vmatprep.subr.mxu0 0.0
    %1406 = vmatpush1.msra.mxu0 0.0
    %1407 = vmatprep.subr.mxu0 0.0
    %1408 = vmatpush1.msra.mxu0 0.0
    %1409 = vmatprep.subr.mxu0 0.0
    %1410 = vmatpush1.msra.mxu0 0.0
    %1411 = vmatprep.subr.mxu0 0.0
    %1412 = vmatpush1.msra.mxu0 0.0
    %1413 = vmatprep.subr.mxu0 0.0
    %1414 = vmatpush1.msra.mxu0 0.0
    %1415 = vmatprep.subr.mxu0 0.0
    %1416 = vmatpush1.msra.mxu0 0.0
    %1417 = vmatprep.subr.mxu0 0.0
    %1418 = vmatpush1.msra.mxu0 0.0
    %1419 = vmatprep.subr.mxu0 0.0
    %1420 = vmatpush1.msra.mxu0 0.0
    %1421 = vmatprep.subr.mxu0 0.0
    %1422 = vmatpush1.msra.mxu0 0.0
    %1423 = vmatprep.subr.mxu0 0.0
    %1424 = vmatpush1.msra.mxu0 0.0
    %1425 = vmatprep.mubr.f32.mxu0 0.0
    %1426 = vmatmul.mubr.f32.gmra.mrb[0].mxu0 %v1348
    %v1427 = vpop.f32.mrb[0].mxu0
    %v1428 = vadd.f32 0.0, %v1427
    %v1429 = vpop.f32.mrb[0].mxu0
    %1430 = vmatprep.mubr.f32.mxu0 0.0
    %1431 = vmatmul.mubr.f32.gmra.mrb[0].mxu0 %v1351
    %v1432 = vpop.f32.mrb[0].mxu0
    %v1433 = vadd.f32 0.0, %v1432
    %v1434 = vpop.f32.mrb[0].mxu0
    %1435 = vmatprep.mubr.f32.mxu0 0.0
    %1436 = vmatmul.mubr.f32.gmra.mrb[0].mxu0 %v1354
    %v1437 = vpop.f32.mrb[0].mxu0
    %v1438 = vadd.f32 0.0, %v1437
    %v1439 = vpop.f32.mrb[0].mxu0
    %1440 = vmatprep.mubr.f32.mxu0 0.0
    %1441 = vmatmul.mubr.f32.gmra.mrb[0].mxu0 %v1357
    %v1442 = vpop.f32.mrb[0].mxu0
    %v1443 = vadd.f32 0.0, %v1442
    %v1444 = vpop.f32.mrb[0].mxu0
    %1445 = vdwg.mxu0
    %s1446 = scalar_lea.vmem %s11, 96
    %v1447 = vld [vmem:[%s1446] sm:$0xff]
    %v1448 = vld [vmem:[%s1446 + $0x8] sm:$0xff]
    %v1449 = vld [vmem:[%s1446 + $0x10] sm:$0xff]
    %v1450 = vld [vmem:[%s1446 + $0x18] sm:$0xff]
    %v1452 = vsel %vm269, %v1447, 0
    %v1455 = vsel %vm269, %v1448, 0
    %v1458 = vsel %vm269, %v1449, 0
    %v1461 = vsel %vm269, %v1450, 0
    %1463 = vmatprep.subr.mxu0 0.0
    %1464 = vmatpush1.msra.mxu0 %v1337
    %1465 = vmatprep.subr.mxu0 0.0
    %1466 = vmatpush1.msra.mxu0 %v1339
    %1467 = vmatprep.subr.mxu0 0.0
    %1468 = vmatpush1.msra.mxu0 %v1341
    %1469 = vmatprep.subr.mxu0 0.0
    %1470 = vmatpush1.msra.mxu0 %v1359
    %1471 = vmatprep.subr.mxu0 0.0
    %1472 = vmatpush1.msra.mxu0 0.0
    %1473 = vmatprep.subr.mxu0 0.0
    %1474 = vmatpush1.msra.mxu0 0.0
    %1475 = vmatprep.subr.mxu0 0.0
    %1476 = vmatpush1.msra.mxu0 0.0
    %1477 = vmatprep.subr.mxu0 0.0
    %1478 = vmatpush1.msra.mxu0 0.0
    %1479 = vmatprep.subr.mxu0 0.0
    %1480 = vmatpush1.msra.mxu0 0.0
    %1481 = vmatprep.subr.mxu0 0.0
    %1482 = vmatpush1.msra.mxu0 0.0
    %1483 = vmatprep.subr.mxu0 0.0
    %1484 = vmatpush1.msra.mxu0 0.0
    %1485 = vmatprep.subr.mxu0 0.0
    %1486 = vmatpush1.msra.mxu0 0.0
    %1487 = vmatprep.subr.mxu0 0.0
    %1488 = vmatpush1.msra.mxu0 0.0
    %1489 = vmatprep.subr.mxu0 0.0
    %1490 = vmatpush1.msra.mxu0 0.0
    %1491 = vmatprep.subr.mxu0 0.0
    %1492 = vmatpush1.msra.mxu0 0.0
    %1493 = vmatprep.subr.mxu0 0.0
    %1494 = vmatpush1.msra.mxu0 0.0
    %1495 = vmatprep.subr.mxu0 0.0
    %1496 = vmatpush1.msra.mxu0 0.0
    %1497 = vmatprep.subr.mxu0 0.0
    %1498 = vmatpush1.msra.mxu0 0.0
    %1499 = vmatprep.subr.mxu0 0.0
    %1500 = vmatpush1.msra.mxu0 0.0
    %1501 = vmatprep.subr.mxu0 0.0
    %1502 = vmatpush1.msra.mxu0 0.0
    %1503 = vmatprep.subr.mxu0 0.0
    %1504 = vmatpush1.msra.mxu0 0.0
    %1505 = vmatprep.subr.mxu0 0.0
    %1506 = vmatpush1.msra.mxu0 0.0
    %1507 = vmatprep.subr.mxu0 0.0
    %1508 = vmatpush1.msra.mxu0 0.0
    %1509 = vmatprep.subr.mxu0 0.0
    %1510 = vmatpush1.msra.mxu0 0.0
    %1511 = vmatprep.subr.mxu0 0.0
    %1512 = vmatpush1.msra.mxu0 0.0
    %1513 = vmatprep.subr.mxu0 0.0
    %1514 = vmatpush1.msra.mxu0 0.0
    %1515 = vmatprep.subr.mxu0 0.0
    %1516 = vmatpush1.msra.mxu0 0.0
    %1517 = vmatprep.subr.mxu0 0.0
    %1518 = vmatpush1.msra.mxu0 0.0
    %1519 = vmatprep.subr.mxu0 0.0
    %1520 = vmatpush1.msra.mxu0 0.0
    %1521 = vmatprep.subr.mxu0 0.0
    %1522 = vmatpush1.msra.mxu0 0.0
    %1523 = vmatprep.subr.mxu0 0.0
    %1524 = vmatpush1.msra.mxu0 0.0
    %1525 = vmatprep.subr.mxu0 0.0
    %1526 = vmatpush1.msra.mxu0 0.0
    %1527 = vmatprep.mubr.f32.mxu0 0.0
    %1528 = vmatmul.mubr.f32.gmra.mrb[0].mxu0 %v1452
    %v1529 = vpop.f32.mrb[0].mxu0
    %v1530 = vadd.f32 0.0, %v1529
    %v1531 = vpop.f32.mrb[0].mxu0
    %1532 = vmatprep.mubr.f32.mxu0 0.0
    %1533 = vmatmul.mubr.f32.gmra.mrb[0].mxu0 %v1455
    %v1534 = vpop.f32.mrb[0].mxu0
    %v1535 = vadd.f32 0.0, %v1534
    %v1536 = vpop.f32.mrb[0].mxu0
    %1537 = vmatprep.mubr.f32.mxu0 0.0
    %1538 = vmatmul.mubr.f32.gmra.mrb[0].mxu0 %v1458
    %v1539 = vpop.f32.mrb[0].mxu0
    %v1540 = vadd.f32 0.0, %v1539
    %v1541 = vpop.f32.mrb[0].mxu0
    %1542 = vmatprep.mubr.f32.mxu0 0.0
    %1543 = vmatmul.mubr.f32.gmra.mrb[0].mxu0 %v1461
    %v1544 = vpop.f32.mrb[0].mxu0
    %v1545 = vadd.f32 0.0, %v1544
    %v1546 = vpop.f32.mrb[0].mxu0
    %1547 = vdwg.mxu0
    %v1548 = vsel %vm152, %v1530, 0.0
    %1549 = vadd.xlane.f32.xlu0 %v1548
    %v1550 = vpop.xlane.xlu0 %1549
    %v1551 = vsel %vm152, %v1535, 0.0
    %1552 = vadd.xlane.f32.xlu0 %v1551
    %v1553 = vpop.xlane.xlu0 %1552
    %v1554 = vsel %vm152, %v1540, 0.0
    %1555 = vadd.xlane.f32.xlu0 %v1554
    %v1556 = vpop.xlane.xlu0 %1555
    %v1557 = vsel %vm152, %v1545, 0.0
    %1558 = vadd.xlane.f32.xlu0 %v1557
    %v1559 = vpop.xlane.xlu0 %1558
    %v1560 = vmul.f32 %v1550, %v485
    %v1561 = vmul.f32 %v1553, %v485
    %v1562 = vmul.f32 %v1556, %v485
    %v1563 = vmul.f32 %v1559, %v485
    %s1564 = scalar_lea.vmem %s10, 96
    %v1565 = vld [vmem:[%s1564] sm:$0xff]
    %v1566 = vld [vmem:[%s1564 + $0x8] sm:$0xff]
    %v1567 = vld [vmem:[%s1564 + $0x10] sm:$0xff]
    %v1568 = vld [vmem:[%s1564 + $0x18] sm:$0xff]
    %s1569 = scalar_lea.vmem [#allocation11], 8
    %v1570 = vld [vmem:[%s1569] sm:$0xff]
    %v1571 = vmul.f32 %v1565, %v1560
    %v1572 = vmul.f32 %v1566, %v1561
    %v1573 = vmul.f32 %v1567, %v1562
    %v1574 = vmul.f32 %v1568, %v1563
    %v1576 = vsel %vm500, %v1570, 0
    %1578 = vmatprep.subr.mxu0 0.0
    %1579 = vmatpush1.msra.mxu0 %v1571
    %1580 = vmatprep.subr.mxu0 0.0
    %1581 = vmatpush1.msra.mxu0 %v1572
    %1582 = vmatprep.subr.mxu0 0.0
    %1583 = vmatpush1.msra.mxu0 %v1573
    %1584 = vmatprep.subr.mxu0 0.0
    %1585 = vmatpush1.msra.mxu0 %v1574
    %1586 = vmatprep.subr.mxu0 0.0
    %1587 = vmatpush1.msra.mxu0 0.0
    %1588 = vmatprep.subr.mxu0 0.0
    %1589 = vmatpush1.msra.mxu0 0.0
    %1590 = vmatprep.subr.mxu0 0.0
    %1591 = vmatpush1.msra.mxu0 0.0
    %1592 = vmatprep.subr.mxu0 0.0
    %1593 = vmatpush1.msra.mxu0 0.0
    %1594 = vmatprep.subr.mxu0 0.0
    %1595 = vmatpush1.msra.mxu0 0.0
    %1596 = vmatprep.subr.mxu0 0.0
    %1597 = vmatpush1.msra.mxu0 0.0
    %1598 = vmatprep.subr.mxu0 0.0
    %1599 = vmatpush1.msra.mxu0 0.0
    %1600 = vmatprep.subr.mxu0 0.0
    %1601 = vmatpush1.msra.mxu0 0.0
    %1602 = vmatprep.subr.mxu0 0.0
    %1603 = vmatpush1.msra.mxu0 0.0
    %1604 = vmatprep.subr.mxu0 0.0
    %1605 = vmatpush1.msra.mxu0 0.0
    %1606 = vmatprep.subr.mxu0 0.0
    %1607 = vmatpush1.msra.mxu0 0.0
    %1608 = vmatprep.subr.mxu0 0.0
    %1609 = vmatpush1.msra.mxu0 0.0
    %1610 = vmatprep.subr.mxu0 0.0
    %1611 = vmatpush1.msra.mxu0 0.0
    %1612 = vmatprep.subr.mxu0 0.0
    %1613 = vmatpush1.msra.mxu0 0.0
    %1614 = vmatprep.subr.mxu0 0.0
    %1615 = vmatpush1.msra.mxu0 0.0
    %1616 = vmatprep.subr.mxu0 0.0
    %1617 = vmatpush1.msra.mxu0 0.0
    %1618 = vmatprep.subr.mxu0 0.0
    %1619 = vmatpush1.msra.mxu0 0.0
    %1620 = vmatprep.subr.mxu0 0.0
    %1621 = vmatpush1.msra.mxu0 0.0
    %1622 = vmatprep.subr.mxu0 0.0
    %1623 = vmatpush1.msra.mxu0 0.0
    %1624 = vmatprep.subr.mxu0 0.0
    %1625 = vmatpush1.msra.mxu0 0.0
    %1626 = vmatprep.subr.mxu0 0.0
    %1627 = vmatpush1.msra.mxu0 0.0
    %1628 = vmatprep.subr.mxu0 0.0
    %1629 = vmatpush1.msra.mxu0 0.0
    %1630 = vmatprep.subr.mxu0 0.0
    %1631 = vmatpush1.msra.mxu0 0.0
    %1632 = vmatprep.subr.mxu0 0.0
    %1633 = vmatpush1.msra.mxu0 0.0
    %1634 = vmatprep.subr.mxu0 0.0
    %1635 = vmatpush1.msra.mxu0 0.0
    %1636 = vmatprep.subr.mxu0 0.0
    %1637 = vmatpush1.msra.mxu0 0.0
    %1638 = vmatprep.subr.mxu0 0.0
    %1639 = vmatpush1.msra.mxu0 0.0
    %1640 = vmatprep.subr.mxu0 0.0
    %1641 = vmatpush1.msra.mxu0 0.0
    %1642 = vmatprep.mubr.f32.mxu0 0.0
    %1643 = vmatmul.mubr.f32.gmra.mrb[0].mxu0 %v1576
    %v1644 = vpop.f32.mrb[0].mxu0
    %v1645 = vadd.f32 0.0, %v1644
    %v1646 = vpop.f32.mrb[0].mxu0
    %1647 = vdwg.mxu0
    %1648 = vxpose.xlu0.b32.start [1/16] %v1645, 128
    %1649 = vxpose.xlu0.b32.cont [2/16] 0.0, 128
    %1650 = vxpose.xlu0.b32.cont [3/16] 0.0, 128
    %1651 = vxpose.xlu0.b32.cont [4/16] 0.0, 128
    %1652 = vxpose.xlu0.b32.cont [5/16] 0.0, 128
    %1653 = vxpose.xlu0.b32.cont [6/16] 0.0, 128
    %1654 = vxpose.xlu0.b32.cont [7/16] 0.0, 128
    %1655 = vxpose.xlu0.b32.cont [8/16] 0.0, 128
    %1656 = vxpose.xlu0.b32.cont [9/16] 0.0, 128
    %1657 = vxpose.xlu0.b32.cont [10/16] 0.0, 128
    %1658 = vxpose.xlu0.b32.cont [11/16] 0.0, 128
    %1659 = vxpose.xlu0.b32.cont [12/16] 0.0, 128
    %1660 = vxpose.xlu0.b32.cont [13/16] 0.0, 128
    %1661 = vxpose.xlu0.b32.cont [14/16] 0.0, 128
    %1662 = vxpose.xlu0.b32.cont [15/16] 0.0, 128
    %1663 = vxpose.xlu0.b32.end [16/16] 0.0, 128
    %v1664 = vpop.trf.xlu0
    %v1665 = vpop.trf.xlu0
    %v1666 = vpop.trf.xlu0
    %v1667 = vpop.trf.xlu0
    %v1668 = vpop.trf.xlu0
    %v1669 = vpop.trf.xlu0
    %v1670 = vpop.trf.xlu0
    %v1671 = vpop.trf.xlu0
    %v1672 = vpop.trf.xlu0
    %v1673 = vpop.trf.xlu0
    %v1674 = vpop.trf.xlu0
    %v1675 = vpop.trf.xlu0
    %v1676 = vpop.trf.xlu0
    %v1677 = vpop.trf.xlu0
    %v1678 = vpop.trf.xlu0
    %v1679 = vpop.trf.xlu0
    %v1680 = vadd.f32 %v1645, %v1664
    %s1681 = scalar_lea.vmem [#allocation13], 8
    %v1682 = vld [vmem:[%s1681] sm:$0xff]
    %v1683 = vadd.f32 %v1680, %v1682
    %v1684 = vsel %vm609, %v1683, 0.0
    %1685 = vadd.xlane.f32.xlu0 %v1684
    %v1686 = vpop.xlane.xlu0 %1685
    %v1687 = vrot.slane %v1684, 4
    %v1688 = vadd.f32 %v1684, %v1687
    %v1689 = vrot.slane %v1688, 2
    %v1690 = vadd.f32 %v1688, %v1689
    %v1691 = vrot.slane %v1690, 1
    %v1692 = vadd.f32 %v1690, %v1691
    %vm1693 = vcmp.gt.f32.partialorder %v1686, 0.0
    %v1694 = vrsqrt.pop %v1686
    %v1695 = vsel %vm1693, %v1694, 0.0
    %vm1696 = vcmp.gt.f32.partialorder %v1692, 0.0
    %v1697 = vrsqrt.pop %v1692
    %v1698 = vsel %vm1696, %v1697, 0.0
    %v1699 = vmul.f32 %v1695, %v1683
    %v1700 = vmul.f32 %v1699, %v1698
    %s1701 = scalar_lea.vmem [#allocation8], 8
    %v1702 = vld [vmem:[%s1701] sm:$0xff]
    %v1704 = vsel %vm609, %v1702, 0
    %1706 = vmatprep.subr.mxu0 0.0
    %1707 = vmatpush1.msra.mxu0 %v262
    %1708 = vmatprep.subr.mxu0 0.0
    %1709 = vmatpush1.msra.mxu0 0.0
    %1710 = vmatprep.subr.mxu0 0.0
    %1711 = vmatpush1.msra.mxu0 0.0
    %1712 = vmatprep.subr.mxu0 0.0
    %1713 = vmatpush1.msra.mxu0 0.0
    %1714 = vmatprep.subr.mxu0 0.0
    %1715 = vmatpush1.msra.mxu0 0.0
    %1716 = vmatprep.subr.mxu0 0.0
    %1717 = vmatpush1.msra.mxu0 0.0
    %1718 = vmatprep.subr.mxu0 0.0
    %1719 = vmatpush1.msra.mxu0 0.0
    %1720 = vmatprep.subr.mxu0 0.0
    %1721 = vmatpush1.msra.mxu0 0.0
    %1722 = vmatprep.subr.mxu0 0.0
    %1723 = vmatpush1.msra.mxu0 0.0
    %1724 = vmatprep.subr.mxu0 0.0
    %1725 = vmatpush1.msra.mxu0 0.0
    %1726 = vmatprep.subr.mxu0 0.0
    %1727 = vmatpush1.msra.mxu0 0.0
    %1728 = vmatprep.subr.mxu0 0.0
    %1729 = vmatpush1.msra.mxu0 0.0
    %1730 = vmatprep.subr.mxu0 0.0
    %1731 = vmatpush1.msra.mxu0 0.0
    %1732 = vmatprep.subr.mxu0 0.0
    %1733 = vmatpush1.msra.mxu0 0.0
    %1734 = vmatprep.subr.mxu0 0.0
    %1735 = vmatpush1.msra.mxu0 0.0
    %1736 = vmatprep.subr.mxu0 0.0
    %1737 = vmatpush1.msra.mxu0 0.0
    %1738 = vmatprep.subr.mxu0 0.0
    %1739 = vmatpush1.msra.mxu0 0.0
    %1740 = vmatprep.subr.mxu0 0.0
    %1741 = vmatpush1.msra.mxu0 0.0
    %1742 = vmatprep.subr.mxu0 0.0
    %1743 = vmatpush1.msra.mxu0 0.0
    %1744 = vmatprep.subr.mxu0 0.0
    %1745 = vmatpush1.msra.mxu0 0.0
    %1746 = vmatprep.subr.mxu0 0.0
    %1747 = vmatpush1.msra.mxu0 0.0
    %1748 = vmatprep.subr.mxu0 0.0
    %1749 = vmatpush1.msra.mxu0 0.0
    %1750 = vmatprep.subr.mxu0 0.0
    %1751 = vmatpush1.msra.mxu0 0.0
    %1752 = vmatprep.subr.mxu0 0.0
    %1753 = vmatpush1.msra.mxu0 0.0
    %1754 = vmatprep.subr.mxu0 0.0
    %1755 = vmatpush1.msra.mxu0 0.0
    %1756 = vmatprep.subr.mxu0 0.0
    %1757 = vmatpush1.msra.mxu0 0.0
    %1758 = vmatprep.subr.mxu0 0.0
    %1759 = vmatpush1.msra.mxu0 0.0
    %1760 = vmatprep.subr.mxu0 0.0
    %1761 = vmatpush1.msra.mxu0 0.0
    %1762 = vmatprep.subr.mxu0 0.0
    %1763 = vmatpush1.msra.mxu0 0.0
    %1764 = vmatprep.subr.mxu0 0.0
    %1765 = vmatpush1.msra.mxu0 0.0
    %1766 = vmatprep.subr.mxu0 0.0
    %1767 = vmatpush1.msra.mxu0 0.0
    %1768 = vmatprep.subr.mxu0 0.0
    %1769 = vmatpush1.msra.mxu0 0.0
    %1770 = vmatprep.mubr.f32.mxu0 0.0
    %1771 = vmatmul.mubr.f32.gmra.mrb[0].mxu0 %v1704
    %v1772 = vpop.f32.mrb[0].mxu0
    %v1773 = vadd.f32 0.0, %v1772
    %v1774 = vpop.f32.mrb[0].mxu0
    %1775 = vdwg.mxu0
    %s1776 = scalar_lea.vmem [#allocation10], 8
    %v1777 = vld [vmem:[%s1776] sm:$0xff]
    %v1779 = vsel %vm152, %v1777, 0
    %1781 = vmatprep.subr.mxu0 0.0
    %1782 = vmatpush1.msra.mxu0 %v263
    %1783 = vmatprep.subr.mxu0 0.0
    %1784 = vmatpush1.msra.mxu0 %v264
    %1785 = vmatprep.subr.mxu0 0.0
    %1786 = vmatpush1.msra.mxu0 0.0
    %1787 = vmatprep.subr.mxu0 0.0
    %1788 = vmatpush1.msra.mxu0 0.0
    %1789 = vmatprep.subr.mxu0 0.0
    %1790 = vmatpush1.msra.mxu0 0.0
    %1791 = vmatprep.subr.mxu0 0.0
    %1792 = vmatpush1.msra.mxu0 0.0
    %1793 = vmatprep.subr.mxu0 0.0
    %1794 = vmatpush1.msra.mxu0 0.0
    %1795 = vmatprep.subr.mxu0 0.0
    %1796 = vmatpush1.msra.mxu0 0.0
    %1797 = vmatprep.subr.mxu0 0.0
    %1798 = vmatpush1.msra.mxu0 0.0
    %1799 = vmatprep.subr.mxu0 0.0
    %1800 = vmatpush1.msra.mxu0 0.0
    %1801 = vmatprep.subr.mxu0 0.0
    %1802 = vmatpush1.msra.mxu0 0.0
    %1803 = vmatprep.subr.mxu0 0.0
    %1804 = vmatpush1.msra.mxu0 0.0
    %1805 = vmatprep.subr.mxu0 0.0
    %1806 = vmatpush1.msra.mxu0 0.0
    %1807 = vmatprep.subr.mxu0 0.0
    %1808 = vmatpush1.msra.mxu0 0.0
    %1809 = vmatprep.subr.mxu0 0.0
    %1810 = vmatpush1.msra.mxu0 0.0
    %1811 = vmatprep.subr.mxu0 0.0
    %1812 = vmatpush1.msra.mxu0 0.0
    %1813 = vmatprep.subr.mxu0 0.0
    %1814 = vmatpush1.msra.mxu0 0.0
    %1815 = vmatprep.subr.mxu0 0.0
    %1816 = vmatpush1.msra.mxu0 0.0
    %1817 = vmatprep.subr.mxu0 0.0
    %1818 = vmatpush1.msra.mxu0 0.0
    %1819 = vmatprep.subr.mxu0 0.0
    %1820 = vmatpush1.msra.mxu0 0.0
    %1821 = vmatprep.subr.mxu0 0.0
    %1822 = vmatpush1.msra.mxu0 0.0
    %1823 = vmatprep.subr.mxu0 0.0
    %1824 = vmatpush1.msra.mxu0 0.0
    %1825 = vmatprep.subr.mxu0 0.0
    %1826 = vmatpush1.msra.mxu0 0.0
    %1827 = vmatprep.subr.mxu0 0.0
    %1828 = vmatpush1.msra.mxu0 0.0
    %1829 = vmatprep.subr.mxu0 0.0
    %1830 = vmatpush1.msra.mxu0 0.0
    %1831 = vmatprep.subr.mxu0 0.0
    %1832 = vmatpush1.msra.mxu0 0.0
    %1833 = vmatprep.subr.mxu0 0.0
    %1834 = vmatpush1.msra.mxu0 0.0
    %1835 = vmatprep.subr.mxu0 0.0
    %1836 = vmatpush1.msra.mxu0 0.0
    %1837 = vmatprep.subr.mxu0 0.0
    %1838 = vmatpush1.msra.mxu0 0.0
    %1839 = vmatprep.subr.mxu0 0.0
    %1840 = vmatpush1.msra.mxu0 0.0
    %1841 = vmatprep.subr.mxu0 0.0
    %1842 = vmatpush1.msra.mxu0 0.0
    %1843 = vmatprep.subr.mxu0 0.0
    %1844 = vmatpush1.msra.mxu0 0.0
    %1845 = vmatprep.mubr.f32.mxu0 0.0
    %1846 = vmatmul.mubr.f32.gmra.mrb[0].mxu0 %v1779
    %v1847 = vpop.f32.mrb[0].mxu0
    %v1848 = vadd.f32 0.0, %v1847
    %v1849 = vpop.f32.mrb[0].mxu0
    %1850 = vdwg.mxu0
    %s1851 = scalar_lea.vmem %s4, 16
    %v1852 = vld [vmem:[%s1851] sm:$0xff]
    %v1853 = vld [vmem:[%s1851 + $0x8] sm:$0xff]
    %s1854 = scalar_lea.vmem [#allocation5], 8
    %v1855 = vld [vmem:[%s1854] sm:$0xff]
    %v1857 = vsel %vm609, %v1848, 0
    %1859 = vmatprep.subr.mxu0 0.0
    %1860 = vmatpush1.msra.mxu0 %v1855
    %1861 = vmatprep.subr.mxu0 0.0
    %1862 = vmatpush1.msra.mxu0 0.0
    %1863 = vmatprep.subr.mxu0 0.0
    %1864 = vmatpush1.msra.mxu0 0.0
    %1865 = vmatprep.subr.mxu0 0.0
    %1866 = vmatpush1.msra.mxu0 0.0
    %1867 = vmatprep.subr.mxu0 0.0
    %1868 = vmatpush1.msra.mxu0 0.0
    %1869 = vmatprep.subr.mxu0 0.0
    %1870 = vmatpush1.msra.mxu0 0.0
    %1871 = vmatprep.subr.mxu0 0.0
    %1872 = vmatpush1.msra.mxu0 0.0
    %1873 = vmatprep.subr.mxu0 0.0
    %1874 = vmatpush1.msra.mxu0 0.0
    %1875 = vmatprep.subr.mxu0 0.0
    %1876 = vmatpush1.msra.mxu0 0.0
    %1877 = vmatprep.subr.mxu0 0.0
    %1878 = vmatpush1.msra.mxu0 0.0
    %1879 = vmatprep.subr.mxu0 0.0
    %1880 = vmatpush1.msra.mxu0 0.0
    %1881 = vmatprep.subr.mxu0 0.0
    %1882 = vmatpush1.msra.mxu0 0.0
    %1883 = vmatprep.subr.mxu0 0.0
    %1884 = vmatpush1.msra.mxu0 0.0
    %1885 = vmatprep.subr.mxu0 0.0
    %1886 = vmatpush1.msra.mxu0 0.0
    %1887 = vmatprep.subr.mxu0 0.0
    %1888 = vmatpush1.msra.mxu0 0.0
    %1889 = vmatprep.subr.mxu0 0.0
    %1890 = vmatpush1.msra.mxu0 0.0
    %1891 = vmatprep.subr.mxu0 0.0
    %1892 = vmatpush1.msra.mxu0 0.0
    %1893 = vmatprep.subr.mxu0 0.0
    %1894 = vmatpush1.msra.mxu0 0.0
    %1895 = vmatprep.subr.mxu0 0.0
    %1896 = vmatpush1.msra.mxu0 0.0
    %1897 = vmatprep.subr.mxu0 0.0
    %1898 = vmatpush1.msra.mxu0 0.0
    %1899 = vmatprep.subr.mxu0 0.0
    %1900 = vmatpush1.msra.mxu0 0.0
    %1901 = vmatprep.subr.mxu0 0.0
    %1902 = vmatpush1.msra.mxu0 0.0
    %1903 = vmatprep.subr.mxu0 0.0
    %1904 = vmatpush1.msra.mxu0 0.0
    %1905 = vmatprep.subr.mxu0 0.0
    %1906 = vmatpush1.msra.mxu0 0.0
    %1907 = vmatprep.subr.mxu0 0.0
    %1908 = vmatpush1.msra.mxu0 0.0
    %1909 = vmatprep.subr.mxu0 0.0
    %1910 = vmatpush1.msra.mxu0 0.0
    %1911 = vmatprep.subr.mxu0 0.0
    %1912 = vmatpush1.msra.mxu0 0.0
    %1913 = vmatprep.subr.mxu0 0.0
    %1914 = vmatpush1.msra.mxu0 0.0
    %1915 = vmatprep.subr.mxu0 0.0
    %1916 = vmatpush1.msra.mxu0 0.0
    %1917 = vmatprep.subr.mxu0 0.0
    %1918 = vmatpush1.msra.mxu0 0.0
    %1919 = vmatprep.subr.mxu0 0.0
    %1920 = vmatpush1.msra.mxu0 0.0
    %1921 = vmatprep.subr.mxu0 0.0
    %1922 = vmatpush1.msra.mxu0 0.0
    %1923 = vmatprep.mubr.f32.mxu0 0.0
    %1924 = vmatmul.mubr.f32.gmra.mrb[0].mxu0 %v1857
    %v1925 = vpop.f32.mrb[0].mxu0
    %v1926 = vadd.f32 0.0, %v1925
    %v1927 = vpop.f32.mrb[0].mxu0
    %1928 = vdwg.mxu0
    %v1930 = vsel %vm152, %v1773, 0
    %1932 = vmatprep.subr.mxu0 0.0
    %1933 = vmatpush1.msra.mxu0 %v1852
    %1934 = vmatprep.subr.mxu0 0.0
    %1935 = vmatpush1.msra.mxu0 %v1853
    %1936 = vmatprep.subr.mxu0 0.0
    %1937 = vmatpush1.msra.mxu0 0.0
    %1938 = vmatprep.subr.mxu0 0.0
    %1939 = vmatpush1.msra.mxu0 0.0
    %1940 = vmatprep.subr.mxu0 0.0
    %1941 = vmatpush1.msra.mxu0 0.0
    %1942 = vmatprep.subr.mxu0 0.0
    %1943 = vmatpush1.msra.mxu0 0.0
    %1944 = vmatprep.subr.mxu0 0.0
    %1945 = vmatpush1.msra.mxu0 0.0
    %1946 = vmatprep.subr.mxu0 0.0
    %1947 = vmatpush1.msra.mxu0 0.0
    %1948 = vmatprep.subr.mxu0 0.0
    %1949 = vmatpush1.msra.mxu0 0.0
    %1950 = vmatprep.subr.mxu0 0.0
    %1951 = vmatpush1.msra.mxu0 0.0
    %1952 = vmatprep.subr.mxu0 0.0
    %1953 = vmatpush1.msra.mxu0 0.0
    %1954 = vmatprep.subr.mxu0 0.0
    %1955 = vmatpush1.msra.mxu0 0.0
    %1956 = vmatprep.subr.mxu0 0.0
    %1957 = vmatpush1.msra.mxu0 0.0
    %1958 = vmatprep.subr.mxu0 0.0
    %1959 = vmatpush1.msra.mxu0 0.0
    %1960 = vmatprep.subr.mxu0 0.0
    %1961 = vmatpush1.msra.mxu0 0.0
    %1962 = vmatprep.subr.mxu0 0.0
    %1963 = vmatpush1.msra.mxu0 0.0
    %1964 = vmatprep.subr.mxu0 0.0
    %1965 = vmatpush1.msra.mxu0 0.0
    %1966 = vmatprep.subr.mxu0 0.0
    %1967 = vmatpush1.msra.mxu0 0.0
    %1968 = vmatprep.subr.mxu0 0.0
    %1969 = vmatpush1.msra.mxu0 0.0
    %1970 = vmatprep.subr.mxu0 0.0
    %1971 = vmatpush1.msra.mxu0 0.0
    %1972 = vmatprep.subr.mxu0 0.0
    %1973 = vmatpush1.msra.mxu0 0.0
    %1974 = vmatprep.subr.mxu0 0.0
    %1975 = vmatpush1.msra.mxu0 0.0
    %1976 = vmatprep.subr.mxu0 0.0
    %1977 = vmatpush1.msra.mxu0 0.0
    %1978 = vmatprep.subr.mxu0 0.0
    %1979 = vmatpush1.msra.mxu0 0.0
    %1980 = vmatprep.subr.mxu0 0.0
    %1981 = vmatpush1.msra.mxu0 0.0
    %1982 = vmatprep.subr.mxu0 0.0
    %1983 = vmatpush1.msra.mxu0 0.0
    %1984 = vmatprep.subr.mxu0 0.0
    %1985 = vmatpush1.msra.mxu0 0.0
    %1986 = vmatprep.subr.mxu0 0.0
    %1987 = vmatpush1.msra.mxu0 0.0
    %1988 = vmatprep.subr.mxu0 0.0
    %1989 = vmatpush1.msra.mxu0 0.0
    %1990 = vmatprep.subr.mxu0 0.0
    %1991 = vmatpush1.msra.mxu0 0.0
    %1992 = vmatprep.subr.mxu0 0.0
    %1993 = vmatpush1.msra.mxu0 0.0
    %1994 = vmatprep.subr.mxu0 0.0
    %1995 = vmatpush1.msra.mxu0 0.0
    %1996 = vmatprep.mubr.f32.mxu0 0.0
    %1997 = vmatmul.mubr.f32.gmra.mrb[0].mxu0 %v1930
    %v1998 = vpop.f32.mrb[0].mxu0
    %v1999 = vadd.f32 %v1926, %v1998
    %v2000 = vpop.f32.mrb[0].mxu0
    %2001 = vdwg.mxu0
    %2003 = vrot.lane.b32.xlu0 %v927, 112
    %v2004 = vpop.permute.xlu0 %2003
    %v2007 = vsel %vm609, %v1700, 0
    %2009 = vmatprep.subr.mxu0 0.0
    %2010 = vmatpush1.msra.mxu0 %v1999
    %2011 = vmatprep.subr.mxu0 0.0
    %2012 = vmatpush1.msra.mxu0 0.0
    %2013 = vmatprep.subr.mxu0 0.0
    %2014 = vmatpush1.msra.mxu0 0.0
    %2015 = vmatprep.subr.mxu0 0.0
    %2016 = vmatpush1.msra.mxu0 0.0
    %2017 = vmatprep.subr.mxu0 0.0
    %2018 = vmatpush1.msra.mxu0 0.0
    %2019 = vmatprep.subr.mxu0 0.0
    %2020 = vmatpush1.msra.mxu0 0.0
    %2021 = vmatprep.subr.mxu0 0.0
    %2022 = vmatpush1.msra.mxu0 0.0
    %2023 = vmatprep.subr.mxu0 0.0
    %2024 = vmatpush1.msra.mxu0 0.0
    %2025 = vmatprep.subr.mxu0 0.0
    %2026 = vmatpush1.msra.mxu0 0.0
    %2027 = vmatprep.subr.mxu0 0.0
    %2028 = vmatpush1.msra.mxu0 0.0
    %2029 = vmatprep.subr.mxu0 0.0
    %2030 = vmatpush1.msra.mxu0 0.0
    %2031 = vmatprep.subr.mxu0 0.0
    %2032 = vmatpush1.msra.mxu0 0.0
    %2033 = vmatprep.subr.mxu0 0.0
    %2034 = vmatpush1.msra.mxu0 0.0
    %2035 = vmatprep.subr.mxu0 0.0
    %2036 = vmatpush1.msra.mxu0 0.0
    %2037 = vmatprep.subr.mxu0 0.0
    %2038 = vmatpush1.msra.mxu0 0.0
    %2039 = vmatprep.subr.mxu0 0.0
    %2040 = vmatpush1.msra.mxu0 0.0
    %2041 = vmatprep.subr.mxu0 0.0
    %2042 = vmatpush1.msra.mxu0 0.0
    %2043 = vmatprep.subr.mxu0 0.0
    %2044 = vmatpush1.msra.mxu0 0.0
    %2045 = vmatprep.subr.mxu0 0.0
    %2046 = vmatpush1.msra.mxu0 0.0
    %2047 = vmatprep.subr.mxu0 0.0
    %2048 = vmatpush1.msra.mxu0 0.0
    %2049 = vmatprep.subr.mxu0 0.0
    %2050 = vmatpush1.msra.mxu0 0.0
    %2051 = vmatprep.subr.mxu0 0.0
    %2052 = vmatpush1.msra.mxu0 0.0
    %2053 = vmatprep.subr.mxu0 0.0
    %2054 = vmatpush1.msra.mxu0 0.0
    %2055 = vmatprep.subr.mxu0 0.0
    %2056 = vmatpush1.msra.mxu0 0.0
    %2057 = vmatprep.subr.mxu0 0.0
    %2058 = vmatpush1.msra.mxu0 0.0
    %2059 = vmatprep.subr.mxu0 0.0
    %2060 = vmatpush1.msra.mxu0 0.0
    %2061 = vmatprep.subr.mxu0 0.0
    %2062 = vmatpush1.msra.mxu0 0.0
    %2063 = vmatprep.subr.mxu0 0.0
    %2064 = vmatpush1.msra.mxu0 0.0
    %2065 = vmatprep.subr.mxu0 0.0
    %2066 = vmatpush1.msra.mxu0 0.0
    %2067 = vmatprep.subr.mxu0 0.0
    %2068 = vmatpush1.msra.mxu0 0.0
    %2069 = vmatprep.subr.mxu0 0.0
    %2070 = vmatpush1.msra.mxu0 0.0
    %2071 = vmatprep.subr.mxu0 0.0
    %2072 = vmatpush1.msra.mxu0 0.0
    %2073 = vmatprep.mubr.f32.mxu0 0.0
    %2074 = vmatmul.mubr.f32.gmra.mrb[0].mxu0 %v2007
    %v2075 = vpop.f32.mrb[0].mxu0
    %v2076 = vadd.f32 %v2004, %v2075
    %v2077 = vpop.f32.mrb[0].mxu0
    %2078 = vdwg.mxu0
    %vm2079 = vcmp.ge.f32.partialorder %v2076, 0.0
    %v2080 = vmul.f32 %v2076, 0.01
    %v2081 = vsel %vm2079, %v2076, %v2080
    %v2083 = vsel %vm152, %v2081, 0
    %2085 = vmatprep.subr.mxu0 0.0
    %2086 = vmatpush1.xpose.msra.mxu0 %v2083
    %2087 = vmatprep.subr.mxu0 0.0
    %2088 = vmatpush1.xpose.msra.mxu0 0.0
    %2089 = vmatprep.subr.mxu0 0.0
    %2090 = vmatpush1.xpose.msra.mxu0 0.0
    %2091 = vmatprep.subr.mxu0 0.0
    %2092 = vmatpush1.xpose.msra.mxu0 0.0
    %2093 = vmatprep.subr.mxu0 0.0
    %2094 = vmatpush1.xpose.msra.mxu0 0.0
    %2095 = vmatprep.subr.mxu0 0.0
    %2096 = vmatpush1.xpose.msra.mxu0 0.0
    %2097 = vmatprep.subr.mxu0 0.0
    %2098 = vmatpush1.xpose.msra.mxu0 0.0
    %2099 = vmatprep.subr.mxu0 0.0
    %2100 = vmatpush1.xpose.msra.mxu0 0.0
    %2101 = vmatprep.subr.mxu0 0.0
    %2102 = vmatpush1.xpose.msra.mxu0 0.0
    %2103 = vmatprep.subr.mxu0 0.0
    %2104 = vmatpush1.xpose.msra.mxu0 0.0
    %2105 = vmatprep.subr.mxu0 0.0
    %2106 = vmatpush1.xpose.msra.mxu0 0.0
    %2107 = vmatprep.subr.mxu0 0.0
    %2108 = vmatpush1.xpose.msra.mxu0 0.0
    %2109 = vmatprep.subr.mxu0 0.0
    %2110 = vmatpush1.xpose.msra.mxu0 0.0
    %2111 = vmatprep.subr.mxu0 0.0
    %2112 = vmatpush1.xpose.msra.mxu0 0.0
    %2113 = vmatprep.subr.mxu0 0.0
    %2114 = vmatpush1.xpose.msra.mxu0 0.0
    %2115 = vmatprep.subr.mxu0 0.0
    %2116 = vmatpush1.xpose.msra.mxu0 0.0
    %2117 = vmatprep.subr.mxu0 0.0
    %2118 = vmatpush1.xpose.msra.mxu0 0.0
    %2119 = vmatprep.subr.mxu0 0.0
    %2120 = vmatpush1.xpose.msra.mxu0 0.0
    %2121 = vmatprep.subr.mxu0 0.0
    %2122 = vmatpush1.xpose.msra.mxu0 0.0
    %2123 = vmatprep.subr.mxu0 0.0
    %2124 = vmatpush1.xpose.msra.mxu0 0.0
    %2125 = vmatprep.subr.mxu0 0.0
    %2126 = vmatpush1.xpose.msra.mxu0 0.0
    %2127 = vmatprep.subr.mxu0 0.0
    %2128 = vmatpush1.xpose.msra.mxu0 0.0
    %2129 = vmatprep.subr.mxu0 0.0
    %2130 = vmatpush1.xpose.msra.mxu0 0.0
    %2131 = vmatprep.subr.mxu0 0.0
    %2132 = vmatpush1.xpose.msra.mxu0 0.0
    %2133 = vmatprep.subr.mxu0 0.0
    %2134 = vmatpush1.xpose.msra.mxu0 0.0
    %2135 = vmatprep.subr.mxu0 0.0
    %2136 = vmatpush1.xpose.msra.mxu0 0.0
    %2137 = vmatprep.subr.mxu0 0.0
    %2138 = vmatpush1.xpose.msra.mxu0 0.0
    %2139 = vmatprep.subr.mxu0 0.0
    %2140 = vmatpush1.xpose.msra.mxu0 0.0
    %2141 = vmatprep.subr.mxu0 0.0
    %2142 = vmatpush1.xpose.msra.mxu0 0.0
    %2143 = vmatprep.subr.mxu0 0.0
    %2144 = vmatpush1.xpose.msra.mxu0 0.0
    %2145 = vmatprep.subr.mxu0 0.0
    %2146 = vmatpush1.xpose.msra.mxu0 0.0
    %2147 = vmatprep.subr.mxu0 0.0
    %2148 = vmatpush1.xpose.msra.mxu0 0.0
    %2149 = vmatprep.mubr.f32.mxu0 0.0
    %2150 = vmatmul.mubr.f32.gmra.mrb[0].mxu0 %v2083
    %v2151 = vpop.f32.mrb[0].mxu0
    %v2152 = vadd.f32 0.0, %v2151
    %v2153 = vpop.f32.mrb[0].mxu0
    %2154 = vdwg.mxu0
    %v2155 = vmul.f32 %v2152, 0.5
    %v2156 = vtanh.pop %v2155
    %v2157 = vadd.f32 %v2156, 1.0
    %v2158 = vmul.f32 %v2157, 0.5
    %s2159 = scalar_lea.vmem %s10, 64
    %v2160 = vld [vmem:[%s2159] sm:$0xff]
    %v2161 = vld [vmem:[%s2159 + $0x8] sm:$0xff]
    %v2162 = vld [vmem:[%s2159 + $0x10] sm:$0xff]
    %v2163 = vld [vmem:[%s2159 + $0x18] sm:$0xff]
    %v2165 = vsel %vm609, %v2160, 0
    %v2168 = vsel %vm609, %v2161, 0
    %v2171 = vsel %vm609, %v2162, 0
    %v2174 = vsel %vm609, %v2163, 0
    %2176 = vmatprep.subr.mxu0 0.0
    %2177 = vmatpush1.msra.mxu0 %v2158
    %2178 = vmatprep.subr.mxu0 0.0
    %2179 = vmatpush1.msra.mxu0 0.0
    %2180 = vmatprep.subr.mxu0 0.0
    %2181 = vmatpush1.msra.mxu0 0.0
    %2182 = vmatprep.subr.mxu0 0.0
    %2183 = vmatpush1.msra.mxu0 0.0
    %2184 = vmatprep.subr.mxu0 0.0
    %2185 = vmatpush1.msra.mxu0 0.0
    %2186 = vmatprep.subr.mxu0 0.0
    %2187 = vmatpush1.msra.mxu0 0.0
    %2188 = vmatprep.subr.mxu0 0.0
    %2189 = vmatpush1.msra.mxu0 0.0
    %2190 = vmatprep.subr.mxu0 0.0
    %2191 = vmatpush1.msra.mxu0 0.0
    %2192 = vmatprep.subr.mxu0 0.0
    %2193 = vmatpush1.msra.mxu0 0.0
    %2194 = vmatprep.subr.mxu0 0.0
    %2195 = vmatpush1.msra.mxu0 0.0
    %2196 = vmatprep.subr.mxu0 0.0
    %2197 = vmatpush1.msra.mxu0 0.0
    %2198 = vmatprep.subr.mxu0 0.0
    %2199 = vmatpush1.msra.mxu0 0.0
    %2200 = vmatprep.subr.mxu0 0.0
    %2201 = vmatpush1.msra.mxu0 0.0
    %2202 = vmatprep.subr.mxu0 0.0
    %2203 = vmatpush1.msra.mxu0 0.0
    %2204 = vmatprep.subr.mxu0 0.0
    %2205 = vmatpush1.msra.mxu0 0.0
    %2206 = vmatprep.subr.mxu0 0.0
    %2207 = vmatpush1.msra.mxu0 0.0
    %2208 = vmatprep.subr.mxu0 0.0
    %2209 = vmatpush1.msra.mxu0 0.0
    %2210 = vmatprep.subr.mxu0 0.0
    %2211 = vmatpush1.msra.mxu0 0.0
    %2212 = vmatprep.subr.mxu0 0.0
    %2213 = vmatpush1.msra.mxu0 0.0
    %2214 = vmatprep.subr.mxu0 0.0
    %2215 = vmatpush1.msra.mxu0 0.0
    %2216 = vmatprep.subr.mxu0 0.0
    %2217 = vmatpush1.msra.mxu0 0.0
    %2218 = vmatprep.subr.mxu0 0.0
    %2219 = vmatpush1.msra.mxu0 0.0
    %2220 = vmatprep.subr.mxu0 0.0
    %2221 = vmatpush1.msra.mxu0 0.0
    %2222 = vmatprep.subr.mxu0 0.0
    %2223 = vmatpush1.msra.mxu0 0.0
    %2224 = vmatprep.subr.mxu0 0.0
    %2225 = vmatpush1.msra.mxu0 0.0
    %2226 = vmatprep.subr.mxu0 0.0
    %2227 = vmatpush1.msra.mxu0 0.0
    %2228 = vmatprep.subr.mxu0 0.0
    %2229 = vmatpush1.msra.mxu0 0.0
    %2230 = vmatprep.subr.mxu0 0.0
    %2231 = vmatpush1.msra.mxu0 0.0
    %2232 = vmatprep.subr.mxu0 0.0
    %2233 = vmatpush1.msra.mxu0 0.0
    %2234 = vmatprep.subr.mxu0 0.0
    %2235 = vmatpush1.msra.mxu0 0.0
    %2236 = vmatprep.subr.mxu0 0.0
    %2237 = vmatpush1.msra.mxu0 0.0
    %2238 = vmatprep.subr.mxu0 0.0
    %2239 = vmatpush1.msra.mxu0 0.0
    %2240 = vmatprep.mubr.f32.mxu0 0.0
    %2241 = vmatmul.mubr.f32.gmra.mrb[0].mxu0 %v2165
    %v2242 = vpop.f32.mrb[0].mxu0
    %v2243 = vadd.f32 0.0, %v2242
    %v2244 = vpop.f32.mrb[0].mxu0
    %2245 = vmatprep.mubr.f32.mxu0 0.0
    %2246 = vmatmul.mubr.f32.gmra.mrb[0].mxu0 %v2168
    %v2247 = vpop.f32.mrb[0].mxu0
    %v2248 = vadd.f32 0.0, %v2247
    %v2249 = vpop.f32.mrb[0].mxu0
    %2250 = vmatprep.mubr.f32.mxu0 0.0
    %2251 = vmatmul.mubr.f32.gmra.mrb[0].mxu0 %v2171
    %v2252 = vpop.f32.mrb[0].mxu0
    %v2253 = vadd.f32 0.0, %v2252
    %v2254 = vpop.f32.mrb[0].mxu0
    %2255 = vmatprep.mubr.f32.mxu0 0.0
    %2256 = vmatmul.mubr.f32.gmra.mrb[0].mxu0 %v2174
    %v2257 = vpop.f32.mrb[0].mxu0
    %v2258 = vadd.f32 0.0, %v2257
    %v2259 = vpop.f32.mrb[0].mxu0
    %2260 = vdwg.mxu0
    %v2261 = vmul.f32 %v2243, %v1565
    %v2262 = vmul.f32 %v2248, %v1566
    %v2263 = vmul.f32 %v2253, %v1567
    %v2264 = vmul.f32 %v2258, %v1568
    %v2265 = vsel %vm609, %v2261, 0.0
    %2266 = vadd.xlane.f32.xlu0 %v2265
    %v2267 = vpop.xlane.xlu0 %2266
    %v2268 = vsel %vm609, %v2262, 0.0
    %2269 = vadd.xlane.f32.xlu0 %v2268
    %v2270 = vpop.xlane.xlu0 %2269
    %v2271 = vsel %vm609, %v2263, 0.0
    %2272 = vadd.xlane.f32.xlu0 %v2271
    %v2273 = vpop.xlane.xlu0 %2272
    %v2274 = vsel %vm609, %v2264, 0.0
    %2275 = vadd.xlane.f32.xlu0 %v2274
    %v2276 = vpop.xlane.xlu0 %2275
    %v2277 = vmul.f32 %v2267, %v1201
    %v2278 = vmul.f32 %v2270, %v1201
    %v2279 = vmul.f32 %v2273, %v1201
    %v2280 = vmul.f32 %v2276, %v1201
    %v2281 = vadd.f32 %v2277, %v1209
    %v2282 = vadd.f32 %v2278, %v1209
    %v2283 = vadd.f32 %v2279, %v1209
    %v2284 = vadd.f32 %v2280, %v1209
    %2289 = vrot.lane.b32.xlu0 %v1428, 16
    %v2290 = vpop.permute.xlu0 %2289
    %2291 = vrot.lane.b32.xlu0 %v1433, 16
    %v2292 = vpop.permute.xlu0 %2291
    %2293 = vrot.lane.b32.xlu0 %v1438, 16
    %v2294 = vpop.permute.xlu0 %2293
    %2295 = vrot.lane.b32.xlu0 %v1443, 16
    %v2296 = vpop.permute.xlu0 %2295
    %v2301 = vmul.f32 %v2281, %v2290
    %v2302 = vmul.f32 %v2282, %v2292
    %v2303 = vmul.f32 %v2283, %v2294
    %v2304 = vmul.f32 %v2284, %v2296
    %v2305 = vadd.f32 %v2301, %v2290
    %v2306 = vadd.f32 %v2302, %v2292
    %v2307 = vadd.f32 %v2303, %v2294
    %v2308 = vadd.f32 %v2304, %v2296
    %s2309 = scalar_lea.vmem %s12, 32
    %v2310 = vld [vmem:[%s2309] sm:$0xff]
    %v2311 = vld [vmem:[%s2309 + $0x8] sm:$0xff]
    %v2312 = vld [vmem:[%s2309 + $0x10] sm:$0xff]
    %v2313 = vld [vmem:[%s2309 + $0x18] sm:$0xf]
    %2318 = vrot.lane.b32.xlu0 %v2305, 112
    %v2319 = vpop.permute.xlu0 %2318
    %2320 = vrot.lane.b32.xlu0 %v2306, 112
    %v2321 = vpop.permute.xlu0 %2320
    %2322 = vrot.lane.b32.xlu0 %v2307, 112
    %v2323 = vpop.permute.xlu0 %2322
    %2324 = vrot.lane.b32.xlu0 %v2308, 112
    %v2325 = vpop.permute.xlu0 %2324
    %v2331 = vsel %vm500, %v2310, 0
    %v2334 = vsel %vm500, %v2311, 0
    %v2337 = vsel %vm500, %v2312, 0
    %v2340 = vsel %vm500, %v2313, 0
    %2342 = vmatprep.subr.mxu0 0.0
    %2343 = vmatpush1.msra.mxu0 %v2319
    %2344 = vmatprep.subr.mxu0 0.0
    %2345 = vmatpush1.msra.mxu0 %v2321
    %2346 = vmatprep.subr.mxu0 0.0
    %2347 = vmatpush1.msra.mxu0 %v2323
    %2348 = vmatprep.subr.mxu0 0.0
    %2349 = vmatpush1.msra.mxu0 %v2325
    %2350 = vmatprep.subr.mxu0 0.0
    %2351 = vmatpush1.msra.mxu0 0.0
    %2352 = vmatprep.subr.mxu0 0.0
    %2353 = vmatpush1.msra.mxu0 0.0
    %2354 = vmatprep.subr.mxu0 0.0
    %2355 = vmatpush1.msra.mxu0 0.0
    %2356 = vmatprep.subr.mxu0 0.0
    %2357 = vmatpush1.msra.mxu0 0.0
    %2358 = vmatprep.subr.mxu0 0.0
    %2359 = vmatpush1.msra.mxu0 0.0
    %2360 = vmatprep.subr.mxu0 0.0
    %2361 = vmatpush1.msra.mxu0 0.0
    %2362 = vmatprep.subr.mxu0 0.0
    %2363 = vmatpush1.msra.mxu0 0.0
    %2364 = vmatprep.subr.mxu0 0.0
    %2365 = vmatpush1.msra.mxu0 0.0
    %2366 = vmatprep.subr.mxu0 0.0
    %2367 = vmatpush1.msra.mxu0 0.0
    %2368 = vmatprep.subr.mxu0 0.0
    %2369 = vmatpush1.msra.mxu0 0.0
    %2370 = vmatprep.subr.mxu0 0.0
    %2371 = vmatpush1.msra.mxu0 0.0
    %2372 = vmatprep.subr.mxu0 0.0
    %2373 = vmatpush1.msra.mxu0 0.0
    %2374 = vmatprep.subr.mxu0 0.0
    %2375 = vmatpush1.msra.mxu0 0.0
    %2376 = vmatprep.subr.mxu0 0.0
    %2377 = vmatpush1.msra.mxu0 0.0
    %2378 = vmatprep.subr.mxu0 0.0
    %2379 = vmatpush1.msra.mxu0 0.0
    %2380 = vmatprep.subr.mxu0 0.0
    %2381 = vmatpush1.msra.mxu0 0.0
    %2382 = vmatprep.subr.mxu0 0.0
    %2383 = vmatpush1.msra.mxu0 0.0
    %2384 = vmatprep.subr.mxu0 0.0
    %2385 = vmatpush1.msra.mxu0 0.0
    %2386 = vmatprep.subr.mxu0 0.0
    %2387 = vmatpush1.msra.mxu0 0.0
    %2388 = vmatprep.subr.mxu0 0.0
    %2389 = vmatpush1.msra.mxu0 0.0
    %2390 = vmatprep.subr.mxu0 0.0
    %2391 = vmatpush1.msra.mxu0 0.0
    %2392 = vmatprep.subr.mxu0 0.0
    %2393 = vmatpush1.msra.mxu0 0.0
    %2394 = vmatprep.subr.mxu0 0.0
    %2395 = vmatpush1.msra.mxu0 0.0
    %2396 = vmatprep.subr.mxu0 0.0
    %2397 = vmatpush1.msra.mxu0 0.0
    %2398 = vmatprep.subr.mxu0 0.0
    %2399 = vmatpush1.msra.mxu0 0.0
    %2400 = vmatprep.subr.mxu0 0.0
    %2401 = vmatpush1.msra.mxu0 0.0
    %2402 = vmatprep.subr.mxu0 0.0
    %2403 = vmatpush1.msra.mxu0 0.0
    %2404 = vmatprep.subr.mxu0 0.0
    %2405 = vmatpush1.msra.mxu0 0.0
    %2406 = vmatprep.mubr.f32.mxu0 0.0
    %2407 = vmatmul.mubr.f32.gmra.mrb[0].mxu0 %v2331
    %v2408 = vpop.f32.mrb[0].mxu0
    %v2409 = vadd.f32 0.0, %v2408
    %v2410 = vpop.f32.mrb[0].mxu0
    %2411 = vmatprep.mubr.f32.mxu0 0.0
    %2412 = vmatmul.mubr.f32.gmra.mrb[0].mxu0 %v2334
    %v2413 = vpop.f32.mrb[0].mxu0
    %v2414 = vadd.f32 0.0, %v2413
    %v2415 = vpop.f32.mrb[0].mxu0
    %2416 = vmatprep.mubr.f32.mxu0 0.0
    %2417 = vmatmul.mubr.f32.gmra.mrb[0].mxu0 %v2337
    %v2418 = vpop.f32.mrb[0].mxu0
    %v2419 = vadd.f32 0.0, %v2418
    %v2420 = vpop.f32.mrb[0].mxu0
    %2421 = vmatprep.mubr.f32.mxu0 0.0
    %2422 = vmatmul.mubr.f32.gmra.mrb[0].mxu0 %v2340
    %v2423 = vpop.f32.mrb[0].mxu0
    %v2424 = vadd.f32 0.0, %v2423
    %v2425 = vpop.f32.mrb[0].mxu0
    %2426 = vdwg.mxu0
    %2431 = vrot.lane.b32.xlu0 %v2409, 16
    %v2432 = vpop.permute.xlu0 %2431
    %2433 = vrot.lane.b32.xlu0 %v2414, 16
    %v2434 = vpop.permute.xlu0 %2433
    %2435 = vrot.lane.b32.xlu0 %v2419, 16
    %v2436 = vpop.permute.xlu0 %2435
    %2437 = vrot.lane.b32.xlu0 %v2424, 16
    %v2438 = vpop.permute.xlu0 %2437
    %vm2443 = vcmask 261248
    %2444 = vst.msk [vmem:[#allocation14] sm:$0xff] %vm2443, %v2432
    %2445 = vst.msk [vmem:[#allocation14 + $0x8] sm:$0xff] %vm2443, %v2434
    %2446 = vst.msk [vmem:[#allocation14 + $0x10] sm:$0xff] %vm2443, %v2436
    %vm2447 = vcmask 257152
    %2448 = vst.msk [vmem:[#allocation14 + $0x18] sm:$0xf] %vm2447, %v2438
    %s2449 = scalar_lea.vmem %s11, 128
    %v2450 = vld [vmem:[%s2449] sm:$0xff]
    %v2451 = vld [vmem:[%s2449 + $0x8] sm:$0xff]
    %v2452 = vld [vmem:[%s2449 + $0x10] sm:$0xff]
    %v2453 = vld [vmem:[%s2449 + $0x18] sm:$0xff]
    %2454 = vrot.lane.b32.xlu0 %v258, 96
    %v2455 = vpop.permute.xlu0 %2454
    %2456 = vrot.lane.b32.xlu0 %v259, 96
    %v2457 = vpop.permute.xlu0 %2456
    %2458 = vrot.lane.b32.xlu0 %v260, 96
    %v2459 = vpop.permute.xlu0 %2458
    %2460 = vrot.lane.b32.xlu0 %v261, 96
    %v2461 = vpop.permute.xlu0 %2460
    %v2466 = vsel %vm269, %v2450, 0
    %v2469 = vsel %vm269, %v2451, 0
    %v2472 = vsel %vm269, %v2452, 0
    %v2475 = vsel %vm269, %v2453, 0
    %v2477 = vsel %vm282, %v2461, 0
    %2479 = vmatprep.subr.mxu0 0.0
    %2480 = vmatpush1.msra.mxu0 %v2455
    %2481 = vmatprep.subr.mxu0 0.0
    %2482 = vmatpush1.msra.mxu0 %v2457
    %2483 = vmatprep.subr.mxu0 0.0
    %2484 = vmatpush1.msra.mxu0 %v2459
    %2485 = vmatprep.subr.mxu0 0.0
    %2486 = vmatpush1.msra.mxu0 %v2477
    %2487 = vmatprep.subr.mxu0 0.0
    %2488 = vmatpush1.msra.mxu0 0.0
    %2489 = vmatprep.subr.mxu0 0.0
    %2490 = vmatpush1.msra.mxu0 0.0
    %2491 = vmatprep.subr.mxu0 0.0
    %2492 = vmatpush1.msra.mxu0 0.0
    %2493 = vmatprep.subr.mxu0 0.0
    %2494 = vmatpush1.msra.mxu0 0.0
    %2495 = vmatprep.subr.mxu0 0.0
    %2496 = vmatpush1.msra.mxu0 0.0
    %2497 = vmatprep.subr.mxu0 0.0
    %2498 = vmatpush1.msra.mxu0 0.0
    %2499 = vmatprep.subr.mxu0 0.0
    %2500 = vmatpush1.msra.mxu0 0.0
    %2501 = vmatprep.subr.mxu0 0.0
    %2502 = vmatpush1.msra.mxu0 0.0
    %2503 = vmatprep.subr.mxu0 0.0
    %2504 = vmatpush1.msra.mxu0 0.0
    %2505 = vmatprep.subr.mxu0 0.0
    %2506 = vmatpush1.msra.mxu0 0.0
    %2507 = vmatprep.subr.mxu0 0.0
    %2508 = vmatpush1.msra.mxu0 0.0
    %2509 = vmatprep.subr.mxu0 0.0
    %2510 = vmatpush1.msra.mxu0 0.0
    %2511 = vmatprep.subr.mxu0 0.0
    %2512 = vmatpush1.msra.mxu0 0.0
    %2513 = vmatprep.subr.mxu0 0.0
    %2514 = vmatpush1.msra.mxu0 0.0
    %2515 = vmatprep.subr.mxu0 0.0
    %2516 = vmatpush1.msra.mxu0 0.0
    %2517 = vmatprep.subr.mxu0 0.0
    %2518 = vmatpush1.msra.mxu0 0.0
    %2519 = vmatprep.subr.mxu0 0.0
    %2520 = vmatpush1.msra.mxu0 0.0
    %2521 = vmatprep.subr.mxu0 0.0
    %2522 = vmatpush1.msra.mxu0 0.0
    %2523 = vmatprep.subr.mxu0 0.0
    %2524 = vmatpush1.msra.mxu0 0.0
    %2525 = vmatprep.subr.mxu0 0.0
    %2526 = vmatpush1.msra.mxu0 0.0
    %2527 = vmatprep.subr.mxu0 0.0
    %2528 = vmatpush1.msra.mxu0 0.0
    %2529 = vmatprep.subr.mxu0 0.0
    %2530 = vmatpush1.msra.mxu0 0.0
    %2531 = vmatprep.subr.mxu0 0.0
    %2532 = vmatpush1.msra.mxu0 0.0
    %2533 = vmatprep.subr.mxu0 0.0
    %2534 = vmatpush1.msra.mxu0 0.0
    %2535 = vmatprep.subr.mxu0 0.0
    %2536 = vmatpush1.msra.mxu0 0.0
    %2537 = vmatprep.subr.mxu0 0.0
    %2538 = vmatpush1.msra.mxu0 0.0
    %2539 = vmatprep.subr.mxu0 0.0
    %2540 = vmatpush1.msra.mxu0 0.0
    %2541 = vmatprep.subr.mxu0 0.0
    %2542 = vmatpush1.msra.mxu0 0.0
    %2543 = vmatprep.mubr.f32.mxu0 0.0
    %2544 = vmatmul.mubr.f32.gmra.mrb[0].mxu0 %v2466
    %v2545 = vpop.f32.mrb[0].mxu0
    %v2546 = vadd.f32 0.0, %v2545
    %v2547 = vpop.f32.mrb[0].mxu0
    %2548 = vmatprep.mubr.f32.mxu0 0.0
    %2549 = vmatmul.mubr.f32.gmra.mrb[0].mxu0 %v2469
    %v2550 = vpop.f32.mrb[0].mxu0
    %v2551 = vadd.f32 0.0, %v2550
    %v2552 = vpop.f32.mrb[0].mxu0
    %2553 = vmatprep.mubr.f32.mxu0 0.0
    %2554 = vmatmul.mubr.f32.gmra.mrb[0].mxu0 %v2472
    %v2555 = vpop.f32.mrb[0].mxu0
    %v2556 = vadd.f32 0.0, %v2555
    %v2557 = vpop.f32.mrb[0].mxu0
    %2558 = vmatprep.mubr.f32.mxu0 0.0
    %2559 = vmatmul.mubr.f32.gmra.mrb[0].mxu0 %v2475
    %v2560 = vpop.f32.mrb[0].mxu0
    %v2561 = vadd.f32 0.0, %v2560
    %v2562 = vpop.f32.mrb[0].mxu0
    %2563 = vdwg.mxu0
    %s2564 = scalar_lea.vmem %s11, 160
    %v2565 = vld [vmem:[%s2564] sm:$0xff]
    %v2566 = vld [vmem:[%s2564 + $0x8] sm:$0xff]
    %v2567 = vld [vmem:[%s2564 + $0x10] sm:$0xff]
    %v2568 = vld [vmem:[%s2564 + $0x18] sm:$0xff]
    %v2570 = vsel %vm269, %v2565, 0
    %v2573 = vsel %vm269, %v2566, 0
    %v2576 = vsel %vm269, %v2567, 0
    %v2579 = vsel %vm269, %v2568, 0
    %2581 = vmatprep.subr.mxu0 0.0
    %2582 = vmatpush1.msra.mxu0 %v2455
    %2583 = vmatprep.subr.mxu0 0.0
    %2584 = vmatpush1.msra.mxu0 %v2457
    %2585 = vmatprep.subr.mxu0 0.0
    %2586 = vmatpush1.msra.mxu0 %v2459
    %2587 = vmatprep.subr.mxu0 0.0
    %2588 = vmatpush1.msra.mxu0 %v2477
    %2589 = vmatprep.subr.mxu0 0.0
    %2590 = vmatpush1.msra.mxu0 0.0
    %2591 = vmatprep.subr.mxu0 0.0
    %2592 = vmatpush1.msra.mxu0 0.0
    %2593 = vmatprep.subr.mxu0 0.0
    %2594 = vmatpush1.msra.mxu0 0.0
    %2595 = vmatprep.subr.mxu0 0.0
    %2596 = vmatpush1.msra.mxu0 0.0
    %2597 = vmatprep.subr.mxu0 0.0
    %2598 = vmatpush1.msra.mxu0 0.0
    %2599 = vmatprep.subr.mxu0 0.0
    %2600 = vmatpush1.msra.mxu0 0.0
    %2601 = vmatprep.subr.mxu0 0.0
    %2602 = vmatpush1.msra.mxu0 0.0
    %2603 = vmatprep.subr.mxu0 0.0
    %2604 = vmatpush1.msra.mxu0 0.0
    %2605 = vmatprep.subr.mxu0 0.0
    %2606 = vmatpush1.msra.mxu0 0.0
    %2607 = vmatprep.subr.mxu0 0.0
    %2608 = vmatpush1.msra.mxu0 0.0
    %2609 = vmatprep.subr.mxu0 0.0
    %2610 = vmatpush1.msra.mxu0 0.0
    %2611 = vmatprep.subr.mxu0 0.0
    %2612 = vmatpush1.msra.mxu0 0.0
    %2613 = vmatprep.subr.mxu0 0.0
    %2614 = vmatpush1.msra.mxu0 0.0
    %2615 = vmatprep.subr.mxu0 0.0
    %2616 = vmatpush1.msra.mxu0 0.0
    %2617 = vmatprep.subr.mxu0 0.0
    %2618 = vmatpush1.msra.mxu0 0.0
    %2619 = vmatprep.subr.mxu0 0.0
    %2620 = vmatpush1.msra.mxu0 0.0
    %2621 = vmatprep.subr.mxu0 0.0
    %2622 = vmatpush1.msra.mxu0 0.0
    %2623 = vmatprep.subr.mxu0 0.0
    %2624 = vmatpush1.msra.mxu0 0.0
    %2625 = vmatprep.subr.mxu0 0.0
    %2626 = vmatpush1.msra.mxu0 0.0
    %2627 = vmatprep.subr.mxu0 0.0
    %2628 = vmatpush1.msra.mxu0 0.0
    %2629 = vmatprep.subr.mxu0 0.0
    %2630 = vmatpush1.msra.mxu0 0.0
    %2631 = vmatprep.subr.mxu0 0.0
    %2632 = vmatpush1.msra.mxu0 0.0
    %2633 = vmatprep.subr.mxu0 0.0
    %2634 = vmatpush1.msra.mxu0 0.0
    %2635 = vmatprep.subr.mxu0 0.0
    %2636 = vmatpush1.msra.mxu0 0.0
    %2637 = vmatprep.subr.mxu0 0.0
    %2638 = vmatpush1.msra.mxu0 0.0
    %2639 = vmatprep.subr.mxu0 0.0
    %2640 = vmatpush1.msra.mxu0 0.0
    %2641 = vmatprep.subr.mxu0 0.0
    %2642 = vmatpush1.msra.mxu0 0.0
    %2643 = vmatprep.subr.mxu0 0.0
    %2644 = vmatpush1.msra.mxu0 0.0
    %2645 = vmatprep.mubr.f32.mxu0 0.0
    %2646 = vmatmul.mubr.f32.gmra.mrb[0].mxu0 %v2570
    %v2647 = vpop.f32.mrb[0].mxu0
    %v2648 = vadd.f32 0.0, %v2647
    %v2649 = vpop.f32.mrb[0].mxu0
    %2650 = vmatprep.mubr.f32.mxu0 0.0
    %2651 = vmatmul.mubr.f32.gmra.mrb[0].mxu0 %v2573
    %v2652 = vpop.f32.mrb[0].mxu0
    %v2653 = vadd.f32 0.0, %v2652
    %v2654 = vpop.f32.mrb[0].mxu0
    %2655 = vmatprep.mubr.f32.mxu0 0.0
    %2656 = vmatmul.mubr.f32.gmra.mrb[0].mxu0 %v2576
    %v2657 = vpop.f32.mrb[0].mxu0
    %v2658 = vadd.f32 0.0, %v2657
    %v2659 = vpop.f32.mrb[0].mxu0
    %2660 = vmatprep.mubr.f32.mxu0 0.0
    %2661 = vmatmul.mubr.f32.gmra.mrb[0].mxu0 %v2579
    %v2662 = vpop.f32.mrb[0].mxu0
    %v2663 = vadd.f32 0.0, %v2662
    %v2664 = vpop.f32.mrb[0].mxu0
    %2665 = vdwg.mxu0
    %v2666 = vsel %vm152, %v2648, 0.0
    %2667 = vadd.xlane.f32.xlu0 %v2666
    %v2668 = vpop.xlane.xlu0 %2667
    %v2669 = vsel %vm152, %v2653, 0.0
    %2670 = vadd.xlane.f32.xlu0 %v2669
    %v2671 = vpop.xlane.xlu0 %2670
    %v2672 = vsel %vm152, %v2658, 0.0
    %2673 = vadd.xlane.f32.xlu0 %v2672
    %v2674 = vpop.xlane.xlu0 %2673
    %v2675 = vsel %vm152, %v2663, 0.0
    %2676 = vadd.xlane.f32.xlu0 %v2675
    %v2677 = vpop.xlane.xlu0 %2676
    %v2678 = vmul.f32 %v2668, %v485
    %v2679 = vmul.f32 %v2671, %v485
    %v2680 = vmul.f32 %v2674, %v485
    %v2681 = vmul.f32 %v2677, %v485
    %s2682 = scalar_lea.vmem %s10, 160
    %v2683 = vld [vmem:[%s2682] sm:$0xff]
    %v2684 = vld [vmem:[%s2682 + $0x8] sm:$0xff]
    %v2685 = vld [vmem:[%s2682 + $0x10] sm:$0xff]
    %v2686 = vld [vmem:[%s2682 + $0x18] sm:$0xff]
    %s2687 = scalar_lea.vmem [#allocation11], 16
    %v2688 = vld [vmem:[%s2687] sm:$0xff]
    %v2689 = vmul.f32 %v2683, %v2678
    %v2690 = vmul.f32 %v2684, %v2679
    %v2691 = vmul.f32 %v2685, %v2680
    %v2692 = vmul.f32 %v2686, %v2681
    %v2694 = vsel %vm500, %v2688, 0
    %2696 = vmatprep.subr.mxu0 0.0
    %2697 = vmatpush1.msra.mxu0 %v2689
    %2698 = vmatprep.subr.mxu0 0.0
    %2699 = vmatpush1.msra.mxu0 %v2690
    %2700 = vmatprep.subr.mxu0 0.0
    %2701 = vmatpush1.msra.mxu0 %v2691
    %2702 = vmatprep.subr.mxu0 0.0
    %2703 = vmatpush1.msra.mxu0 %v2692
    %2704 = vmatprep.subr.mxu0 0.0
    %2705 = vmatpush1.msra.mxu0 0.0
    %2706 = vmatprep.subr.mxu0 0.0
    %2707 = vmatpush1.msra.mxu0 0.0
    %2708 = vmatprep.subr.mxu0 0.0
    %2709 = vmatpush1.msra.mxu0 0.0
    %2710 = vmatprep.subr.mxu0 0.0
    %2711 = vmatpush1.msra.mxu0 0.0
    %2712 = vmatprep.subr.mxu0 0.0
    %2713 = vmatpush1.msra.mxu0 0.0
    %2714 = vmatprep.subr.mxu0 0.0
    %2715 = vmatpush1.msra.mxu0 0.0
    %2716 = vmatprep.subr.mxu0 0.0
    %2717 = vmatpush1.msra.mxu0 0.0
    %2718 = vmatprep.subr.mxu0 0.0
    %2719 = vmatpush1.msra.mxu0 0.0
    %2720 = vmatprep.subr.mxu0 0.0
    %2721 = vmatpush1.msra.mxu0 0.0
    %2722 = vmatprep.subr.mxu0 0.0
    %2723 = vmatpush1.msra.mxu0 0.0
    %2724 = vmatprep.subr.mxu0 0.0
    %2725 = vmatpush1.msra.mxu0 0.0
    %2726 = vmatprep.subr.mxu0 0.0
    %2727 = vmatpush1.msra.mxu0 0.0
    %2728 = vmatprep.subr.mxu0 0.0
    %2729 = vmatpush1.msra.mxu0 0.0
    %2730 = vmatprep.subr.mxu0 0.0
    %2731 = vmatpush1.msra.mxu0 0.0
    %2732 = vmatprep.subr.mxu0 0.0
    %2733 = vmatpush1.msra.mxu0 0.0
    %2734 = vmatprep.subr.mxu0 0.0
    %2735 = vmatpush1.msra.mxu0 0.0
    %2736 = vmatprep.subr.mxu0 0.0
    %2737 = vmatpush1.msra.mxu0 0.0
    %2738 = vmatprep.subr.mxu0 0.0
    %2739 = vmatpush1.msra.mxu0 0.0
    %2740 = vmatprep.subr.mxu0 0.0
    %2741 = vmatpush1.msra.mxu0 0.0
    %2742 = vmatprep.subr.mxu0 0.0
    %2743 = vmatpush1.msra.mxu0 0.0
    %2744 = vmatprep.subr.mxu0 0.0
    %2745 = vmatpush1.msra.mxu0 0.0
    %2746 = vmatprep.subr.mxu0 0.0
    %2747 = vmatpush1.msra.mxu0 0.0
    %2748 = vmatprep.subr.mxu0 0.0
    %2749 = vmatpush1.msra.mxu0 0.0
    %2750 = vmatprep.subr.mxu0 0.0
    %2751 = vmatpush1.msra.mxu0 0.0
    %2752 = vmatprep.subr.mxu0 0.0
    %2753 = vmatpush1.msra.mxu0 0.0
    %2754 = vmatprep.subr.mxu0 0.0
    %2755 = vmatpush1.msra.mxu0 0.0
    %2756 = vmatprep.subr.mxu0 0.0
    %2757 = vmatpush1.msra.mxu0 0.0
    %2758 = vmatprep.subr.mxu0 0.0
    %2759 = vmatpush1.msra.mxu0 0.0
    %2760 = vmatprep.mubr.f32.mxu0 0.0
    %2761 = vmatmul.mubr.f32.gmra.mrb[0].mxu0 %v2694
    %v2762 = vpop.f32.mrb[0].mxu0
    %v2763 = vadd.f32 0.0, %v2762
    %v2764 = vpop.f32.mrb[0].mxu0
    %2765 = vdwg.mxu0
    %2766 = vxpose.xlu0.b32.start [1/16] %v2763, 128
    %2767 = vxpose.xlu0.b32.cont [2/16] 0.0, 128
    %2768 = vxpose.xlu0.b32.cont [3/16] 0.0, 128
    %2769 = vxpose.xlu0.b32.cont [4/16] 0.0, 128
    %2770 = vxpose.xlu0.b32.cont [5/16] 0.0, 128
    %2771 = vxpose.xlu0.b32.cont [6/16] 0.0, 128
    %2772 = vxpose.xlu0.b32.cont [7/16] 0.0, 128
    %2773 = vxpose.xlu0.b32.cont [8/16] 0.0, 128
    %2774 = vxpose.xlu0.b32.cont [9/16] 0.0, 128
    %2775 = vxpose.xlu0.b32.cont [10/16] 0.0, 128
    %2776 = vxpose.xlu0.b32.cont [11/16] 0.0, 128
    %2777 = vxpose.xlu0.b32.cont [12/16] 0.0, 128
    %2778 = vxpose.xlu0.b32.cont [13/16] 0.0, 128
    %2779 = vxpose.xlu0.b32.cont [14/16] 0.0, 128
    %2780 = vxpose.xlu0.b32.cont [15/16] 0.0, 128
    %2781 = vxpose.xlu0.b32.end [16/16] 0.0, 128
    %v2782 = vpop.trf.xlu0
    %v2783 = vpop.trf.xlu0
    %v2784 = vpop.trf.xlu0
    %v2785 = vpop.trf.xlu0
    %v2786 = vpop.trf.xlu0
    %v2787 = vpop.trf.xlu0
    %v2788 = vpop.trf.xlu0
    %v2789 = vpop.trf.xlu0
    %v2790 = vpop.trf.xlu0
    %v2791 = vpop.trf.xlu0
    %v2792 = vpop.trf.xlu0
    %v2793 = vpop.trf.xlu0
    %v2794 = vpop.trf.xlu0
    %v2795 = vpop.trf.xlu0
    %v2796 = vpop.trf.xlu0
    %v2797 = vpop.trf.xlu0
    %v2798 = vadd.f32 %v2763, %v2782
    %s2799 = scalar_lea.vmem [#allocation13], 16
    %v2800 = vld [vmem:[%s2799] sm:$0xff]
    %v2801 = vadd.f32 %v2798, %v2800
    %v2802 = vsel %vm609, %v2801, 0.0
    %2803 = vadd.xlane.f32.xlu0 %v2802
    %v2804 = vpop.xlane.xlu0 %2803
    %v2805 = vrot.slane %v2802, 4
    %v2806 = vadd.f32 %v2802, %v2805
    %v2807 = vrot.slane %v2806, 2
    %v2808 = vadd.f32 %v2806, %v2807
    %v2809 = vrot.slane %v2808, 1
    %v2810 = vadd.f32 %v2808, %v2809
    %vm2811 = vcmp.gt.f32.partialorder %v2804, 0.0
    %v2812 = vrsqrt.pop %v2804
    %v2813 = vsel %vm2811, %v2812, 0.0
    %vm2814 = vcmp.gt.f32.partialorder %v2810, 0.0
    %v2815 = vrsqrt.pop %v2810
    %v2816 = vsel %vm2814, %v2815, 0.0
    %v2817 = vmul.f32 %v2813, %v2801
    %v2818 = vmul.f32 %v2817, %v2816
    %s2819 = scalar_lea.vmem [#allocation8], 16
    %v2820 = vld [vmem:[%s2819] sm:$0xff]
    %v2822 = vsel %vm609, %v2820, 0
    %2824 = vmatprep.subr.mxu0 0.0
    %2825 = vmatpush1.msra.mxu0 %v262
    %2826 = vmatprep.subr.mxu0 0.0
    %2827 = vmatpush1.msra.mxu0 0.0
    %2828 = vmatprep.subr.mxu0 0.0
    %2829 = vmatpush1.msra.mxu0 0.0
    %2830 = vmatprep.subr.mxu0 0.0
    %2831 = vmatpush1.msra.mxu0 0.0
    %2832 = vmatprep.subr.mxu0 0.0
    %2833 = vmatpush1.msra.mxu0 0.0
    %2834 = vmatprep.subr.mxu0 0.0
    %2835 = vmatpush1.msra.mxu0 0.0
    %2836 = vmatprep.subr.mxu0 0.0
    %2837 = vmatpush1.msra.mxu0 0.0
    %2838 = vmatprep.subr.mxu0 0.0
    %2839 = vmatpush1.msra.mxu0 0.0
    %2840 = vmatprep.subr.mxu0 0.0
    %2841 = vmatpush1.msra.mxu0 0.0
    %2842 = vmatprep.subr.mxu0 0.0
    %2843 = vmatpush1.msra.mxu0 0.0
    %2844 = vmatprep.subr.mxu0 0.0
    %2845 = vmatpush1.msra.mxu0 0.0
    %2846 = vmatprep.subr.mxu0 0.0
    %2847 = vmatpush1.msra.mxu0 0.0
    %2848 = vmatprep.subr.mxu0 0.0
    %2849 = vmatpush1.msra.mxu0 0.0
    %2850 = vmatprep.subr.mxu0 0.0
    %2851 = vmatpush1.msra.mxu0 0.0
    %2852 = vmatprep.subr.mxu0 0.0
    %2853 = vmatpush1.msra.mxu0 0.0
    %2854 = vmatprep.subr.mxu0 0.0
    %2855 = vmatpush1.msra.mxu0 0.0
    %2856 = vmatprep.subr.mxu0 0.0
    %2857 = vmatpush1.msra.mxu0 0.0
    %2858 = vmatprep.subr.mxu0 0.0
    %2859 = vmatpush1.msra.mxu0 0.0
    %2860 = vmatprep.subr.mxu0 0.0
    %2861 = vmatpush1.msra.mxu0 0.0
    %2862 = vmatprep.subr.mxu0 0.0
    %2863 = vmatpush1.msra.mxu0 0.0
    %2864 = vmatprep.subr.mxu0 0.0
    %2865 = vmatpush1.msra.mxu0 0.0
    %2866 = vmatprep.subr.mxu0 0.0
    %2867 = vmatpush1.msra.mxu0 0.0
    %2868 = vmatprep.subr.mxu0 0.0
    %2869 = vmatpush1.msra.mxu0 0.0
    %2870 = vmatprep.subr.mxu0 0.0
    %2871 = vmatpush1.msra.mxu0 0.0
    %2872 = vmatprep.subr.mxu0 0.0
    %2873 = vmatpush1.msra.mxu0 0.0
    %2874 = vmatprep.subr.mxu0 0.0
    %2875 = vmatpush1.msra.mxu0 0.0
    %2876 = vmatprep.subr.mxu0 0.0
    %2877 = vmatpush1.msra.mxu0 0.0
    %2878 = vmatprep.subr.mxu0 0.0
    %2879 = vmatpush1.msra.mxu0 0.0
    %2880 = vmatprep.subr.mxu0 0.0
    %2881 = vmatpush1.msra.mxu0 0.0
    %2882 = vmatprep.subr.mxu0 0.0
    %2883 = vmatpush1.msra.mxu0 0.0
    %2884 = vmatprep.subr.mxu0 0.0
    %2885 = vmatpush1.msra.mxu0 0.0
    %2886 = vmatprep.subr.mxu0 0.0
    %2887 = vmatpush1.msra.mxu0 0.0
    %2888 = vmatprep.mubr.f32.mxu0 0.0
    %2889 = vmatmul.mubr.f32.gmra.mrb[0].mxu0 %v2822
    %v2890 = vpop.f32.mrb[0].mxu0
    %v2891 = vadd.f32 0.0, %v2890
    %v2892 = vpop.f32.mrb[0].mxu0
    %2893 = vdwg.mxu0
    %s2894 = scalar_lea.vmem [#allocation10], 16
    %v2895 = vld [vmem:[%s2894] sm:$0xff]
    %v2897 = vsel %vm152, %v2895, 0
    %2899 = vmatprep.subr.mxu0 0.0
    %2900 = vmatpush1.msra.mxu0 %v263
    %2901 = vmatprep.subr.mxu0 0.0
    %2902 = vmatpush1.msra.mxu0 %v264
    %2903 = vmatprep.subr.mxu0 0.0
    %2904 = vmatpush1.msra.mxu0 0.0
    %2905 = vmatprep.subr.mxu0 0.0
    %2906 = vmatpush1.msra.mxu0 0.0
    %2907 = vmatprep.subr.mxu0 0.0
    %2908 = vmatpush1.msra.mxu0 0.0
    %2909 = vmatprep.subr.mxu0 0.0
    %2910 = vmatpush1.msra.mxu0 0.0
    %2911 = vmatprep.subr.mxu0 0.0
    %2912 = vmatpush1.msra.mxu0 0.0
    %2913 = vmatprep.subr.mxu0 0.0
    %2914 = vmatpush1.msra.mxu0 0.0
    %2915 = vmatprep.subr.mxu0 0.0
    %2916 = vmatpush1.msra.mxu0 0.0
    %2917 = vmatprep.subr.mxu0 0.0
    %2918 = vmatpush1.msra.mxu0 0.0
    %2919 = vmatprep.subr.mxu0 0.0
    %2920 = vmatpush1.msra.mxu0 0.0
    %2921 = vmatprep.subr.mxu0 0.0
    %2922 = vmatpush1.msra.mxu0 0.0
    %2923 = vmatprep.subr.mxu0 0.0
    %2924 = vmatpush1.msra.mxu0 0.0
    %2925 = vmatprep.subr.mxu0 0.0
    %2926 = vmatpush1.msra.mxu0 0.0
    %2927 = vmatprep.subr.mxu0 0.0
    %2928 = vmatpush1.msra.mxu0 0.0
    %2929 = vmatprep.subr.mxu0 0.0
    %2930 = vmatpush1.msra.mxu0 0.0
    %2931 = vmatprep.subr.mxu0 0.0
    %2932 = vmatpush1.msra.mxu0 0.0
    %2933 = vmatprep.subr.mxu0 0.0
    %2934 = vmatpush1.msra.mxu0 0.0
    %2935 = vmatprep.subr.mxu0 0.0
    %2936 = vmatpush1.msra.mxu0 0.0
    %2937 = vmatprep.subr.mxu0 0.0
    %2938 = vmatpush1.msra.mxu0 0.0
    %2939 = vmatprep.subr.mxu0 0.0
    %2940 = vmatpush1.msra.mxu0 0.0
    %2941 = vmatprep.subr.mxu0 0.0
    %2942 = vmatpush1.msra.mxu0 0.0
    %2943 = vmatprep.subr.mxu0 0.0
    %2944 = vmatpush1.msra.mxu0 0.0
    %2945 = vmatprep.subr.mxu0 0.0
    %2946 = vmatpush1.msra.mxu0 0.0
    %2947 = vmatprep.subr.mxu0 0.0
    %2948 = vmatpush1.msra.mxu0 0.0
    %2949 = vmatprep.subr.mxu0 0.0
    %2950 = vmatpush1.msra.mxu0 0.0
    %2951 = vmatprep.subr.mxu0 0.0
    %2952 = vmatpush1.msra.mxu0 0.0
    %2953 = vmatprep.subr.mxu0 0.0
    %2954 = vmatpush1.msra.mxu0 0.0
    %2955 = vmatprep.subr.mxu0 0.0
    %2956 = vmatpush1.msra.mxu0 0.0
    %2957 = vmatprep.subr.mxu0 0.0
    %2958 = vmatpush1.msra.mxu0 0.0
    %2959 = vmatprep.subr.mxu0 0.0
    %2960 = vmatpush1.msra.mxu0 0.0
    %2961 = vmatprep.subr.mxu0 0.0
    %2962 = vmatpush1.msra.mxu0 0.0
    %2963 = vmatprep.mubr.f32.mxu0 0.0
    %2964 = vmatmul.mubr.f32.gmra.mrb[0].mxu0 %v2897
    %v2965 = vpop.f32.mrb[0].mxu0
    %v2966 = vadd.f32 0.0, %v2965
    %v2967 = vpop.f32.mrb[0].mxu0
    %2968 = vdwg.mxu0
    %s2969 = scalar_lea.vmem %s4, 32
    %v2970 = vld [vmem:[%s2969] sm:$0xff]
    %v2971 = vld [vmem:[%s2969 + $0x8] sm:$0xff]
    %s2972 = scalar_lea.vmem [#allocation5], 16
    %v2973 = vld [vmem:[%s2972] sm:$0xff]
    %v2975 = vsel %vm609, %v2966, 0
    %2977 = vmatprep.subr.mxu0 0.0
    %2978 = vmatpush1.msra.mxu0 %v2973
    %2979 = vmatprep.subr.mxu0 0.0
    %2980 = vmatpush1.msra.mxu0 0.0
    %2981 = vmatprep.subr.mxu0 0.0
    %2982 = vmatpush1.msra.mxu0 0.0
    %2983 = vmatprep.subr.mxu0 0.0
    %2984 = vmatpush1.msra.mxu0 0.0
    %2985 = vmatprep.subr.mxu0 0.0
    %2986 = vmatpush1.msra.mxu0 0.0
    %2987 = vmatprep.subr.mxu0 0.0
    %2988 = vmatpush1.msra.mxu0 0.0
    %2989 = vmatprep.subr.mxu0 0.0
    %2990 = vmatpush1.msra.mxu0 0.0
    %2991 = vmatprep.subr.mxu0 0.0
    %2992 = vmatpush1.msra.mxu0 0.0
    %2993 = vmatprep.subr.mxu0 0.0
    %2994 = vmatpush1.msra.mxu0 0.0
    %2995 = vmatprep.subr.mxu0 0.0
    %2996 = vmatpush1.msra.mxu0 0.0
    %2997 = vmatprep.subr.mxu0 0.0
    %2998 = vmatpush1.msra.mxu0 0.0
    %2999 = vmatprep.subr.mxu0 0.0
    %3000 = vmatpush1.msra.mxu0 0.0
    %3001 = vmatprep.subr.mxu0 0.0
    %3002 = vmatpush1.msra.mxu0 0.0
    %3003 = vmatprep.subr.mxu0 0.0
    %3004 = vmatpush1.msra.mxu0 0.0
    %3005 = vmatprep.subr.mxu0 0.0
    %3006 = vmatpush1.msra.mxu0 0.0
    %3007 = vmatprep.subr.mxu0 0.0
    %3008 = vmatpush1.msra.mxu0 0.0
    %3009 = vmatprep.subr.mxu0 0.0
    %3010 = vmatpush1.msra.mxu0 0.0
    %3011 = vmatprep.subr.mxu0 0.0
    %3012 = vmatpush1.msra.mxu0 0.0
    %3013 = vmatprep.subr.mxu0 0.0
    %3014 = vmatpush1.msra.mxu0 0.0
    %3015 = vmatprep.subr.mxu0 0.0
    %3016 = vmatpush1.msra.mxu0 0.0
    %3017 = vmatprep.subr.mxu0 0.0
    %3018 = vmatpush1.msra.mxu0 0.0
    %3019 = vmatprep.subr.mxu0 0.0
    %3020 = vmatpush1.msra.mxu0 0.0
    %3021 = vmatprep.subr.mxu0 0.0
    %3022 = vmatpush1.msra.mxu0 0.0
    %3023 = vmatprep.subr.mxu0 0.0
    %3024 = vmatpush1.msra.mxu0 0.0
    %3025 = vmatprep.subr.mxu0 0.0
    %3026 = vmatpush1.msra.mxu0 0.0
    %3027 = vmatprep.subr.mxu0 0.0
    %3028 = vmatpush1.msra.mxu0 0.0
    %3029 = vmatprep.subr.mxu0 0.0
    %3030 = vmatpush1.msra.mxu0 0.0
    %3031 = vmatprep.subr.mxu0 0.0
    %3032 = vmatpush1.msra.mxu0 0.0
    %3033 = vmatprep.subr.mxu0 0.0
    %3034 = vmatpush1.msra.mxu0 0.0
    %3035 = vmatprep.subr.mxu0 0.0
    %3036 = vmatpush1.msra.mxu0 0.0
    %3037 = vmatprep.subr.mxu0 0.0
    %3038 = vmatpush1.msra.mxu0 0.0
    %3039 = vmatprep.subr.mxu0 0.0
    %3040 = vmatpush1.msra.mxu0 0.0
    %3041 = vmatprep.mubr.f32.mxu0 0.0
    %3042 = vmatmul.mubr.f32.gmra.mrb[0].mxu0 %v2975
    %v3043 = vpop.f32.mrb[0].mxu0
    %v3044 = vadd.f32 0.0, %v3043
    %v3045 = vpop.f32.mrb[0].mxu0
    %3046 = vdwg.mxu0
    %v3048 = vsel %vm152, %v2891, 0
    %3050 = vmatprep.subr.mxu0 0.0
    %3051 = vmatpush1.msra.mxu0 %v2970
    %3052 = vmatprep.subr.mxu0 0.0
    %3053 = vmatpush1.msra.mxu0 %v2971
    %3054 = vmatprep.subr.mxu0 0.0
    %3055 = vmatpush1.msra.mxu0 0.0
    %3056 = vmatprep.subr.mxu0 0.0
    %3057 = vmatpush1.msra.mxu0 0.0
    %3058 = vmatprep.subr.mxu0 0.0
    %3059 = vmatpush1.msra.mxu0 0.0
    %3060 = vmatprep.subr.mxu0 0.0
    %3061 = vmatpush1.msra.mxu0 0.0
    %3062 = vmatprep.subr.mxu0 0.0
    %3063 = vmatpush1.msra.mxu0 0.0
    %3064 = vmatprep.subr.mxu0 0.0
    %3065 = vmatpush1.msra.mxu0 0.0
    %3066 = vmatprep.subr.mxu0 0.0
    %3067 = vmatpush1.msra.mxu0 0.0
    %3068 = vmatprep.subr.mxu0 0.0
    %3069 = vmatpush1.msra.mxu0 0.0
    %3070 = vmatprep.subr.mxu0 0.0
    %3071 = vmatpush1.msra.mxu0 0.0
    %3072 = vmatprep.subr.mxu0 0.0
    %3073 = vmatpush1.msra.mxu0 0.0
    %3074 = vmatprep.subr.mxu0 0.0
    %3075 = vmatpush1.msra.mxu0 0.0
    %3076 = vmatprep.subr.mxu0 0.0
    %3077 = vmatpush1.msra.mxu0 0.0
    %3078 = vmatprep.subr.mxu0 0.0
    %3079 = vmatpush1.msra.mxu0 0.0
    %3080 = vmatprep.subr.mxu0 0.0
    %3081 = vmatpush1.msra.mxu0 0.0
    %3082 = vmatprep.subr.mxu0 0.0
    %3083 = vmatpush1.msra.mxu0 0.0
    %3084 = vmatprep.subr.mxu0 0.0
    %3085 = vmatpush1.msra.mxu0 0.0
    %3086 = vmatprep.subr.mxu0 0.0
    %3087 = vmatpush1.msra.mxu0 0.0
    %3088 = vmatprep.subr.mxu0 0.0
    %3089 = vmatpush1.msra.mxu0 0.0
    %3090 = vmatprep.subr.mxu0 0.0
    %3091 = vmatpush1.msra.mxu0 0.0
    %3092 = vmatprep.subr.mxu0 0.0
    %3093 = vmatpush1.msra.mxu0 0.0
    %3094 = vmatprep.subr.mxu0 0.0
    %3095 = vmatpush1.msra.mxu0 0.0
    %3096 = vmatprep.subr.mxu0 0.0
    %3097 = vmatpush1.msra.mxu0 0.0
    %3098 = vmatprep.subr.mxu0 0.0
    %3099 = vmatpush1.msra.mxu0 0.0
    %3100 = vmatprep.subr.mxu0 0.0
    %3101 = vmatpush1.msra.mxu0 0.0
    %3102 = vmatprep.subr.mxu0 0.0
    %3103 = vmatpush1.msra.mxu0 0.0
    %3104 = vmatprep.subr.mxu0 0.0
    %3105 = vmatpush1.msra.mxu0 0.0
    %3106 = vmatprep.subr.mxu0 0.0
    %3107 = vmatpush1.msra.mxu0 0.0
    %3108 = vmatprep.subr.mxu0 0.0
    %3109 = vmatpush1.msra.mxu0 0.0
    %3110 = vmatprep.subr.mxu0 0.0
    %3111 = vmatpush1.msra.mxu0 0.0
    %3112 = vmatprep.subr.mxu0 0.0
    %3113 = vmatpush1.msra.mxu0 0.0
    %3114 = vmatprep.mubr.f32.mxu0 0.0
    %3115 = vmatmul.mubr.f32.gmra.mrb[0].mxu0 %v3048
    %v3116 = vpop.f32.mrb[0].mxu0
    %v3117 = vadd.f32 %v3044, %v3116
    %v3118 = vpop.f32.mrb[0].mxu0
    %3119 = vdwg.mxu0
    %3120 = vrot.lane.b32.xlu0 %v927, 96
    %v3121 = vpop.permute.xlu0 %3120
    %v3124 = vsel %vm609, %v2818, 0
    %3126 = vmatprep.subr.mxu0 0.0
    %3127 = vmatpush1.msra.mxu0 %v3117
    %3128 = vmatprep.subr.mxu0 0.0
    %3129 = vmatpush1.msra.mxu0 0.0
    %3130 = vmatprep.subr.mxu0 0.0
    %3131 = vmatpush1.msra.mxu0 0.0
    %3132 = vmatprep.subr.mxu0 0.0
    %3133 = vmatpush1.msra.mxu0 0.0
    %3134 = vmatprep.subr.mxu0 0.0
    %3135 = vmatpush1.msra.mxu0 0.0
    %3136 = vmatprep.subr.mxu0 0.0
    %3137 = vmatpush1.msra.mxu0 0.0
    %3138 = vmatprep.subr.mxu0 0.0
    %3139 = vmatpush1.msra.mxu0 0.0
    %3140 = vmatprep.subr.mxu0 0.0
    %3141 = vmatpush1.msra.mxu0 0.0
    %3142 = vmatprep.subr.mxu0 0.0
    %3143 = vmatpush1.msra.mxu0 0.0
    %3144 = vmatprep.subr.mxu0 0.0
    %3145 = vmatpush1.msra.mxu0 0.0
    %3146 = vmatprep.subr.mxu0 0.0
    %3147 = vmatpush1.msra.mxu0 0.0
    %3148 = vmatprep.subr.mxu0 0.0
    %3149 = vmatpush1.msra.mxu0 0.0
    %3150 = vmatprep.subr.mxu0 0.0
    %3151 = vmatpush1.msra.mxu0 0.0
    %3152 = vmatprep.subr.mxu0 0.0
    %3153 = vmatpush1.msra.mxu0 0.0
    %3154 = vmatprep.subr.mxu0 0.0
    %3155 = vmatpush1.msra.mxu0 0.0
    %3156 = vmatprep.subr.mxu0 0.0
    %3157 = vmatpush1.msra.mxu0 0.0
    %3158 = vmatprep.subr.mxu0 0.0
    %3159 = vmatpush1.msra.mxu0 0.0
    %3160 = vmatprep.subr.mxu0 0.0
    %3161 = vmatpush1.msra.mxu0 0.0
    %3162 = vmatprep.subr.mxu0 0.0
    %3163 = vmatpush1.msra.mxu0 0.0
    %3164 = vmatprep.subr.mxu0 0.0
    %3165 = vmatpush1.msra.mxu0 0.0
    %3166 = vmatprep.subr.mxu0 0.0
    %3167 = vmatpush1.msra.mxu0 0.0
    %3168 = vmatprep.subr.mxu0 0.0
    %3169 = vmatpush1.msra.mxu0 0.0
    %3170 = vmatprep.subr.mxu0 0.0
    %3171 = vmatpush1.msra.mxu0 0.0
    %3172 = vmatprep.subr.mxu0 0.0
    %3173 = vmatpush1.msra.mxu0 0.0
    %3174 = vmatprep.subr.mxu0 0.0
    %3175 = vmatpush1.msra.mxu0 0.0
    %3176 = vmatprep.subr.mxu0 0.0
    %3177 = vmatpush1.msra.mxu0 0.0
    %3178 = vmatprep.subr.mxu0 0.0
    %3179 = vmatpush1.msra.mxu0 0.0
    %3180 = vmatprep.subr.mxu0 0.0
    %3181 = vmatpush1.msra.mxu0 0.0
    %3182 = vmatprep.subr.mxu0 0.0
    %3183 = vmatpush1.msra.mxu0 0.0
    %3184 = vmatprep.subr.mxu0 0.0
    %3185 = vmatpush1.msra.mxu0 0.0
    %3186 = vmatprep.subr.mxu0 0.0
    %3187 = vmatpush1.msra.mxu0 0.0
    %3188 = vmatprep.subr.mxu0 0.0
    %3189 = vmatpush1.msra.mxu0 0.0
    %3190 = vmatprep.mubr.f32.mxu0 0.0
    %3191 = vmatmul.mubr.f32.gmra.mrb[0].mxu0 %v3124
    %v3192 = vpop.f32.mrb[0].mxu0
    %v3193 = vadd.f32 %v3121, %v3192
    %v3194 = vpop.f32.mrb[0].mxu0
    %3195 = vdwg.mxu0
    %vm3196 = vcmp.ge.f32.partialorder %v3193, 0.0
    %v3197 = vmul.f32 %v3193, 0.01
    %v3198 = vsel %vm3196, %v3193, %v3197
    %v3200 = vsel %vm152, %v3198, 0
    %3202 = vmatprep.subr.mxu0 0.0
    %3203 = vmatpush1.xpose.msra.mxu0 %v3200
    %3204 = vmatprep.subr.mxu0 0.0
    %3205 = vmatpush1.xpose.msra.mxu0 0.0
    %3206 = vmatprep.subr.mxu0 0.0
    %3207 = vmatpush1.xpose.msra.mxu0 0.0
    %3208 = vmatprep.subr.mxu0 0.0
    %3209 = vmatpush1.xpose.msra.mxu0 0.0
    %3210 = vmatprep.subr.mxu0 0.0
    %3211 = vmatpush1.xpose.msra.mxu0 0.0
    %3212 = vmatprep.subr.mxu0 0.0
    %3213 = vmatpush1.xpose.msra.mxu0 0.0
    %3214 = vmatprep.subr.mxu0 0.0
    %3215 = vmatpush1.xpose.msra.mxu0 0.0
    %3216 = vmatprep.subr.mxu0 0.0
    %3217 = vmatpush1.xpose.msra.mxu0 0.0
    %3218 = vmatprep.subr.mxu0 0.0
    %3219 = vmatpush1.xpose.msra.mxu0 0.0
    %3220 = vmatprep.subr.mxu0 0.0
    %3221 = vmatpush1.xpose.msra.mxu0 0.0
    %3222 = vmatprep.subr.mxu0 0.0
    %3223 = vmatpush1.xpose.msra.mxu0 0.0
    %3224 = vmatprep.subr.mxu0 0.0
    %3225 = vmatpush1.xpose.msra.mxu0 0.0
    %3226 = vmatprep.subr.mxu0 0.0
    %3227 = vmatpush1.xpose.msra.mxu0 0.0
    %3228 = vmatprep.subr.mxu0 0.0
    %3229 = vmatpush1.xpose.msra.mxu0 0.0
    %3230 = vmatprep.subr.mxu0 0.0
    %3231 = vmatpush1.xpose.msra.mxu0 0.0
    %3232 = vmatprep.subr.mxu0 0.0
    %3233 = vmatpush1.xpose.msra.mxu0 0.0
    %3234 = vmatprep.subr.mxu0 0.0
    %3235 = vmatpush1.xpose.msra.mxu0 0.0
    %3236 = vmatprep.subr.mxu0 0.0
    %3237 = vmatpush1.xpose.msra.mxu0 0.0
    %3238 = vmatprep.subr.mxu0 0.0
    %3239 = vmatpush1.xpose.msra.mxu0 0.0
    %3240 = vmatprep.subr.mxu0 0.0
    %3241 = vmatpush1.xpose.msra.mxu0 0.0
    %3242 = vmatprep.subr.mxu0 0.0
    %3243 = vmatpush1.xpose.msra.mxu0 0.0
    %3244 = vmatprep.subr.mxu0 0.0
    %3245 = vmatpush1.xpose.msra.mxu0 0.0
    %3246 = vmatprep.subr.mxu0 0.0
    %3247 = vmatpush1.xpose.msra.mxu0 0.0
    %3248 = vmatprep.subr.mxu0 0.0
    %3249 = vmatpush1.xpose.msra.mxu0 0.0
    %3250 = vmatprep.subr.mxu0 0.0
    %3251 = vmatpush1.xpose.msra.mxu0 0.0
    %3252 = vmatprep.subr.mxu0 0.0
    %3253 = vmatpush1.xpose.msra.mxu0 0.0
    %3254 = vmatprep.subr.mxu0 0.0
    %3255 = vmatpush1.xpose.msra.mxu0 0.0
    %3256 = vmatprep.subr.mxu0 0.0
    %3257 = vmatpush1.xpose.msra.mxu0 0.0
    %3258 = vmatprep.subr.mxu0 0.0
    %3259 = vmatpush1.xpose.msra.mxu0 0.0
    %3260 = vmatprep.subr.mxu0 0.0
    %3261 = vmatpush1.xpose.msra.mxu0 0.0
    %3262 = vmatprep.subr.mxu0 0.0
    %3263 = vmatpush1.xpose.msra.mxu0 0.0
    %3264 = vmatprep.subr.mxu0 0.0
    %3265 = vmatpush1.xpose.msra.mxu0 0.0
    %3266 = vmatprep.mubr.f32.mxu0 0.0
    %3267 = vmatmul.mubr.f32.gmra.mrb[0].mxu0 %v3200
    %v3268 = vpop.f32.mrb[0].mxu0
    %v3269 = vadd.f32 0.0, %v3268
    %v3270 = vpop.f32.mrb[0].mxu0
    %3271 = vdwg.mxu0
    %v3272 = vmul.f32 %v3269, 0.5
    %v3273 = vtanh.pop %v3272
    %v3274 = vadd.f32 %v3273, 1.0
    %v3275 = vmul.f32 %v3274, 0.5
    %s3276 = scalar_lea.vmem %s10, 128
    %v3277 = vld [vmem:[%s3276] sm:$0xff]
    %v3278 = vld [vmem:[%s3276 + $0x8] sm:$0xff]
    %v3279 = vld [vmem:[%s3276 + $0x10] sm:$0xff]
    %v3280 = vld [vmem:[%s3276 + $0x18] sm:$0xff]
    %v3282 = vsel %vm609, %v3277, 0
    %v3285 = vsel %vm609, %v3278, 0
    %v3288 = vsel %vm609, %v3279, 0
    %v3291 = vsel %vm609, %v3280, 0
    %3293 = vmatprep.subr.mxu0 0.0
    %3294 = vmatpush1.msra.mxu0 %v3275
    %3295 = vmatprep.subr.mxu0 0.0
    %3296 = vmatpush1.msra.mxu0 0.0
    %3297 = vmatprep.subr.mxu0 0.0
    %3298 = vmatpush1.msra.mxu0 0.0
    %3299 = vmatprep.subr.mxu0 0.0
    %3300 = vmatpush1.msra.mxu0 0.0
    %3301 = vmatprep.subr.mxu0 0.0
    %3302 = vmatpush1.msra.mxu0 0.0
    %3303 = vmatprep.subr.mxu0 0.0
    %3304 = vmatpush1.msra.mxu0 0.0
    %3305 = vmatprep.subr.mxu0 0.0
    %3306 = vmatpush1.msra.mxu0 0.0
    %3307 = vmatprep.subr.mxu0 0.0
    %3308 = vmatpush1.msra.mxu0 0.0
    %3309 = vmatprep.subr.mxu0 0.0
    %3310 = vmatpush1.msra.mxu0 0.0
    %3311 = vmatprep.subr.mxu0 0.0
    %3312 = vmatpush1.msra.mxu0 0.0
    %3313 = vmatprep.subr.mxu0 0.0
    %3314 = vmatpush1.msra.mxu0 0.0
    %3315 = vmatprep.subr.mxu0 0.0
    %3316 = vmatpush1.msra.mxu0 0.0
    %3317 = vmatprep.subr.mxu0 0.0
    %3318 = vmatpush1.msra.mxu0 0.0
    %3319 = vmatprep.subr.mxu0 0.0
    %3320 = vmatpush1.msra.mxu0 0.0
    %3321 = vmatprep.subr.mxu0 0.0
    %3322 = vmatpush1.msra.mxu0 0.0
    %3323 = vmatprep.subr.mxu0 0.0
    %3324 = vmatpush1.msra.mxu0 0.0
    %3325 = vmatprep.subr.mxu0 0.0
    %3326 = vmatpush1.msra.mxu0 0.0
    %3327 = vmatprep.subr.mxu0 0.0
    %3328 = vmatpush1.msra.mxu0 0.0
    %3329 = vmatprep.subr.mxu0 0.0
    %3330 = vmatpush1.msra.mxu0 0.0
    %3331 = vmatprep.subr.mxu0 0.0
    %3332 = vmatpush1.msra.mxu0 0.0
    %3333 = vmatprep.subr.mxu0 0.0
    %3334 = vmatpush1.msra.mxu0 0.0
    %3335 = vmatprep.subr.mxu0 0.0
    %3336 = vmatpush1.msra.mxu0 0.0
    %3337 = vmatprep.subr.mxu0 0.0
    %3338 = vmatpush1.msra.mxu0 0.0
    %3339 = vmatprep.subr.mxu0 0.0
    %3340 = vmatpush1.msra.mxu0 0.0
    %3341 = vmatprep.subr.mxu0 0.0
    %3342 = vmatpush1.msra.mxu0 0.0
    %3343 = vmatprep.subr.mxu0 0.0
    %3344 = vmatpush1.msra.mxu0 0.0
    %3345 = vmatprep.subr.mxu0 0.0
    %3346 = vmatpush1.msra.mxu0 0.0
    %3347 = vmatprep.subr.mxu0 0.0
    %3348 = vmatpush1.msra.mxu0 0.0
    %3349 = vmatprep.subr.mxu0 0.0
    %3350 = vmatpush1.msra.mxu0 0.0
    %3351 = vmatprep.subr.mxu0 0.0
    %3352 = vmatpush1.msra.mxu0 0.0
    %3353 = vmatprep.subr.mxu0 0.0
    %3354 = vmatpush1.msra.mxu0 0.0
    %3355 = vmatprep.subr.mxu0 0.0
    %3356 = vmatpush1.msra.mxu0 0.0
    %3357 = vmatprep.mubr.f32.mxu0 0.0
    %3358 = vmatmul.mubr.f32.gmra.mrb[0].mxu0 %v3282
    %v3359 = vpop.f32.mrb[0].mxu0
    %v3360 = vadd.f32 0.0, %v3359
    %v3361 = vpop.f32.mrb[0].mxu0
    %3362 = vmatprep.mubr.f32.mxu0 0.0
    %3363 = vmatmul.mubr.f32.gmra.mrb[0].mxu0 %v3285
    %v3364 = vpop.f32.mrb[0].mxu0
    %v3365 = vadd.f32 0.0, %v3364
    %v3366 = vpop.f32.mrb[0].mxu0
    %3367 = vmatprep.mubr.f32.mxu0 0.0
    %3368 = vmatmul.mubr.f32.gmra.mrb[0].mxu0 %v3288
    %v3369 = vpop.f32.mrb[0].mxu0
    %v3370 = vadd.f32 0.0, %v3369
    %v3371 = vpop.f32.mrb[0].mxu0
    %3372 = vmatprep.mubr.f32.mxu0 0.0
    %3373 = vmatmul.mubr.f32.gmra.mrb[0].mxu0 %v3291
    %v3374 = vpop.f32.mrb[0].mxu0
    %v3375 = vadd.f32 0.0, %v3374
    %v3376 = vpop.f32.mrb[0].mxu0
    %3377 = vdwg.mxu0
    %v3378 = vmul.f32 %v3360, %v2683
    %v3379 = vmul.f32 %v3365, %v2684
    %v3380 = vmul.f32 %v3370, %v2685
    %v3381 = vmul.f32 %v3375, %v2686
    %v3382 = vsel %vm609, %v3378, 0.0
    %3383 = vadd.xlane.f32.xlu0 %v3382
    %v3384 = vpop.xlane.xlu0 %3383
    %v3385 = vsel %vm609, %v3379, 0.0
    %3386 = vadd.xlane.f32.xlu0 %v3385
    %v3387 = vpop.xlane.xlu0 %3386
    %v3388 = vsel %vm609, %v3380, 0.0
    %3389 = vadd.xlane.f32.xlu0 %v3388
    %v3390 = vpop.xlane.xlu0 %3389
    %v3391 = vsel %vm609, %v3381, 0.0
    %3392 = vadd.xlane.f32.xlu0 %v3391
    %v3393 = vpop.xlane.xlu0 %3392
    %v3394 = vmul.f32 %v3384, %v1201
    %v3395 = vmul.f32 %v3387, %v1201
    %v3396 = vmul.f32 %v3390, %v1201
    %v3397 = vmul.f32 %v3393, %v1201
    %v3398 = vadd.f32 %v3394, %v1209
    %v3399 = vadd.f32 %v3395, %v1209
    %v3400 = vadd.f32 %v3396, %v1209
    %v3401 = vadd.f32 %v3397, %v1209
    %3406 = vrot.lane.b32.xlu0 %v2546, 32
    %v3407 = vpop.permute.xlu0 %3406
    %3408 = vrot.lane.b32.xlu0 %v2551, 32
    %v3409 = vpop.permute.xlu0 %3408
    %3410 = vrot.lane.b32.xlu0 %v2556, 32
    %v3411 = vpop.permute.xlu0 %3410
    %3412 = vrot.lane.b32.xlu0 %v2561, 32
    %v3413 = vpop.permute.xlu0 %3412
    %v3418 = vmul.f32 %v3398, %v3407
    %v3419 = vmul.f32 %v3399, %v3409
    %v3420 = vmul.f32 %v3400, %v3411
    %v3421 = vmul.f32 %v3401, %v3413
    %v3422 = vadd.f32 %v3418, %v3407
    %v3423 = vadd.f32 %v3419, %v3409
    %v3424 = vadd.f32 %v3420, %v3411
    %v3425 = vadd.f32 %v3421, %v3413
    %s3426 = scalar_lea.vmem %s12, 64
    %v3427 = vld [vmem:[%s3426] sm:$0xff]
    %v3428 = vld [vmem:[%s3426 + $0x8] sm:$0xff]
    %v3429 = vld [vmem:[%s3426 + $0x10] sm:$0xff]
    %v3430 = vld [vmem:[%s3426 + $0x18] sm:$0xf]
    %3435 = vrot.lane.b32.xlu0 %v3422, 96
    %v3436 = vpop.permute.xlu0 %3435
    %3437 = vrot.lane.b32.xlu0 %v3423, 96
    %v3438 = vpop.permute.xlu0 %3437
    %3439 = vrot.lane.b32.xlu0 %v3424, 96
    %v3440 = vpop.permute.xlu0 %3439
    %3441 = vrot.lane.b32.xlu0 %v3425, 96
    %v3442 = vpop.permute.xlu0 %3441
    %v3448 = vsel %vm500, %v3427, 0
    %v3451 = vsel %vm500, %v3428, 0
    %v3454 = vsel %vm500, %v3429, 0
    %v3457 = vsel %vm500, %v3430, 0
    %3459 = vmatprep.subr.mxu0 0.0
    %3460 = vmatpush1.msra.mxu0 %v3436
    %3461 = vmatprep.subr.mxu0 0.0
    %3462 = vmatpush1.msra.mxu0 %v3438
    %3463 = vmatprep.subr.mxu0 0.0
    %3464 = vmatpush1.msra.mxu0 %v3440
    %3465 = vmatprep.subr.mxu0 0.0
    %3466 = vmatpush1.msra.mxu0 %v3442
    %3467 = vmatprep.subr.mxu0 0.0
    %3468 = vmatpush1.msra.mxu0 0.0
    %3469 = vmatprep.subr.mxu0 0.0
    %3470 = vmatpush1.msra.mxu0 0.0
    %3471 = vmatprep.subr.mxu0 0.0
    %3472 = vmatpush1.msra.mxu0 0.0
    %3473 = vmatprep.subr.mxu0 0.0
    %3474 = vmatpush1.msra.mxu0 0.0
    %3475 = vmatprep.subr.mxu0 0.0
    %3476 = vmatpush1.msra.mxu0 0.0
    %3477 = vmatprep.subr.mxu0 0.0
    %3478 = vmatpush1.msra.mxu0 0.0
    %3479 = vmatprep.subr.mxu0 0.0
    %3480 = vmatpush1.msra.mxu0 0.0
    %3481 = vmatprep.subr.mxu0 0.0
    %3482 = vmatpush1.msra.mxu0 0.0
    %3483 = vmatprep.subr.mxu0 0.0
    %3484 = vmatpush1.msra.mxu0 0.0
    %3485 = vmatprep.subr.mxu0 0.0
    %3486 = vmatpush1.msra.mxu0 0.0
    %3487 = vmatprep.subr.mxu0 0.0
    %3488 = vmatpush1.msra.mxu0 0.0
    %3489 = vmatprep.subr.mxu0 0.0
    %3490 = vmatpush1.msra.mxu0 0.0
    %3491 = vmatprep.subr.mxu0 0.0
    %3492 = vmatpush1.msra.mxu0 0.0
    %3493 = vmatprep.subr.mxu0 0.0
    %3494 = vmatpush1.msra.mxu0 0.0
    %3495 = vmatprep.subr.mxu0 0.0
    %3496 = vmatpush1.msra.mxu0 0.0
    %3497 = vmatprep.subr.mxu0 0.0
    %3498 = vmatpush1.msra.mxu0 0.0
    %3499 = vmatprep.subr.mxu0 0.0
    %3500 = vmatpush1.msra.mxu0 0.0
    %3501 = vmatprep.subr.mxu0 0.0
    %3502 = vmatpush1.msra.mxu0 0.0
    %3503 = vmatprep.subr.mxu0 0.0
    %3504 = vmatpush1.msra.mxu0 0.0
    %3505 = vmatprep.subr.mxu0 0.0
    %3506 = vmatpush1.msra.mxu0 0.0
    %3507 = vmatprep.subr.mxu0 0.0
    %3508 = vmatpush1.msra.mxu0 0.0
    %3509 = vmatprep.subr.mxu0 0.0
    %3510 = vmatpush1.msra.mxu0 0.0
    %3511 = vmatprep.subr.mxu0 0.0
    %3512 = vmatpush1.msra.mxu0 0.0
    %3513 = vmatprep.subr.mxu0 0.0
    %3514 = vmatpush1.msra.mxu0 0.0
    %3515 = vmatprep.subr.mxu0 0.0
    %3516 = vmatpush1.msra.mxu0 0.0
    %3517 = vmatprep.subr.mxu0 0.0
    %3518 = vmatpush1.msra.mxu0 0.0
    %3519 = vmatprep.subr.mxu0 0.0
    %3520 = vmatpush1.msra.mxu0 0.0
    %3521 = vmatprep.subr.mxu0 0.0
    %3522 = vmatpush1.msra.mxu0 0.0
    %3523 = vmatprep.mubr.f32.mxu0 0.0
    %3524 = vmatmul.mubr.f32.gmra.mrb[0].mxu0 %v3448
    %v3525 = vpop.f32.mrb[0].mxu0
    %v3526 = vadd.f32 0.0, %v3525
    %v3527 = vpop.f32.mrb[0].mxu0
    %3528 = vmatprep.mubr.f32.mxu0 0.0
    %3529 = vmatmul.mubr.f32.gmra.mrb[0].mxu0 %v3451
    %v3530 = vpop.f32.mrb[0].mxu0
    %v3531 = vadd.f32 0.0, %v3530
    %v3532 = vpop.f32.mrb[0].mxu0
    %3533 = vmatprep.mubr.f32.mxu0 0.0
    %3534 = vmatmul.mubr.f32.gmra.mrb[0].mxu0 %v3454
    %v3535 = vpop.f32.mrb[0].mxu0
    %v3536 = vadd.f32 0.0, %v3535
    %v3537 = vpop.f32.mrb[0].mxu0
    %3538 = vmatprep.mubr.f32.mxu0 0.0
    %3539 = vmatmul.mubr.f32.gmra.mrb[0].mxu0 %v3457
    %v3540 = vpop.f32.mrb[0].mxu0
    %v3541 = vadd.f32 0.0, %v3540
    %v3542 = vpop.f32.mrb[0].mxu0
    %3543 = vdwg.mxu0
    %3548 = vrot.lane.b32.xlu0 %v3526, 32
    %v3549 = vpop.permute.xlu0 %3548
    %3550 = vrot.lane.b32.xlu0 %v3531, 32
    %v3551 = vpop.permute.xlu0 %3550
    %3552 = vrot.lane.b32.xlu0 %v3536, 32
    %v3553 = vpop.permute.xlu0 %3552
    %3554 = vrot.lane.b32.xlu0 %v3541, 32
    %v3555 = vpop.permute.xlu0 %3554
    %vm3560 = vcmask 392448
    %3561 = vst.msk [vmem:[#allocation14] sm:$0xff] %vm3560, %v3549
    %3562 = vst.msk [vmem:[#allocation14 + $0x8] sm:$0xff] %vm3560, %v3551
    %3563 = vst.msk [vmem:[#allocation14 + $0x10] sm:$0xff] %vm3560, %v3553
    %vm3564 = vcmask 388352
    %3565 = vst.msk [vmem:[#allocation14 + $0x18] sm:$0xf] %vm3564, %v3555
    // Predicated region
    $region86: #{decoder_forward.1} parent=1 // pred_check
      _
    $region87: #{decoder_forward.1} parent=1 // pred_check_branch
      %3567 = sbr.rel (0) target = $region89
    $region88: #{decoder_forward.1} parent=1 // pred_region
      %s3569 = ssub.s32 512, 512
      %3570 = vsyncadd [#allocation4], %s3569
      %s3571 = sshll.u32 [#allocation14], 4
      %s3572 = int_to_ptr.vmem [resolvable:$true] %s3571
      %3577 = dma.vmem_to_hbm [thread:$0]  %s3572, 512, %s14, [#allocation4], 128, 128, 8
    $region89: #{decoder_forward.1} parent=1 // pred_fallthru
      _
    // Predicated region
    $region90: #{decoder_forward.1} parent=1 // pred_check
      _
    $region91: #{decoder_forward.1} parent=1 // pred_check_branch
      %3579 = sbr.rel (0) target = $region93
    $region92: #{decoder_forward.1} parent=1 // pred_region
      %3580 = dma.done [#allocation4], 512
    $region93: #{decoder_forward.1} parent=1 // pred_fallthru
      _
    %3581 = vsyncpa [#allocation3], 1
    %3582 = vsyncpa [#allocation6], 1
    %3583 = vsyncpa [#allocation9], 1
    %3584 = vsyncpa [#allocation12], 1
    %3585 = vsyncpa [#allocation4], 1

</llo_original>
